<compile_context>
chip_gen: v7x
topology: tpu7x:2x2x1
jax: 0.10.0
libtpu: 0.0.40
codegen_flags: <defaults>
</compile_context>

<pallas_src>
import functools
import math

import jax
import jax.numpy as jnp
from jax import lax
from jax.experimental import pallas as pl
from jax.experimental.pallas import tpu as pltpu


def _default_mxu_bf16():
    # bf16 MXU operands (fp32 accumulate) on bf16-native MXUs (v6e / v7x).
    # v5e keeps fp32 (its VPU/EUP have no bf16 and the MXU gain is smaller).
    try:
        kind = jax.devices()[0].device_kind.lower()
        return ("v6" in kind) or ("v7" in kind)
    except Exception:  # pragma: no cover - no accelerator at import time
        return False


MXU_BF16 = _default_mxu_bf16()


def _mx(a):
    return a.astype(jnp.bfloat16) if MXU_BF16 else a


def _row_tile(m, cap=512):
    """Bounded row tile: multiple of 8 (sublane), divides m, <= cap.

    cap=512 keeps the per-step blocks small enough for v7x's 64 MiB VMEM even
    at large D, while giving many grid steps (pipeline steady state) at large M.
    """
    if m <= cap:
        return m
    for cand in range(cap - cap % 8, 7, -8):
        if m % cand == 0:
            return cand
    return m  # fallback (e.g. prime-ish M): single block, still correct


def _group_tile(g, per_group_bytes, budget=6 << 20):
    """Largest divisor of g whose block fits the VMEM budget.

    Prefers an even number of grid steps when tiling is needed (v7x shards a
    'parallel' grid axis across its 2 TensorCores).
    """
    cap = max(1, budget // max(per_group_bytes, 1))
    if g <= cap:
        return g
    best = 1
    for cand in range(min(g, cap), 0, -1):
        if g % cand == 0:
            if (g // cand) % 2 == 0:
                return cand
            if best == 1:
                best = cand
    return best


# ------------------------- fused QKV projection kernel ---------------------- #

def _qkv_kernel(x_ref, w_ref, b_ref, oq_ref, ok_ref, ov_ref):
    y = jnp.dot(_mx(x_ref[...]), _mx(w_ref[...]),
                preferred_element_type=jnp.float32) + b_ref[...]
    dc = oq_ref.shape[-1]
    oq_ref[...] = y[:, :dc].astype(oq_ref.dtype)
    ok_ref[...] = y[:, dc:2 * dc].astype(ok_ref.dtype)
    ov_ref[...] = y[:, 2 * dc:].astype(ov_ref.dtype)


def pallas_qkv(x2d, w_qkv, b_qkv):
    m, din = x2d.shape
    dout3 = w_qkv.shape[1]
    dout = dout3 // 3
    tm = _row_tile(m)
    out = jax.ShapeDtypeStruct((m, dout), jnp.float32)
    return pl.pallas_call(
        _qkv_kernel,
        out_shape=(out, out, out),
        grid=(m // tm,),
        in_specs=[pl.BlockSpec((tm, din), lambda i: (i, 0)),
                  pl.BlockSpec((din, dout3), lambda i: (0, 0)),
                  pl.BlockSpec((1, dout3), lambda i: (0, 0))],
        out_specs=(pl.BlockSpec((tm, dout), lambda i: (i, 0)),
                   pl.BlockSpec((tm, dout), lambda i: (i, 0)),
                   pl.BlockSpec((tm, dout), lambda i: (i, 0))),
        compiler_params=pltpu.CompilerParams(dimension_semantics=("parallel",)),
    )(x2d, _mx(w_qkv), b_qkv.reshape(1, dout3))


# ---------------- neighbour scores + proj (fused, all heads) ---------------- #

def _score_kernel(q_ref, k_ref, selw_ref, hm_ref, pb_ref, o_ref):
    # M[g,n,h] = sum_s (Q_h[g,n] . K_h[g,statica[n,s]]) * proj_w[s] + proj_b
    #          = sum_c Q[g,n,c] * (sel_w @ K[g])[n,c] * head_mask[c,h] + proj_b
    # No [gb,N,N] score intermediate, full-width D on the lane axis.
    q = q_ref[...]                                              # [gb, N, D] f32
    k = k_ref[...]
    gb, n, _ = q.shape
    selw = jnp.broadcast_to(selw_ref[...][None], (gb, n, n))
    ksel = jnp.einsum('gnm,gmc->gnc', selw, k,
                      preferred_element_type=jnp.float32)       # neighbour-weighted K
    prod = q * ksel                                             # VPU multiply
    m = jnp.einsum('gnc,ch->gnh', prod, hm_ref[...],
                   preferred_element_type=jnp.float32)          # per-head reduce
    o_ref[...] = (m + pb_ref[...]).astype(o_ref.dtype)


def pallas_neighbor_scores(q_g, k_g, sel_w, head_mask, proj_b):
    g, n, dd = q_g.shape
    h = head_mask.shape[1]
    per_group = (2 * n * dd + n * h) * 4
    gb = _group_tile(g, per_group)
    return pl.pallas_call(
        _score_kernel,
        out_shape=jax.ShapeDtypeStruct((g, n, h), jnp.float32),
        grid=(g // gb,),
        in_specs=[pl.BlockSpec((gb, n, dd), lambda i: (i, 0, 0)),
                  pl.BlockSpec((gb, n, dd), lambda i: (i, 0, 0)),
                  pl.BlockSpec((n, n), lambda i: (0, 0)),
                  pl.BlockSpec((dd, h), lambda i: (0, 0)),
                  pl.BlockSpec((1, 1), lambda i: (0, 0))],
        out_specs=pl.BlockSpec((gb, n, h), lambda i: (i, 0, 0)),
        compiler_params=pltpu.CompilerParams(dimension_semantics=("parallel",)),
    )(q_g, k_g, sel_w, head_mask, proj_b.reshape(1, 1))


# --------------- sampled attention + argmax routing (all heads) -------------- #

def _attn_kernel(sel_ref, q_ref, k_ref, v_ref, cmask_ref, o_ref, *, heads, scale):
    sel = sel_ref[...]                                  # [gb, H*U, N] one-hot
    q = q_ref[...]                                      # [gb, N, D]
    k = k_ref[...]
    v = v_ref[...]
    cmask = cmask_ref[...]                              # [H*U, D] head-col mask
    gb, hu, n = sel.shape
    u = hu // heads

    # Gather sampled queries from the VMEM Q block via a one-hot MXU matmul
    # (no Q_reduce tensor in HBM), then zero the other heads' columns so the
    # full-D contraction below equals the per-head d-dim contraction.
    q_red = jnp.einsum('gkn,gnc->gkc', _mx(sel), _mx(q),
                       preferred_element_type=jnp.float32) * cmask[None]
    s = jnp.einsum('gkc,gnc->gkn', _mx(q_red), _mx(k),
                   preferred_element_type=jnp.float32) * scale  # [gb, H*U, N]
    s = s - jnp.max(s, axis=-1, keepdims=True)
    e = jnp.exp(s)
    # Exact division (not approx reciprocal): attn feeds the argmax routing.
    attn = e / jnp.sum(e, axis=-1, keepdims=True)
    av = jnp.einsum('gkn,gnc->gkc', _mx(attn), _mx(v),
                    preferred_element_type=jnp.float32) * cmask[None]  # [gb,H*U,D]

    # Routing (reuses the value-path attn, no transposed softmax recompute):
    # cp[h,n] = argmax_u attn[h,u,n] (first occurrence),
    # out[n, h-cols] = av[(h, cp[h,n]), h-cols]   -> heads-merged [gb, N, D].
    attn4 = attn.reshape(gb, heads, u, n)
    u_iota = lax.broadcasted_iota(jnp.int32, attn4.shape, 2)
    maxu = jnp.max(attn4, axis=2, keepdims=True)
    cp = jnp.min(jnp.where(attn4 >= maxu, u_iota, u), axis=2, keepdims=True)
    route = (u_iota == cp).astype(jnp.float32).reshape(gb, hu, n)
    out = jnp.einsum('gkn,gkc->gnc', route, av,       # pure selection: keep fp32
                     preferred_element_type=jnp.float32)
    o_ref[...] = out.astype(o_ref.dtype)


def pallas_sampled_attention(sel, q_g, k_g, v_g, cmask, heads):
    g, n, dd = q_g.shape
    hu = sel.shape[1]
    d = dd // heads
    per_group = (hu * n + 4 * n * dd) * 4
    gb = _group_tile(g, per_group)
    scale = 1.0 / math.sqrt(d)
    return pl.pallas_call(
        functools.partial(_attn_kernel, heads=heads, scale=scale),
        out_shape=jax.ShapeDtypeStruct((g, n, dd), jnp.float32),
        grid=(g // gb,),
        in_specs=[pl.BlockSpec((gb, hu, n), lambda i: (i, 0, 0)),
                  pl.BlockSpec((gb, n, dd), lambda i: (i, 0, 0)),
                  pl.BlockSpec((gb, n, dd), lambda i: (i, 0, 0)),
                  pl.BlockSpec((gb, n, dd), lambda i: (i, 0, 0)),
                  pl.BlockSpec((hu, dd), lambda i: (0, 0))],
        out_specs=pl.BlockSpec((gb, n, dd), lambda i: (i, 0, 0)),
        compiler_params=pltpu.CompilerParams(dimension_semantics=("parallel",)),
    )(sel, q_g, k_g, v_g, cmask)


# ------------- fused epilogue: ofc -> LN -> ff1 -> ff2 -> res -> LN ---------- #

def _ln(x, eps):
    mu = jnp.mean(x, axis=-1, keepdims=True)
    xc = x - mu
    var = jnp.mean(xc * xc, axis=-1, keepdims=True)
    return xc * lax.rsqrt(var + eps)


def _epilogue_kernel(x_ref, ow_ref, ob_ref, g_ref, b_ref,
                     w1_ref, b1_ref, w2_ref, b2_ref, o_ref, *, eps):
    x = x_ref[...]                                                # [TM, D]
    v2 = jnp.dot(_mx(x), _mx(ow_ref[...]),
                 preferred_element_type=jnp.float32) + ob_ref[...]
    # dropout: identity (inference / eval mode)
    v2 = _ln(v2, eps) * g_ref[...] + b_ref[...]                   # affine LN
    h1 = jnp.maximum(
        jnp.dot(_mx(v2), _mx(w1_ref[...]),
                preferred_element_type=jnp.float32) + b1_ref[...], 0.0)
    h2 = jnp.dot(_mx(h1), _mx(w2_ref[...]),
                 preferred_element_type=jnp.float32) + b2_ref[...]
    out_dim = h2.shape[-1]
    res = v2[:, :out_dim] + h2                # FeedForward res_ln (torch slices)
    o_ref[...] = _ln(res, eps).astype(o_ref.dtype)                # non-affine LN


def pallas_epilogue(x2d, ofc_w, ofc_b, ln_g, ln_b, ff_w1, ff_b1, ff_w2, ff_b2,
                    eps=1e-5):
    m, din = x2d.shape
    out_dim = ff_w2.shape[1]
    tm = _row_tile(m)
    # Weights are cast to bf16 on v6e/v7x so the (double-buffered) resident
    # weight blocks take half the VMEM -- relevant for v7x's 64 MiB budget.
    args = (_mx(ofc_w), ofc_b.reshape(1, -1), ln_g.reshape(1, -1), ln_b.reshape(1, -1),
            _mx(ff_w1), ff_b1.reshape(1, -1), _mx(ff_w2), ff_b2.reshape(1, -1))
    return pl.pallas_call(
        functools.partial(_epilogue_kernel, eps=eps),
        out_shape=jax.ShapeDtypeStruct((m, out_dim), jnp.float32),
        grid=(m // tm,),
        in_specs=[pl.BlockSpec((tm, din), lambda i: (i, 0))]
                 + [pl.BlockSpec(a.shape, lambda i: (0, 0)) for a in args],
        out_specs=pl.BlockSpec((tm, out_dim), lambda i: (i, 0)),
        compiler_params=pltpu.CompilerParams(dimension_semantics=("parallel",)),
    )(x2d, *args)


# --------------------------- forward pass (wrapper) ------------------------- #

def gat_layer_v2_forward(params, x, statica, heads, samples, key, lda=None):
    """x: [B, T, N, D]  ->  ([B, T, N, out_dim], None).  `lda` unused (as in torch)."""
    B, T, N, D = x.shape
    d = D // heads
    G = B * T
    x2d = x.reshape(-1, D)

    # ---- fused qfc/kfc/vfc: one [D,3D] matmul, three contiguous outputs -----
    w_qkv = jnp.concatenate([params["qfc_w"], params["kfc_w"], params["vfc_w"]], axis=1)
    b_qkv = jnp.concatenate([params["qfc_b"], params["kfc_b"], params["vfc_b"]], axis=0)
    Q2, K2, V2 = pallas_qkv(x2d, w_qkv, b_qkv)                    # each [B*T*N, D]
    Qg = Q2.reshape(G, N, D)
    Kg = K2.reshape(G, N, D)
    Vg = V2.reshape(G, N, D)   # heads stay packed on the lane axis (no split/cat)

    # ---- neighbour scores + proj, all heads per group ------------------------
    # sel_w[n,m] = sum_s proj_w[s] * [statica[n,s] == m]
    sel_w = jnp.sum(jax.nn.one_hot(statica, N, dtype=jnp.float32)
                    * params["proj_w"][:, 0][None, :, None], axis=1)      # [N, N]
    head_mask = (jnp.arange(D)[:, None] // d
                 == jnp.arange(heads)[None, :]).astype(jnp.float32)       # [D, H]
    M3 = pallas_neighbor_scores(Qg, Kg, sel_w, head_mask, params["proj_b"])  # [G,N,H]

    # ---- node sampling (plain JAX glue over tiny [G*H, N] score rows) --------
    Sampled = int(samples * math.log(N, 2))
    mediam = int((N - Sampled) / 2)
    half = int(Sampled / 2)
    Mr = jnp.transpose(M3, (0, 2, 1)).reshape(G * heads, N)       # rows = (g, h)

    sort_idx = jnp.argsort(Mr, axis=-1)
    sort_val = jnp.take_along_axis(Mr, sort_idx, axis=-1)
    top_v = jax.nn.softmax(jnp.maximum(sort_val[:, mediam:N - Sampled], 0.0), axis=-1)
    top_i = sort_idx[:, mediam:N - Sampled]
    btm_v = jax.nn.softmax(jnp.maximum(sort_val[:, :mediam], 0.0), axis=-1)
    btm_i = sort_idx[:, :mediam]

    # torch.multinomial(replacement=False) ~= Gumbel top-k (same distribution,
    # different RNG stream).  TODO(synk): torch's exact RNG stream is not reproducible.
    def sample_wo_replacement(k_, probs, n_samp):
        logp = jnp.where(probs > 0, jnp.log(probs), -jnp.inf)
        gmb = jax.random.gumbel(k_, probs.shape, dtype=probs.dtype)
        return lax.top_k(logp + gmb, n_samp)[1]

    kt, kb = jax.random.split(key)
    M_rdm_t = jnp.take_along_axis(top_i, sample_wo_replacement(kt, top_v, half), axis=1)
    M_rdm_b = jnp.take_along_axis(btm_i, sample_wo_replacement(kb, btm_v, half), axis=1)
    M_top = lax.top_k(Mr, Sampled)[1]
    M_sample = jnp.concatenate([M_top, M_rdm_t, M_rdm_b], axis=-1)        # [G*H, U]
    U = M_sample.shape[-1]

    # One-hot of sampled node ids: the attention kernel gathers the sampled
    # queries from its VMEM Q block (no Q_reduce [BH,T,U,d] tensor in HBM).
    sel = jax.nn.one_hot(M_sample.reshape(G, heads * U), N, dtype=jnp.float32)  # [G,H*U,N]
    cmask = (jnp.arange(D)[None, :] // d
             == jnp.arange(heads * U)[:, None] // U).astype(jnp.float32)        # [H*U,D]

    # ---- sampled attention + argmax routing, heads merged on the lane axis ---
    value = pallas_sampled_attention(sel, Qg, Kg, Vg, cmask, heads)       # [G, N, D]

    # ---- fused epilogue: ofc -> dropout(id) -> LN -> ff1+relu -> ff2 -> res -> LN
    out2d = pallas_epilogue(value.reshape(-1, D),
                            params["ofc_w"], params["ofc_b"],
                            params["ln_g"], params["ln_b"],
                            params["ff_w1"], params["ff_b1"],
                            params["ff_w2"], params["ff_b2"])
    out_dim = params["ff_w2"].shape[1]
    return out2d.reshape(B, T, N, out_dim), None


# ------------------------------- param init -------------------------------- #

def init_params(key, D, S_adj, out_dim):
    def lin(k, din, dout):
        kw, kb = jax.random.split(k)
        w = jax.random.normal(kw, (din, dout), jnp.float32) * (1.0 / math.sqrt(din))
        b = jax.random.normal(kb, (dout,), jnp.float32) * 0.01
        return w, b

    ks = jax.random.split(key, 7)
    p = {}
    p["qfc_w"], p["qfc_b"] = lin(ks[0], D, D)
    p["kfc_w"], p["kfc_b"] = lin(ks[1], D, D)
    p["vfc_w"], p["vfc_b"] = lin(ks[2], D, D)
    p["ofc_w"], p["ofc_b"] = lin(ks[3], D, D)
    p["proj_w"], p["proj_b"] = lin(ks[4], S_adj, 1)
    p["ff_w1"], p["ff_b1"] = lin(ks[5], D, D)
    p["ff_w2"], p["ff_b2"] = lin(ks[6], D, out_dim)
    p["ln_g"] = jnp.ones((D,), jnp.float32)     # torch default LayerNorm init
    p["ln_b"] = jnp.zeros((D,), jnp.float32)
    return p


# ---------------------------------- main ------------------------------------ #

if __name__ == "__main__":
    B, T, N, D = 2, 3, 16, 32
    heads, samples, out_dim, S_adj = 4, 1, 32, 4

    root = jax.random.PRNGKey(0)
    k_x, k_p, k_s = jax.random.split(root, 3)

    x = jax.random.normal(k_x, (B, T, N, D), jnp.float32)
    # static adjacency: each node's 4 "next" neighbors (deterministic)
    statica = (jnp.arange(N)[:, None] + jnp.arange(1, S_adj + 1)[None, :]) % N
    statica = statica.astype(jnp.int32)

    params = init_params(k_p, D, S_adj, out_dim)

    fwd = jax.jit(gat_layer_v2_forward, static_argnums=(3, 4))
    out, dyna_adj = fwd(params, x, statica, heads, samples, k_s)
    out = jax.block_until_ready(out)

    assert out.shape == (B, T, N, out_dim), out.shape
    assert bool(jnp.all(jnp.isfinite(out)))
    assert dyna_adj is None
    print("KERNEL_OK")
</pallas_src>

<mosaic_0001>
module attributes {stable_mosaic.version = 11 : i64} {
  func.func @_qkv_kernel(%arg0: i32, %arg1: memref<96x32xf32, #tpu.memory_space<vmem>>, %arg2: memref<32x96xf32, #tpu.memory_space<vmem>>, %arg3: memref<1x96xf32, #tpu.memory_space<vmem>>, %arg4: memref<96x32xf32, #tpu.memory_space<vmem>>, %arg5: memref<96x32xf32, #tpu.memory_space<vmem>>, %arg6: memref<96x32xf32, #tpu.memory_space<vmem>>) attributes {dimension_semantics = [#tpu.dimension_semantics<parallel>], iteration_bounds = array<i64: 1>, scalar_prefetch = 0 : i64, scratch_operands = 0 : i64, tpu.core_type = #tpu.core_type<tc>, window_params = [{transform_indices = @transform_0, window_bounds = array<i64: 96, 32>}, {pipeline_mode = #tpu.pipeline_mode<synchronous>, transform_indices = @transform_1, window_bounds = array<i64: 32, 96>}, {pipeline_mode = #tpu.pipeline_mode<synchronous>, transform_indices = @transform_2, window_bounds = array<i64: 1, 96>}, {transform_indices = @transform_3, window_bounds = array<i64: 96, 32>}, {transform_indices = @transform_4, window_bounds = array<i64: 96, 32>}, {transform_indices = @transform_5, window_bounds = array<i64: 96, 32>}]} {
    %c0 = arith.constant 0 : index
    %c0_0 = arith.constant 0 : index
    %0 = vector.load %arg1[%c0, %c0_0] : memref<96x32xf32, #tpu.memory_space<vmem>>, vector<96x32xf32>
    %c0_1 = arith.constant 0 : index
    %c0_2 = arith.constant 0 : index
    %1 = vector.load %arg2[%c0_1, %c0_2] : memref<32x96xf32, #tpu.memory_space<vmem>>, vector<32x96xf32>
    %cst = arith.constant dense<0.000000e+00> : vector<96x96xf32>
    %2 = tpu.matmul %0, %1, %cst {dimension_numbers = #tpu.dot_dimension_numbers<[1], [0], [0], [1], [0, 0, 1, 1], [], []>} : vector<96x32xf32>, vector<32x96xf32>, vector<96x96xf32> -> vector<96x96xf32>
    %c0_3 = arith.constant 0 : index
    %c0_4 = arith.constant 0 : index
    %3 = vector.load %arg3[%c0_3, %c0_4] : memref<1x96xf32, #tpu.memory_space<vmem>>, vector<1x96xf32>
    %4 = vector.broadcast %3 : vector<1x96xf32> to vector<96x96xf32>
    %5 = arith.addf %2, %4 : vector<96x96xf32>
    %6 = vector.extract_strided_slice %5 {offsets = [0, 0], sizes = [96, 32], strides = [1, 1]} : vector<96x96xf32> to vector<96x32xf32>
    %c0_5 = arith.constant 0 : index
    %c0_6 = arith.constant 0 : index
    %7 = vector.load %arg4[%c0_5, %c0_6] : memref<96x32xf32, #tpu.memory_space<vmem>>, vector<96x32xf32>
    tpu.vector_store %arg4[%c0_5, %c0_6], %6 {strides = array<i32>} : memref<96x32xf32, #tpu.memory_space<vmem>>, vector<96x32xf32>,
    %8 = vector.extract_strided_slice %5 {offsets = [0, 32], sizes = [96, 32], strides = [1, 1]} : vector<96x96xf32> to vector<96x32xf32>
    %c0_7 = arith.constant 0 : index
    %c0_8 = arith.constant 0 : index
    %9 = vector.load %arg5[%c0_7, %c0_8] : memref<96x32xf32, #tpu.memory_space<vmem>>, vector<96x32xf32>
    tpu.vector_store %arg5[%c0_7, %c0_8], %8 {strides = array<i32>} : memref<96x32xf32, #tpu.memory_space<vmem>>, vector<96x32xf32>,
    %10 = vector.extract_strided_slice %5 {offsets = [0, 64], sizes = [96, 32], strides = [1, 1]} : vector<96x96xf32> to vector<96x32xf32>
    %c0_9 = arith.constant 0 : index
    %c0_10 = arith.constant 0 : index
    %11 = vector.load %arg6[%c0_9, %c0_10] : memref<96x32xf32, #tpu.memory_space<vmem>>, vector<96x32xf32>
    tpu.vector_store %arg6[%c0_9, %c0_10], %10 {strides = array<i32>} : memref<96x32xf32, #tpu.memory_space<vmem>>, vector<96x32xf32>,
    return
  }
  func.func @transform_0(%arg0: i32) -> (i32, i32) {
    %c0_i32 = arith.constant 0 : i32
    %c0_i32_0 = arith.constant 0 : i32
    return %arg0, %c0_i32 : i32, i32
  }
  func.func @transform_1(%arg0: i32) -> (i32, i32) {
    %c0_i32 = arith.constant 0 : i32
    %c0_i32_0 = arith.constant 0 : i32
    %c0_i32_1 = arith.constant 0 : i32
    return %c0_i32, %c0_i32_0 : i32, i32
  }
  func.func @transform_2(%arg0: i32) -> (i32, i32) {
    %c0_i32 = arith.constant 0 : i32
    %c0_i32_0 = arith.constant 0 : i32
    %c0_i32_1 = arith.constant 0 : i32
    return %c0_i32, %c0_i32_0 : i32, i32
  }
  func.func @transform_3(%arg0: i32) -> (i32, i32) {
    %c0_i32 = arith.constant 0 : i32
    %c0_i32_0 = arith.constant 0 : i32
    return %arg0, %c0_i32 : i32, i32
  }
  func.func @transform_4(%arg0: i32) -> (i32, i32) {
    %c0_i32 = arith.constant 0 : i32
    %c0_i32_0 = arith.constant 0 : i32
    return %arg0, %c0_i32 : i32, i32
  }
  func.func @transform_5(%arg0: i32) -> (i32, i32) {
    %c0_i32 = arith.constant 0 : i32
    %c0_i32_0 = arith.constant 0 : i32
    return %arg0, %c0_i32 : i32, i32
  }
}

module attributes {stable_mosaic.version = 11 : i64} {
  func.func @_score_kernel(%arg0: i32, %arg1: memref<6x16x32xf32, #tpu.memory_space<vmem>>, %arg2: memref<6x16x32xf32, #tpu.memory_space<vmem>>, %arg3: memref<16x16xf32, #tpu.memory_space<vmem>>, %arg4: memref<32x4xf32, #tpu.memory_space<vmem>>, %arg5: memref<1x1xf32, #tpu.memory_space<vmem>>, %arg6: memref<6x16x4xf32, #tpu.memory_space<vmem>>) attributes {dimension_semantics = [#tpu.dimension_semantics<parallel>], iteration_bounds = array<i64: 1>, scalar_prefetch = 0 : i64, scratch_operands = 0 : i64, tpu.core_type = #tpu.core_type<tc>, window_params = [{transform_indices = @transform_0, window_bounds = array<i64: 6, 16, 32>}, {transform_indices = @transform_1, window_bounds = array<i64: 6, 16, 32>}, {pipeline_mode = #tpu.pipeline_mode<synchronous>, transform_indices = @transform_2, window_bounds = array<i64: 16, 16>}, {pipeline_mode = #tpu.pipeline_mode<synchronous>, transform_indices = @transform_3, window_bounds = array<i64: 32, 4>}, {pipeline_mode = #tpu.pipeline_mode<synchronous>, transform_indices = @transform_4, window_bounds = array<i64: 1, 1>}, {transform_indices = @transform_5, window_bounds = array<i64: 6, 16, 4>}]} {
    %c0 = arith.constant 0 : index
    %c0_0 = arith.constant 0 : index
    %c0_1 = arith.constant 0 : index
    %0 = vector.load %arg1[%c0, %c0_0, %c0_1] : memref<6x16x32xf32, #tpu.memory_space<vmem>>, vector<6x16x32xf32>
    %c0_2 = arith.constant 0 : index
    %c0_3 = arith.constant 0 : index
    %c0_4 = arith.constant 0 : index
    %1 = vector.load %arg2[%c0_2, %c0_3, %c0_4] : memref<6x16x32xf32, #tpu.memory_space<vmem>>, vector<6x16x32xf32>
    %c0_5 = arith.constant 0 : index
    %c0_6 = arith.constant 0 : index
    %2 = vector.load %arg3[%c0_5, %c0_6] : memref<16x16xf32, #tpu.memory_space<vmem>>, vector<16x16xf32>
    %3 = vector.shape_cast %2 : vector<16x16xf32> to vector<1x16x16xf32>
    %4 = vector.shape_cast %3 : vector<1x16x16xf32> to vector<1x16x16xf32>
    %5 = vector.broadcast %4 : vector<1x16x16xf32> to vector<6x16x16xf32>
    "tpu.trace_start"() <{level = 10 : i32, message = "gnm,gmc->gnc"}> : () -> ()
    %cst = arith.constant dense<0.000000e+00> : vector<6x16x32xf32>
    %6 = tpu.matmul %5, %1, %cst {dimension_numbers = #tpu.dot_dimension_numbers<[2], [1], [1], [2], [0, 0, 0, 1, 1, 2], [0], [0]>} : vector<6x16x16xf32>, vector<6x16x32xf32>, vector<6x16x32xf32> -> vector<6x16x32xf32>
    "tpu.trace_stop"() : () -> ()
    %7 = arith.mulf %0, %6 : vector<6x16x32xf32>
    %c0_7 = arith.constant 0 : index
    %c0_8 = arith.constant 0 : index
    %8 = vector.load %arg4[%c0_7, %c0_8] : memref<32x4xf32, #tpu.memory_space<vmem>>, vector<32x4xf32>
    "tpu.trace_start"() <{level = 10 : i32, message = "gnc,ch->gnh"}> : () -> ()
    %cst_9 = arith.constant dense<0.000000e+00> : vector<6x16x4xf32>
    %9 = tpu.matmul %7, %8, %cst_9 {dimension_numbers = #tpu.dot_dimension_numbers<[2], [0], [0, 1], [1], [0, 0, 0, 1, 1, 1], [], []>} : vector<6x16x32xf32>, vector<32x4xf32>, vector<6x16x4xf32> -> vector<6x16x4xf32>
    "tpu.trace_stop"() : () -> ()
    %c0_10 = arith.constant 0 : index
    %c0_11 = arith.constant 0 : index
    %10 = vector.load %arg5[%c0_10, %c0_11] : memref<1x1xf32, #tpu.memory_space<vmem>>, vector<1x1xf32>
    %11 = vector.shape_cast %10 : vector<1x1xf32> to vector<1x1x1xf32>
    %12 = vector.broadcast %11 : vector<1x1x1xf32> to vector<6x16x4xf32>
    %13 = arith.addf %9, %12 : vector<6x16x4xf32>
    %c0_12 = arith.constant 0 : index
    %c0_13 = arith.constant 0 : index
    %c0_14 = arith.constant 0 : index
    %14 = vector.load %arg6[%c0_12, %c0_13, %c0_14] : memref<6x16x4xf32, #tpu.memory_space<vmem>>, vector<6x16x4xf32>
    tpu.vector_store %arg6[%c0_12, %c0_13, %c0_14], %13 {strides = array<i32>} : memref<6x16x4xf32, #tpu.memory_space<vmem>>, vector<6x16x4xf32>,
    return
  }
  func.func @transform_0(%arg0: i32) -> (i32, i32, i32) {
    %c0_i32 = arith.constant 0 : i32
    %c0_i32_0 = arith.constant 0 : i32
    %c0_i32_1 = arith.constant 0 : i32
    return %arg0, %c0_i32, %c0_i32_0 : i32, i32, i32
  }
  func.func @transform_1(%arg0: i32) -> (i32, i32, i32) {
    %c0_i32 = arith.constant 0 : i32
    %c0_i32_0 = arith.constant 0 : i32
    %c0_i32_1 = arith.constant 0 : i32
    return %arg0, %c0_i32, %c0_i32_0 : i32, i32, i32
  }
  func.func @transform_2(%arg0: i32) -> (i32, i32) {
    %c0_i32 = arith.constant 0 : i32
    %c0_i32_0 = arith.constant 0 : i32
    %c0_i32_1 = arith.constant 0 : i32
    return %c0_i32, %c0_i32_0 : i32, i32
  }
  func.func @transform_3(%arg0: i32) -> (i32, i32) {
    %c0_i32 = arith.constant 0 : i32
    %c0_i32_0 = arith.constant 0 : i32
    %c0_i32_1 = arith.constant 0 : i32
    return %c0_i32, %c0_i32_0 : i32, i32
  }
  func.func @transform_4(%arg0: i32) -> (i32, i32) {
    %c0_i32 = arith.constant 0 : i32
    %c0_i32_0 = arith.constant 0 : i32
    %c0_i32_1 = arith.constant 0 : i32
    return %c0_i32, %c0_i32_0 : i32, i32
  }
  func.func @transform_5(%arg0: i32) -> (i32, i32, i32) {
    %c0_i32 = arith.constant 0 : i32
    %c0_i32_0 = arith.constant 0 : i32
    %c0_i32_1 = arith.constant 0 : i32
    return %arg0, %c0_i32, %c0_i32_0 : i32, i32, i32
  }
}

module attributes {stable_mosaic.version = 11 : i64} {
  func.func @_attn_kernel(%arg0: i32, %arg1: memref<6x32x16xf32, #tpu.memory_space<vmem>>, %arg2: memref<6x16x32xf32, #tpu.memory_space<vmem>>, %arg3: memref<6x16x32xf32, #tpu.memory_space<vmem>>, %arg4: memref<6x16x32xf32, #tpu.memory_space<vmem>>, %arg5: memref<32x32xf32, #tpu.memory_space<vmem>>, %arg6: memref<6x16x32xf32, #tpu.memory_space<vmem>>) attributes {dimension_semantics = [#tpu.dimension_semantics<parallel>], iteration_bounds = array<i64: 1>, scalar_prefetch = 0 : i64, scratch_operands = 0 : i64, tpu.core_type = #tpu.core_type<tc>, window_params = [{transform_indices = @transform_0, window_bounds = array<i64: 6, 32, 16>}, {transform_indices = @transform_1, window_bounds = array<i64: 6, 16, 32>}, {transform_indices = @transform_2, window_bounds = array<i64: 6, 16, 32>}, {transform_indices = @transform_3, window_bounds = array<i64: 6, 16, 32>}, {pipeline_mode = #tpu.pipeline_mode<synchronous>, transform_indices = @transform_4, window_bounds = array<i64: 32, 32>}, {transform_indices = @transform_5, window_bounds = array<i64: 6, 16, 32>}]} {
    %c0 = arith.constant 0 : index
    %c0_0 = arith.constant 0 : index
    %c0_1 = arith.constant 0 : index
    %0 = vector.load %arg1[%c0, %c0_0, %c0_1] : memref<6x32x16xf32, #tpu.memory_space<vmem>>, vector<6x32x16xf32>
    %c0_2 = arith.constant 0 : index
    %c0_3 = arith.constant 0 : index
    %c0_4 = arith.constant 0 : index
    %1 = vector.load %arg2[%c0_2, %c0_3, %c0_4] : memref<6x16x32xf32, #tpu.memory_space<vmem>>, vector<6x16x32xf32>
    %c0_5 = arith.constant 0 : index
    %c0_6 = arith.constant 0 : index
    %c0_7 = arith.constant 0 : index
    %2 = vector.load %arg3[%c0_5, %c0_6, %c0_7] : memref<6x16x32xf32, #tpu.memory_space<vmem>>, vector<6x16x32xf32>
    %c0_8 = arith.constant 0 : index
    %c0_9 = arith.constant 0 : index
    %c0_10 = arith.constant 0 : index
    %3 = vector.load %arg4[%c0_8, %c0_9, %c0_10] : memref<6x16x32xf32, #tpu.memory_space<vmem>>, vector<6x16x32xf32>
    %c0_11 = arith.constant 0 : index
    %c0_12 = arith.constant 0 : index
    %4 = vector.load %arg5[%c0_11, %c0_12] : memref<32x32xf32, #tpu.memory_space<vmem>>, vector<32x32xf32>
    "tpu.trace_start"() <{level = 10 : i32, message = "gkn,gnc->gkc"}> : () -> ()
    %cst = arith.constant dense<0.000000e+00> : vector<6x32x32xf32>
    %5 = tpu.matmul %0, %1, %cst {dimension_numbers = #tpu.dot_dimension_numbers<[2], [1], [1], [2], [0, 0, 0, 1, 1, 2], [0], [0]>} : vector<6x32x16xf32>, vector<6x16x32xf32>, vector<6x32x32xf32> -> vector<6x32x32xf32>
    "tpu.trace_stop"() : () -> ()
    %6 = vector.shape_cast %4 : vector<32x32xf32> to vector<1x32x32xf32>
    %7 = vector.broadcast %6 : vector<1x32x32xf32> to vector<6x32x32xf32>
    %8 = arith.mulf %5, %7 : vector<6x32x32xf32>
    "tpu.trace_start"() <{level = 10 : i32, message = "gkc,gnc->gkn"}> : () -> ()
    %cst_13 = arith.constant dense<0.000000e+00> : vector<6x32x16xf32>
    %9 = tpu.matmul %8, %2, %cst_13 {dimension_numbers = #tpu.dot_dimension_numbers<[2], [2], [1], [1], [0, 0, 0, 1, 1, 1], [0], [0]>} : vector<6x32x32xf32>, vector<6x16x32xf32>, vector<6x32x16xf32> -> vector<6x32x16xf32>
    "tpu.trace_stop"() : () -> ()
    %cst_14 = arith.constant 0.353553385 : f32
    %10 = vector.broadcast %cst_14 : f32 to vector<6x32x16xf32>
    %11 = arith.mulf %9, %10 : vector<6x32x16xf32>
    %cst_15 = arith.constant dense<0xFF800000> : vector<6x32xf32>
    %12 = vector.multi_reduction <maximumf>, %11, %cst_15 [2] : vector<6x32x16xf32> to vector<6x32xf32>
    %13 = vector.shape_cast %12 : vector<6x32xf32> to vector<6x32x1xf32>
    %14 = vector.broadcast %13 : vector<6x32x1xf32> to vector<6x32x16xf32>
    %15 = arith.subf %11, %14 : vector<6x32x16xf32>
    %16 = math.exp %15 : vector<6x32x16xf32>
    %cst_16 = arith.constant dense<0.000000e+00> : vector<6x32xf32>
    %17 = vector.multi_reduction <add>, %16, %cst_16 [2] : vector<6x32x16xf32> to vector<6x32xf32>
    %18 = vector.shape_cast %17 : vector<6x32xf32> to vector<6x32x1xf32>
    %19 = vector.broadcast %18 : vector<6x32x1xf32> to vector<6x32x16xf32>
    %20 = arith.divf %16, %19 : vector<6x32x16xf32>
    "tpu.trace_start"() <{level = 10 : i32, message = "gkn,gnc->gkc"}> : () -> ()
    %cst_17 = arith.constant dense<0.000000e+00> : vector<6x32x32xf32>
    %21 = tpu.matmul %20, %3, %cst_17 {dimension_numbers = #tpu.dot_dimension_numbers<[2], [1], [1], [2], [0, 0, 0, 1, 1, 2], [0], [0]>} : vector<6x32x16xf32>, vector<6x16x32xf32>, vector<6x32x32xf32> -> vector<6x32x32xf32>
    "tpu.trace_stop"() : () -> ()
    %22 = vector.shape_cast %4 : vector<32x32xf32> to vector<1x32x32xf32>
    %23 = vector.broadcast %22 : vector<1x32x32xf32> to vector<6x32x32xf32>
    %24 = arith.mulf %21, %23 : vector<6x32x32xf32>
    %25 = vector.shape_cast %20 : vector<6x32x16xf32> to vector<6x4x8x16xf32>
    %26 = tpu.iota {dimensions = array<i32: 2>} : vector<6x4x8x16xi32>
    %cst_18 = arith.constant dense<0xFF800000> : vector<6x4x16xf32>
    %27 = vector.multi_reduction <maximumf>, %25, %cst_18 [2] : vector<6x4x8x16xf32> to vector<6x4x16xf32>
    %28 = vector.shape_cast %27 : vector<6x4x16xf32> to vector<6x4x1x16xf32>
    %29 = vector.broadcast %28 : vector<6x4x1x16xf32> to vector<6x4x8x16xf32>
    %30 = arith.cmpf oge, %25, %29 : vector<6x4x8x16xf32>
    %c8_i32 = arith.constant 8 : i32
    %31 = vector.broadcast %c8_i32 : i32 to vector<6x4x8x16xi32>
    %32 = arith.select %30, %26, %31 : vector<6x4x8x16xi1>, vector<6x4x8x16xi32>
    %cst_19 = arith.constant dense<2147483647> : vector<6x4x16xi32>
    %33 = vector.multi_reduction <minsi>, %32, %cst_19 [2] : vector<6x4x8x16xi32> to vector<6x4x16xi32>
    %34 = vector.shape_cast %33 : vector<6x4x16xi32> to vector<6x4x1x16xi32>
    %35 = vector.broadcast %34 : vector<6x4x1x16xi32> to vector<6x4x8x16xi32>
    %36 = arith.cmpi eq, %26, %35 : vector<6x4x8x16xi32>
    %37 = arith.extui %36 : vector<6x4x8x16xi1> to vector<6x4x8x16xi32>
    %38 = arith.sitofp %37 : vector<6x4x8x16xi32> to vector<6x4x8x16xf32>
    %39 = vector.shape_cast %38 : vector<6x4x8x16xf32> to vector<6x32x16xf32>
    "tpu.trace_start"() <{level = 10 : i32, message = "gkn,gkc->gnc"}> : () -> ()
    %cst_20 = arith.constant dense<0.000000e+00> : vector<6x16x32xf32>
    %40 = tpu.matmul %39, %24, %cst_20 {dimension_numbers = #tpu.dot_dimension_numbers<[1], [1], [2], [2], [0, 0, 0, 2, 1, 2], [0], [0]>} : vector<6x32x16xf32>, vector<6x32x32xf32>, vector<6x16x32xf32> -> vector<6x16x32xf32>
    "tpu.trace_stop"() : () -> ()
    %c0_21 = arith.constant 0 : index
    %c0_22 = arith.constant 0 : index
    %c0_23 = arith.constant 0 : index
    %41 = vector.load %arg6[%c0_21, %c0_22, %c0_23] : memref<6x16x32xf32, #tpu.memory_space<vmem>>, vector<6x16x32xf32>
    tpu.vector_store %arg6[%c0_21, %c0_22, %c0_23], %40 {strides = array<i32>} : memref<6x16x32xf32, #tpu.memory_space<vmem>>, vector<6x16x32xf32>,
    return
  }
  func.func @transform_0(%arg0: i32) -> (i32, i32, i32) {
    %c0_i32 = arith.constant 0 : i32
    %c0_i32_0 = arith.constant 0 : i32
    %c0_i32_1 = arith.constant 0 : i32
    return %arg0, %c0_i32, %c0_i32_0 : i32, i32, i32
  }
  func.func @transform_1(%arg0: i32) -> (i32, i32, i32) {
    %c0_i32 = arith.constant 0 : i32
    %c0_i32_0 = arith.constant 0 : i32
    %c0_i32_1 = arith.constant 0 : i32
    return %arg0, %c0_i32, %c0_i32_0 : i32, i32, i32
  }
  func.func @transform_2(%arg0: i32) -> (i32, i32, i32) {
    %c0_i32 = arith.constant 0 : i32
    %c0_i32_0 = arith.constant 0 : i32
    %c0_i32_1 = arith.constant 0 : i32
    return %arg0, %c0_i32, %c0_i32_0 : i32, i32, i32
  }
  func.func @transform_3(%arg0: i32) -> (i32, i32, i32) {
    %c0_i32 = arith.constant 0 : i32
    %c0_i32_0 = arith.constant 0 : i32
    %c0_i32_1 = arith.constant 0 : i32
    return %arg0, %c0_i32, %c0_i32_0 : i32, i32, i32
  }
  func.func @transform_4(%arg0: i32) -> (i32, i32) {
    %c0_i32 = arith.constant 0 : i32
    %c0_i32_0 = arith.constant 0 : i32
    %c0_i32_1 = arith.constant 0 : i32
    return %c0_i32, %c0_i32_0 : i32, i32
  }
  func.func @transform_5(%arg0: i32) -> (i32, i32, i32) {
    %c0_i32 = arith.constant 0 : i32
    %c0_i32_0 = arith.constant 0 : i32
    %c0_i32_1 = arith.constant 0 : i32
    return %arg0, %c0_i32, %c0_i32_0 : i32, i32, i32
  }
}

module attributes {stable_mosaic.version = 11 : i64} {
  func.func @_epilogue_kernel(%arg0: i32, %arg1: memref<96x32xf32, #tpu.memory_space<vmem>>, %arg2: memref<32x32xf32, #tpu.memory_space<vmem>>, %arg3: memref<1x32xf32, #tpu.memory_space<vmem>>, %arg4: memref<1x32xf32, #tpu.memory_space<vmem>>, %arg5: memref<1x32xf32, #tpu.memory_space<vmem>>, %arg6: memref<32x32xf32, #tpu.memory_space<vmem>>, %arg7: memref<1x32xf32, #tpu.memory_space<vmem>>, %arg8: memref<32x32xf32, #tpu.memory_space<vmem>>, %arg9: memref<1x32xf32, #tpu.memory_space<vmem>>, %arg10: memref<96x32xf32, #tpu.memory_space<vmem>>) attributes {dimension_semantics = [#tpu.dimension_semantics<parallel>], iteration_bounds = array<i64: 1>, scalar_prefetch = 0 : i64, scratch_operands = 0 : i64, tpu.core_type = #tpu.core_type<tc>, window_params = [{transform_indices = @transform_0, window_bounds = array<i64: 96, 32>}, {pipeline_mode = #tpu.pipeline_mode<synchronous>, transform_indices = @transform_1, window_bounds = array<i64: 32, 32>}, {pipeline_mode = #tpu.pipeline_mode<synchronous>, transform_indices = @transform_2, window_bounds = array<i64: 1, 32>}, {pipeline_mode = #tpu.pipeline_mode<synchronous>, transform_indices = @transform_3, window_bounds = array<i64: 1, 32>}, {pipeline_mode = #tpu.pipeline_mode<synchronous>, transform_indices = @transform_4, window_bounds = array<i64: 1, 32>}, {pipeline_mode = #tpu.pipeline_mode<synchronous>, transform_indices = @transform_5, window_bounds = array<i64: 32, 32>}, {pipeline_mode = #tpu.pipeline_mode<synchronous>, transform_indices = @transform_6, window_bounds = array<i64: 1, 32>}, {pipeline_mode = #tpu.pipeline_mode<synchronous>, transform_indices = @transform_7, window_bounds = array<i64: 32, 32>}, {pipeline_mode = #tpu.pipeline_mode<synchronous>, transform_indices = @transform_8, window_bounds = array<i64: 1, 32>}, {transform_indices = @transform_9, window_bounds = array<i64: 96, 32>}]} {
    %c0 = arith.constant 0 : index
    %c0_0 = arith.constant 0 : index
    %0 = vector.load %arg1[%c0, %c0_0] : memref<96x32xf32, #tpu.memory_space<vmem>>, vector<96x32xf32>
    %c0_1 = arith.constant 0 : index
    %c0_2 = arith.constant 0 : index
    %1 = vector.load %arg2[%c0_1, %c0_2] : memref<32x32xf32, #tpu.memory_space<vmem>>, vector<32x32xf32>
    %cst = arith.constant dense<0.000000e+00> : vector<96x32xf32>
    %2 = tpu.matmul %0, %1, %cst {dimension_numbers = #tpu.dot_dimension_numbers<[1], [0], [0], [1], [0, 0, 1, 1], [], []>} : vector<96x32xf32>, vector<32x32xf32>, vector<96x32xf32> -> vector<96x32xf32>
    %c0_3 = arith.constant 0 : index
    %c0_4 = arith.constant 0 : index
    %3 = vector.load %arg3[%c0_3, %c0_4] : memref<1x32xf32, #tpu.memory_space<vmem>>, vector<1x32xf32>
    %4 = vector.broadcast %3 : vector<1x32xf32> to vector<96x32xf32>
    %5 = arith.addf %2, %4 : vector<96x32xf32>
    %cst_5 = arith.constant dense<0.000000e+00> : vector<96xf32>
    %6 = vector.multi_reduction <add>, %5, %cst_5 [1] : vector<96x32xf32> to vector<96xf32>
    %7 = vector.shape_cast %6 : vector<96xf32> to vector<96x1xf32>
    %cst_6 = arith.constant 3.200000e+01 : f32
    %8 = vector.broadcast %cst_6 : f32 to vector<96x1xf32>
    %9 = arith.divf %7, %8 : vector<96x1xf32>
    %10 = vector.broadcast %9 : vector<96x1xf32> to vector<96x32xf32>
    %11 = arith.subf %5, %10 : vector<96x32xf32>
    %12 = arith.mulf %11, %11 : vector<96x32xf32>
    %cst_7 = arith.constant dense<0.000000e+00> : vector<96xf32>
    %13 = vector.multi_reduction <add>, %12, %cst_7 [1] : vector<96x32xf32> to vector<96xf32>
    %14 = vector.shape_cast %13 : vector<96xf32> to vector<96x1xf32>
    %cst_8 = arith.constant 3.200000e+01 : f32
    %15 = vector.broadcast %cst_8 : f32 to vector<96x1xf32>
    %16 = arith.divf %14, %15 : vector<96x1xf32>
    %cst_9 = arith.constant 9.99999974E-6 : f32
    %17 = vector.broadcast %cst_9 : f32 to vector<96x1xf32>
    %18 = arith.addf %16, %17 : vector<96x1xf32>
    %19 = math.rsqrt %18 : vector<96x1xf32>
    %20 = vector.broadcast %19 : vector<96x1xf32> to vector<96x32xf32>
    %21 = arith.mulf %11, %20 : vector<96x32xf32>
    %c0_10 = arith.constant 0 : index
    %c0_11 = arith.constant 0 : index
    %22 = vector.load %arg4[%c0_10, %c0_11] : memref<1x32xf32, #tpu.memory_space<vmem>>, vector<1x32xf32>
    %23 = vector.broadcast %22 : vector<1x32xf32> to vector<96x32xf32>
    %24 = arith.mulf %21, %23 : vector<96x32xf32>
    %c0_12 = arith.constant 0 : index
    %c0_13 = arith.constant 0 : index
    %25 = vector.load %arg5[%c0_12, %c0_13] : memref<1x32xf32, #tpu.memory_space<vmem>>, vector<1x32xf32>
    %26 = vector.broadcast %25 : vector<1x32xf32> to vector<96x32xf32>
    %27 = arith.addf %24, %26 : vector<96x32xf32>
    %c0_14 = arith.constant 0 : index
    %c0_15 = arith.constant 0 : index
    %28 = vector.load %arg6[%c0_14, %c0_15] : memref<32x32xf32, #tpu.memory_space<vmem>>, vector<32x32xf32>
    %cst_16 = arith.constant dense<0.000000e+00> : vector<96x32xf32>
    %29 = tpu.matmul %27, %28, %cst_16 {dimension_numbers = #tpu.dot_dimension_numbers<[1], [0], [0], [1], [0, 0, 1, 1], [], []>} : vector<96x32xf32>, vector<32x32xf32>, vector<96x32xf32> -> vector<96x32xf32>
    %c0_17 = arith.constant 0 : index
    %c0_18 = arith.constant 0 : index
    %30 = vector.load %arg7[%c0_17, %c0_18] : memref<1x32xf32, #tpu.memory_space<vmem>>, vector<1x32xf32>
    %31 = vector.broadcast %30 : vector<1x32xf32> to vector<96x32xf32>
    %32 = arith.addf %29, %31 : vector<96x32xf32>
    %cst_19 = arith.constant 0.000000e+00 : f32
    %33 = vector.broadcast %cst_19 : f32 to vector<96x32xf32>
    %34 = arith.maximumf %32, %33 : vector<96x32xf32>
    %c0_20 = arith.constant 0 : index
    %c0_21 = arith.constant 0 : index
    %35 = vector.load %arg8[%c0_20, %c0_21] : memref<32x32xf32, #tpu.memory_space<vmem>>, vector<32x32xf32>
    %cst_22 = arith.constant dense<0.000000e+00> : vector<96x32xf32>
    %36 = tpu.matmul %34, %35, %cst_22 {dimension_numbers = #tpu.dot_dimension_numbers<[1], [0], [0], [1], [0, 0, 1, 1], [], []>} : vector<96x32xf32>, vector<32x32xf32>, vector<96x32xf32> -> vector<96x32xf32>
    %c0_23 = arith.constant 0 : index
    %c0_24 = arith.constant 0 : index
    %37 = vector.load %arg9[%c0_23, %c0_24] : memref<1x32xf32, #tpu.memory_space<vmem>>, vector<1x32xf32>
    %38 = vector.broadcast %37 : vector<1x32xf32> to vector<96x32xf32>
    %39 = arith.addf %36, %38 : vector<96x32xf32>
    %40 = arith.addf %27, %39 : vector<96x32xf32>
    %cst_25 = arith.constant dense<0.000000e+00> : vector<96xf32>
    %41 = vector.multi_reduction <add>, %40, %cst_25 [1] : vector<96x32xf32> to vector<96xf32>
    %42 = vector.shape_cast %41 : vector<96xf32> to vector<96x1xf32>
    %cst_26 = arith.constant 3.200000e+01 : f32
    %43 = vector.broadcast %cst_26 : f32 to vector<96x1xf32>
    %44 = arith.divf %42, %43 : vector<96x1xf32>
    %45 = vector.broadcast %44 : vector<96x1xf32> to vector<96x32xf32>
    %46 = arith.subf %40, %45 : vector<96x32xf32>
    %47 = arith.mulf %46, %46 : vector<96x32xf32>
    %cst_27 = arith.constant dense<0.000000e+00> : vector<96xf32>
    %48 = vector.multi_reduction <add>, %47, %cst_27 [1] : vector<96x32xf32> to vector<96xf32>
    %49 = vector.shape_cast %48 : vector<96xf32> to vector<96x1xf32>
    %cst_28 = arith.constant 3.200000e+01 : f32
    %50 = vector.broadcast %cst_28 : f32 to vector<96x1xf32>
    %51 = arith.divf %49, %50 : vector<96x1xf32>
    %cst_29 = arith.constant 9.99999974E-6 : f32
    %52 = vector.broadcast %cst_29 : f32 to vector<96x1xf32>
    %53 = arith.addf %51, %52 : vector<96x1xf32>
    %54 = math.rsqrt %53 : vector<96x1xf32>
    %55 = vector.broadcast %54 : vector<96x1xf32> to vector<96x32xf32>
    %56 = arith.mulf %46, %55 : vector<96x32xf32>
    %c0_30 = arith.constant 0 : index
    %c0_31 = arith.constant 0 : index
    %57 = vector.load %arg10[%c0_30, %c0_31] : memref<96x32xf32, #tpu.memory_space<vmem>>, vector<96x32xf32>
    tpu.vector_store %arg10[%c0_30, %c0_31], %56 {strides = array<i32>} : memref<96x32xf32, #tpu.memory_space<vmem>>, vector<96x32xf32>,
    return
  }
  func.func @transform_0(%arg0: i32) -> (i32, i32) {
    %c0_i32 = arith.constant 0 : i32
    %c0_i32_0 = arith.constant 0 : i32
    return %arg0, %c0_i32 : i32, i32
  }
  func.func @transform_1(%arg0: i32) -> (i32, i32) {
    %c0_i32 = arith.constant 0 : i32
    %c0_i32_0 = arith.constant 0 : i32
    %c0_i32_1 = arith.constant 0 : i32
    return %c0_i32, %c0_i32_0 : i32, i32
  }
  func.func @transform_2(%arg0: i32) -> (i32, i32) {
    %c0_i32 = arith.constant 0 : i32
    %c0_i32_0 = arith.constant 0 : i32
    %c0_i32_1 = arith.constant 0 : i32
    return %c0_i32, %c0_i32_0 : i32, i32
  }
  func.func @transform_3(%arg0: i32) -> (i32, i32) {
    %c0_i32 = arith.constant 0 : i32
    %c0_i32_0 = arith.constant 0 : i32
    %c0_i32_1 = arith.constant 0 : i32
    return %c0_i32, %c0_i32_0 : i32, i32
  }
  func.func @transform_4(%arg0: i32) -> (i32, i32) {
    %c0_i32 = arith.constant 0 : i32
    %c0_i32_0 = arith.constant 0 : i32
    %c0_i32_1 = arith.constant 0 : i32
    return %c0_i32, %c0_i32_0 : i32, i32
  }
  func.func @transform_5(%arg0: i32) -> (i32, i32) {
    %c0_i32 = arith.constant 0 : i32
    %c0_i32_0 = arith.constant 0 : i32
    %c0_i32_1 = arith.constant 0 : i32
    return %c0_i32, %c0_i32_0 : i32, i32
  }
  func.func @transform_6(%arg0: i32) -> (i32, i32) {
    %c0_i32 = arith.constant 0 : i32
    %c0_i32_0 = arith.constant 0 : i32
    %c0_i32_1 = arith.constant 0 : i32
    return %c0_i32, %c0_i32_0 : i32, i32
  }
  func.func @transform_7(%arg0: i32) -> (i32, i32) {
    %c0_i32 = arith.constant 0 : i32
    %c0_i32_0 = arith.constant 0 : i32
    %c0_i32_1 = arith.constant 0 : i32
    return %c0_i32, %c0_i32_0 : i32, i32
  }
  func.func @transform_8(%arg0: i32) -> (i32, i32) {
    %c0_i32 = arith.constant 0 : i32
    %c0_i32_0 = arith.constant 0 : i32
    %c0_i32_1 = arith.constant 0 : i32
    return %c0_i32, %c0_i32_0 : i32, i32
  }
  func.func @transform_9(%arg0: i32) -> (i32, i32) {
    %c0_i32 = arith.constant 0 : i32
    %c0_i32_0 = arith.constant 0 : i32
    return %arg0, %c0_i32 : i32, i32
  }
}

</mosaic_0001>

<llo_original>
// kernel: gat_layer_v2_forward.6
$region0: #{gat_layer_v2_forward.6}
  #allocation0 [shape = 'u32[]', space=smem, size = 0x4, offset = 0x4, fixed_abs, tag = 'smem constant byte address 0x4 - core index']
  #allocation1 [shape = 'u32[144,128]{1,0:T(1,128)}', space=vmem, size = 0x12000, scoped, tag = 'internal scratch']
  %s0 = inlined_call_operand.vmem [shape: f32[96,32], index: 0, kind: input, shape index: {}]
  %s1 = inlined_call_operand.vmem [shape: f32[32,96], index: 1, kind: input, shape index: {}]
  %s2 = inlined_call_operand.vmem [shape: f32[1,96], index: 2, kind: input, shape index: {}]
  %s3 = inlined_call_operand.vmem [shape: f32[96,32], index: 3, kind: output, shape index: {0}]
  %s4 = inlined_call_operand.vmem [shape: f32[96,32], index: 4, kind: output, shape index: {1}]
  %s5 = inlined_call_operand.vmem [shape: f32[96,32], index: 5, kind: output, shape index: {2}]
  %6 = xla_tuple %s3, %s4, %s5
  %s7 = sld [smem:[#allocation0]]
  $region38: #{gat_layer_v2_forward.6} parent=0
    _
  %s9 = ssub.s32 1, %s7
  %s10 = scalar_select 0, %s9, %s7
  // Predicated region
  $region2: #{gat_layer_v2_forward.6} parent=0 // pred_check
    _
  $region3: #{gat_layer_v2_forward.6} parent=0 // pred_check_branch
    %12 = sbr.rel (0) target = $region5
  $region4: #{gat_layer_v2_forward.6} parent=0 // pred_region
    _
  $region5: #{gat_layer_v2_forward.6} parent=0 // pred_fallthru
    _
  // Predicated region
  $region6: #{gat_layer_v2_forward.6} parent=0 // pred_check
    _
  $region7: #{gat_layer_v2_forward.6} parent=0 // pred_check_branch
    %14 = sbr.rel (0) target = $region9
  $region8: #{gat_layer_v2_forward.6} parent=0 // pred_region
    _
  $region9: #{gat_layer_v2_forward.6} parent=0 // pred_fallthru
    _
  // Predicated region
  $region10: #{gat_layer_v2_forward.6} parent=0 // pred_check
    _
  $region11: #{gat_layer_v2_forward.6} parent=0 // pred_check_branch
    %16 = sbr.rel (0) target = $region13
  $region12: #{gat_layer_v2_forward.6} parent=0 // pred_region
    _
  $region13: #{gat_layer_v2_forward.6} parent=0 // pred_fallthru
    _
  %v17 = vld [vmem:[%s0] sm:$0xff]
  %v18 = vld [vmem:[%s0 + $0x8] sm:$0xff]
  %v19 = vld [vmem:[%s0 + $0x10] sm:$0xff]
  %v20 = vld [vmem:[%s0 + $0x18] sm:$0xff]
  %v21 = vld [vmem:[%s0 + $0x20] sm:$0xff]
  %v22 = vld [vmem:[%s0 + $0x28] sm:$0xff]
  %v23 = vld [vmem:[%s0 + $0x30] sm:$0xff]
  %v24 = vld [vmem:[%s0 + $0x38] sm:$0xff]
  %v25 = vld [vmem:[%s0 + $0x40] sm:$0xff]
  %v26 = vld [vmem:[%s0 + $0x48] sm:$0xff]
  %v27 = vld [vmem:[%s0 + $0x50] sm:$0xff]
  %v28 = vld [vmem:[%s0 + $0x58] sm:$0xff]
  %v29 = vld [vmem:[%s1] sm:$0xff]
  %v30 = vld [vmem:[%s1 + $0x8] sm:$0xff]
  %v31 = vld [vmem:[%s1 + $0x10] sm:$0xff]
  %v32 = vld [vmem:[%s1 + $0x18] sm:$0xff]
  %v33 = vld [vmem:[%s2] sm:$0x1]
  %v35 = vlaneseq
  %v36 = vshrl.u32 %v35, 7
  %v37 = vsub.s32 0, %v36
  %v38 = vrot.slane %v33, %v37
  %vm40 = vcmask 261120
  %v42 = vsel %vm40, %v17, 0
  %v45 = vsel %vm40, %v18, 0
  %v48 = vsel %vm40, %v19, 0
  %v51 = vsel %vm40, %v20, 0
  %v54 = vsel %vm40, %v21, 0
  %v57 = vsel %vm40, %v22, 0
  %v60 = vsel %vm40, %v23, 0
  %v63 = vsel %vm40, %v24, 0
  %v66 = vsel %vm40, %v25, 0
  %v69 = vsel %vm40, %v26, 0
  %v72 = vsel %vm40, %v27, 0
  %v75 = vsel %vm40, %v28, 0
  %77 = vmatprep.subr.mxu0 0.0
  %78 = vmatpush1.msra.mxu0 %v29
  %79 = vmatprep.subr.mxu0 0.0
  %80 = vmatpush1.msra.mxu0 %v30
  %81 = vmatprep.subr.mxu0 0.0
  %82 = vmatpush1.msra.mxu0 %v31
  %83 = vmatprep.subr.mxu0 0.0
  %84 = vmatpush1.msra.mxu0 %v32
  %85 = vmatprep.subr.mxu0 0.0
  %86 = vmatpush1.msra.mxu0 0.0
  %87 = vmatprep.subr.mxu0 0.0
  %88 = vmatpush1.msra.mxu0 0.0
  %89 = vmatprep.subr.mxu0 0.0
  %90 = vmatpush1.msra.mxu0 0.0
  %91 = vmatprep.subr.mxu0 0.0
  %92 = vmatpush1.msra.mxu0 0.0
  %93 = vmatprep.subr.mxu0 0.0
  %94 = vmatpush1.msra.mxu0 0.0
  %95 = vmatprep.subr.mxu0 0.0
  %96 = vmatpush1.msra.mxu0 0.0
  %97 = vmatprep.subr.mxu0 0.0
  %98 = vmatpush1.msra.mxu0 0.0
  %99 = vmatprep.subr.mxu0 0.0
  %100 = vmatpush1.msra.mxu0 0.0
  %101 = vmatprep.subr.mxu0 0.0
  %102 = vmatpush1.msra.mxu0 0.0
  %103 = vmatprep.subr.mxu0 0.0
  %104 = vmatpush1.msra.mxu0 0.0
  %105 = vmatprep.subr.mxu0 0.0
  %106 = vmatpush1.msra.mxu0 0.0
  %107 = vmatprep.subr.mxu0 0.0
  %108 = vmatpush1.msra.mxu0 0.0
  %109 = vmatprep.subr.mxu0 0.0
  %110 = vmatpush1.msra.mxu0 0.0
  %111 = vmatprep.subr.mxu0 0.0
  %112 = vmatpush1.msra.mxu0 0.0
  %113 = vmatprep.subr.mxu0 0.0
  %114 = vmatpush1.msra.mxu0 0.0
  %115 = vmatprep.subr.mxu0 0.0
  %116 = vmatpush1.msra.mxu0 0.0
  %117 = vmatprep.subr.mxu0 0.0
  %118 = vmatpush1.msra.mxu0 0.0
  %119 = vmatprep.subr.mxu0 0.0
  %120 = vmatpush1.msra.mxu0 0.0
  %121 = vmatprep.subr.mxu0 0.0
  %122 = vmatpush1.msra.mxu0 0.0
  %123 = vmatprep.subr.mxu0 0.0
  %124 = vmatpush1.msra.mxu0 0.0
  %125 = vmatprep.subr.mxu0 0.0
  %126 = vmatpush1.msra.mxu0 0.0
  %127 = vmatprep.subr.mxu0 0.0
  %128 = vmatpush1.msra.mxu0 0.0
  %129 = vmatprep.subr.mxu0 0.0
  %130 = vmatpush1.msra.mxu0 0.0
  %131 = vmatprep.subr.mxu0 0.0
  %132 = vmatpush1.msra.mxu0 0.0
  %133 = vmatprep.subr.mxu0 0.0
  %134 = vmatpush1.msra.mxu0 0.0
  %135 = vmatprep.subr.mxu0 0.0
  %136 = vmatpush1.msra.mxu0 0.0
  %137 = vmatprep.subr.mxu0 0.0
  %138 = vmatpush1.msra.mxu0 0.0
  %139 = vmatprep.subr.mxu0 0.0
  %140 = vmatpush1.msra.mxu0 0.0
  %141 = vmatprep.mubr.f32.mxu0 0.0
  %142 = vmatmul.mubr.f32.gmra.mrb[0].mxu0 %v42
  %v143 = vpop.f32.mrb[0].mxu0
  %v144 = vadd.f32 %v38, %v143
  %v145 = vpop.f32.mrb[0].mxu0
  %146 = vmatprep.mubr.f32.mxu0 0.0
  %147 = vmatmul.mubr.f32.gmra.mrb[0].mxu0 %v45
  %v148 = vpop.f32.mrb[0].mxu0
  %v149 = vadd.f32 %v38, %v148
  %v150 = vpop.f32.mrb[0].mxu0
  %151 = vmatprep.mubr.f32.mxu0 0.0
  %152 = vmatmul.mubr.f32.gmra.mrb[0].mxu0 %v48
  %v153 = vpop.f32.mrb[0].mxu0
  %v154 = vadd.f32 %v38, %v153
  %v155 = vpop.f32.mrb[0].mxu0
  %156 = vmatprep.mubr.f32.mxu0 0.0
  %157 = vmatmul.mubr.f32.gmra.mrb[0].mxu0 %v51
  %v158 = vpop.f32.mrb[0].mxu0
  %v159 = vadd.f32 %v38, %v158
  %v160 = vpop.f32.mrb[0].mxu0
  %161 = vmatprep.mubr.f32.mxu0 0.0
  %162 = vmatmul.mubr.f32.gmra.mrb[0].mxu0 %v54
  %v163 = vpop.f32.mrb[0].mxu0
  %v164 = vadd.f32 %v38, %v163
  %v165 = vpop.f32.mrb[0].mxu0
  %166 = vmatprep.mubr.f32.mxu0 0.0
  %167 = vmatmul.mubr.f32.gmra.mrb[0].mxu0 %v57
  %v168 = vpop.f32.mrb[0].mxu0
  %v169 = vadd.f32 %v38, %v168
  %v170 = vpop.f32.mrb[0].mxu0
  %171 = vmatprep.mubr.f32.mxu0 0.0
  %172 = vmatmul.mubr.f32.gmra.mrb[0].mxu0 %v60
  %v173 = vpop.f32.mrb[0].mxu0
  %v174 = vadd.f32 %v38, %v173
  %v175 = vpop.f32.mrb[0].mxu0
  %176 = vmatprep.mubr.f32.mxu0 0.0
  %177 = vmatmul.mubr.f32.gmra.mrb[0].mxu0 %v63
  %v178 = vpop.f32.mrb[0].mxu0
  %v179 = vadd.f32 %v38, %v178
  %v180 = vpop.f32.mrb[0].mxu0
  %181 = vmatprep.mubr.f32.mxu0 0.0
  %182 = vmatmul.mubr.f32.gmra.mrb[0].mxu0 %v66
  %v183 = vpop.f32.mrb[0].mxu0
  %v184 = vadd.f32 %v38, %v183
  %v185 = vpop.f32.mrb[0].mxu0
  %186 = vmatprep.mubr.f32.mxu0 0.0
  %187 = vmatmul.mubr.f32.gmra.mrb[0].mxu0 %v69
  %v188 = vpop.f32.mrb[0].mxu0
  %v189 = vadd.f32 %v38, %v188
  %v190 = vpop.f32.mrb[0].mxu0
  %191 = vmatprep.mubr.f32.mxu0 0.0
  %192 = vmatmul.mubr.f32.gmra.mrb[0].mxu0 %v72
  %v193 = vpop.f32.mrb[0].mxu0
  %v194 = vadd.f32 %v38, %v193
  %v195 = vpop.f32.mrb[0].mxu0
  %196 = vmatprep.mubr.f32.mxu0 0.0
  %197 = vmatmul.mubr.f32.gmra.mrb[0].mxu0 %v75
  %v198 = vpop.f32.mrb[0].mxu0
  %v199 = vadd.f32 %v38, %v198
  %v200 = vpop.f32.mrb[0].mxu0
  %201 = vdwg.mxu0
  %202 = vst.msk [vmem:[%s3] sm:$0xff] %vm40, %v144
  %203 = vst.msk [vmem:[%s3 + $0x8] sm:$0xff] %vm40, %v149
  %204 = vst.msk [vmem:[%s3 + $0x10] sm:$0xff] %vm40, %v154
  %205 = vst.msk [vmem:[%s3 + $0x18] sm:$0xff] %vm40, %v159
  %206 = vst.msk [vmem:[%s3 + $0x20] sm:$0xff] %vm40, %v164
  %207 = vst.msk [vmem:[%s3 + $0x28] sm:$0xff] %vm40, %v169
  %208 = vst.msk [vmem:[%s3 + $0x30] sm:$0xff] %vm40, %v174
  %209 = vst.msk [vmem:[%s3 + $0x38] sm:$0xff] %vm40, %v179
  %210 = vst.msk [vmem:[%s3 + $0x40] sm:$0xff] %vm40, %v184
  %211 = vst.msk [vmem:[%s3 + $0x48] sm:$0xff] %vm40, %v189
  %212 = vst.msk [vmem:[%s3 + $0x50] sm:$0xff] %vm40, %v194
  %213 = vst.msk [vmem:[%s3 + $0x58] sm:$0xff] %vm40, %v199
  %226 = vrot.lane.b32.xlu0 %v144, 96
  %v227 = vpop.permute.xlu0 %226
  %228 = vrot.lane.b32.xlu0 %v149, 96
  %v229 = vpop.permute.xlu0 %228
  %230 = vrot.lane.b32.xlu0 %v154, 96
  %v231 = vpop.permute.xlu0 %230
  %232 = vrot.lane.b32.xlu0 %v159, 96
  %v233 = vpop.permute.xlu0 %232
  %234 = vrot.lane.b32.xlu0 %v164, 96
  %v235 = vpop.permute.xlu0 %234
  %236 = vrot.lane.b32.xlu0 %v169, 96
  %v237 = vpop.permute.xlu0 %236
  %238 = vrot.lane.b32.xlu0 %v174, 96
  %v239 = vpop.permute.xlu0 %238
  %240 = vrot.lane.b32.xlu0 %v179, 96
  %v241 = vpop.permute.xlu0 %240
  %242 = vrot.lane.b32.xlu0 %v184, 96
  %v243 = vpop.permute.xlu0 %242
  %244 = vrot.lane.b32.xlu0 %v189, 96
  %v245 = vpop.permute.xlu0 %244
  %246 = vrot.lane.b32.xlu0 %v194, 96
  %v247 = vpop.permute.xlu0 %246
  %248 = vrot.lane.b32.xlu0 %v199, 96
  %v249 = vpop.permute.xlu0 %248
  %262 = vst.msk [vmem:[%s4] sm:$0xff] %vm40, %v227
  %263 = vst.msk [vmem:[%s4 + $0x8] sm:$0xff] %vm40, %v229
  %264 = vst.msk [vmem:[%s4 + $0x10] sm:$0xff] %vm40, %v231
  %265 = vst.msk [vmem:[%s4 + $0x18] sm:$0xff] %vm40, %v233
  %266 = vst.msk [vmem:[%s4 + $0x20] sm:$0xff] %vm40, %v235
  %267 = vst.msk [vmem:[%s4 + $0x28] sm:$0xff] %vm40, %v237
  %268 = vst.msk [vmem:[%s4 + $0x30] sm:$0xff] %vm40, %v239
  %269 = vst.msk [vmem:[%s4 + $0x38] sm:$0xff] %vm40, %v241
  %270 = vst.msk [vmem:[%s4 + $0x40] sm:$0xff] %vm40, %v243
  %271 = vst.msk [vmem:[%s4 + $0x48] sm:$0xff] %vm40, %v245
  %272 = vst.msk [vmem:[%s4 + $0x50] sm:$0xff] %vm40, %v247
  %273 = vst.msk [vmem:[%s4 + $0x58] sm:$0xff] %vm40, %v249
  %274 = vrot.lane.b32.xlu0 %v144, 64
  %v275 = vpop.permute.xlu0 %274
  %276 = vrot.lane.b32.xlu0 %v149, 64
  %v277 = vpop.permute.xlu0 %276
  %278 = vrot.lane.b32.xlu0 %v154, 64
  %v279 = vpop.permute.xlu0 %278
  %280 = vrot.lane.b32.xlu0 %v159, 64
  %v281 = vpop.permute.xlu0 %280
  %282 = vrot.lane.b32.xlu0 %v164, 64
  %v283 = vpop.permute.xlu0 %282
  %284 = vrot.lane.b32.xlu0 %v169, 64
  %v285 = vpop.permute.xlu0 %284
  %286 = vrot.lane.b32.xlu0 %v174, 64
  %v287 = vpop.permute.xlu0 %286
  %288 = vrot.lane.b32.xlu0 %v179, 64
  %v289 = vpop.permute.xlu0 %288
  %290 = vrot.lane.b32.xlu0 %v184, 64
  %v291 = vpop.permute.xlu0 %290
  %292 = vrot.lane.b32.xlu0 %v189, 64
  %v293 = vpop.permute.xlu0 %292
  %294 = vrot.lane.b32.xlu0 %v194, 64
  %v295 = vpop.permute.xlu0 %294
  %296 = vrot.lane.b32.xlu0 %v199, 64
  %v297 = vpop.permute.xlu0 %296
  %310 = vst.msk [vmem:[%s5] sm:$0xff] %vm40, %v275
  %311 = vst.msk [vmem:[%s5 + $0x8] sm:$0xff] %vm40, %v277
  %312 = vst.msk [vmem:[%s5 + $0x10] sm:$0xff] %vm40, %v279
  %313 = vst.msk [vmem:[%s5 + $0x18] sm:$0xff] %vm40, %v281
  %314 = vst.msk [vmem:[%s5 + $0x20] sm:$0xff] %vm40, %v283
  %315 = vst.msk [vmem:[%s5 + $0x28] sm:$0xff] %vm40, %v285
  %316 = vst.msk [vmem:[%s5 + $0x30] sm:$0xff] %vm40, %v287
  %317 = vst.msk [vmem:[%s5 + $0x38] sm:$0xff] %vm40, %v289
  %318 = vst.msk [vmem:[%s5 + $0x40] sm:$0xff] %vm40, %v291
  %319 = vst.msk [vmem:[%s5 + $0x48] sm:$0xff] %vm40, %v293
  %320 = vst.msk [vmem:[%s5 + $0x50] sm:$0xff] %vm40, %v295
  %321 = vst.msk [vmem:[%s5 + $0x58] sm:$0xff] %vm40, %v297
  // Predicated region
  $region14: #{gat_layer_v2_forward.6} parent=0 // pred_check
    _
  $region15: #{gat_layer_v2_forward.6} parent=0 // pred_check_branch
    %323 = sbr.rel (0) target = $region17
  $region16: #{gat_layer_v2_forward.6} parent=0 // pred_region
    _
  $region17: #{gat_layer_v2_forward.6} parent=0 // pred_fallthru
    _
  // Predicated region
  $region18: #{gat_layer_v2_forward.6} parent=0 // pred_check
    _
  $region19: #{gat_layer_v2_forward.6} parent=0 // pred_check_branch
    %325 = sbr.rel (0) target = $region21
  $region20: #{gat_layer_v2_forward.6} parent=0 // pred_region
    _
  $region21: #{gat_layer_v2_forward.6} parent=0 // pred_fallthru
    _
  // Predicated region
  $region22: #{gat_layer_v2_forward.6} parent=0 // pred_check
    _
  $region23: #{gat_layer_v2_forward.6} parent=0 // pred_check_branch
    %327 = sbr.rel (0) target = $region25
  $region24: #{gat_layer_v2_forward.6} parent=0 // pred_region
    _
  $region25: #{gat_layer_v2_forward.6} parent=0 // pred_fallthru
    _
  // Predicated region
  $region26: #{gat_layer_v2_forward.6} parent=0 // pred_check
    _
  $region27: #{gat_layer_v2_forward.6} parent=0 // pred_check_branch
    %329 = sbr.rel (0) target = $region29
  $region28: #{gat_layer_v2_forward.6} parent=0 // pred_region
    _
  $region29: #{gat_layer_v2_forward.6} parent=0 // pred_fallthru
    _
  // Predicated region
  $region30: #{gat_layer_v2_forward.6} parent=0 // pred_check
    _
  $region31: #{gat_layer_v2_forward.6} parent=0 // pred_check_branch
    %331 = sbr.rel (0) target = $region33
  $region32: #{gat_layer_v2_forward.6} parent=0 // pred_region
    _
  $region33: #{gat_layer_v2_forward.6} parent=0 // pred_fallthru
    _
  // Predicated region
  $region34: #{gat_layer_v2_forward.6} parent=0 // pred_check
    _
  $region35: #{gat_layer_v2_forward.6} parent=0 // pred_check_branch
    %333 = sbr.rel (0) target = $region37
  $region36: #{gat_layer_v2_forward.6} parent=0 // pred_region
    _
  $region37: #{gat_layer_v2_forward.6} parent=0 // pred_fallthru
    _

// kernel: gat_layer_v2_forward.7
$region0: #{gat_layer_v2_forward.7}
  #allocation0 [shape = 'u32[]', space=smem, size = 0x4, offset = 0x4, fixed_abs, tag = 'smem constant byte address 0x4 - core index']
  #allocation1 [shape = 'u32[144,128]{1,0:T(1,128)}', space=vmem, size = 0x12000, scoped, tag = 'internal scratch']
  #allocation2 [shape = 'f32[1,1]{1,0:T(1,128)S(1)}', space=vmem, size = 0x200, scoped, tag = 'scoped memory for gat_layer_v2_forward.7']
  %s0 = inlined_call_operand.vmem [shape: f32[6,16,32], index: 0, kind: input, shape index: {}]
  %s1 = inlined_call_operand.vmem [shape: f32[6,16,32], index: 1, kind: input, shape index: {}]
  %s2 = inlined_call_operand.vmem [shape: f32[16,16], index: 2, kind: input, shape index: {}]
  %s3 = inlined_call_operand.vmem [shape: f32[32,4], index: 3, kind: input, shape index: {}]
  %s4 = inlined_call_operand.<no memory space> [shape: f32[1,1], index: 4, kind: input, shape index: {}]
  %s5 = inlined_call_operand.vmem [shape: f32[6,16,4], index: 5, kind: output, shape index: {}]
  %s6 = sld [smem:[#allocation0]]
  $region30: #{gat_layer_v2_forward.7} parent=0
    _
  %s8 = ssub.s32 1, %s6
  %s9 = scalar_select 0, %s8, %s6
  %v10 = vstv %s4
  %11 = vst [vmem:[#allocation2] sm:$0x1] %v10
  // Predicated region
  $region2: #{gat_layer_v2_forward.7} parent=0 // pred_check
    _
  $region3: #{gat_layer_v2_forward.7} parent=0 // pred_check_branch
    %13 = sbr.rel (0) target = $region5
  $region4: #{gat_layer_v2_forward.7} parent=0 // pred_region
    _
  $region5: #{gat_layer_v2_forward.7} parent=0 // pred_fallthru
    _
  // Predicated region
  $region6: #{gat_layer_v2_forward.7} parent=0 // pred_check
    _
  $region7: #{gat_layer_v2_forward.7} parent=0 // pred_check_branch
    %15 = sbr.rel (0) target = $region9
  $region8: #{gat_layer_v2_forward.7} parent=0 // pred_region
    _
  $region9: #{gat_layer_v2_forward.7} parent=0 // pred_fallthru
    _
  // Predicated region
  $region10: #{gat_layer_v2_forward.7} parent=0 // pred_check
    _
  $region11: #{gat_layer_v2_forward.7} parent=0 // pred_check_branch
    %17 = sbr.rel (0) target = $region13
  $region12: #{gat_layer_v2_forward.7} parent=0 // pred_region
    _
  $region13: #{gat_layer_v2_forward.7} parent=0 // pred_fallthru
    _
  // Predicated region
  $region14: #{gat_layer_v2_forward.7} parent=0 // pred_check
    _
  $region15: #{gat_layer_v2_forward.7} parent=0 // pred_check_branch
    %19 = sbr.rel (0) target = $region17
  $region16: #{gat_layer_v2_forward.7} parent=0 // pred_region
    _
  $region17: #{gat_layer_v2_forward.7} parent=0 // pred_fallthru
    _
  // Predicated region
  $region18: #{gat_layer_v2_forward.7} parent=0 // pred_check
    _
  $region19: #{gat_layer_v2_forward.7} parent=0 // pred_check_branch
    %21 = sbr.rel (0) target = $region21
  $region20: #{gat_layer_v2_forward.7} parent=0 // pred_region
    _
  $region21: #{gat_layer_v2_forward.7} parent=0 // pred_fallthru
    _
  %v22 = vld [vmem:[%s0] sm:$0xff]
  %v23 = vld [vmem:[%s0 + $0x8] sm:$0xff]
  %v24 = vld [vmem:[%s0 + $0x10] sm:$0xff]
  %v25 = vld [vmem:[%s0 + $0x18] sm:$0xff]
  %v26 = vld [vmem:[%s0 + $0x20] sm:$0xff]
  %v27 = vld [vmem:[%s0 + $0x28] sm:$0xff]
  %v28 = vld [vmem:[%s0 + $0x30] sm:$0xff]
  %v29 = vld [vmem:[%s0 + $0x38] sm:$0xff]
  %v30 = vld [vmem:[%s0 + $0x40] sm:$0xff]
  %v31 = vld [vmem:[%s0 + $0x48] sm:$0xff]
  %v32 = vld [vmem:[%s0 + $0x50] sm:$0xff]
  %v33 = vld [vmem:[%s0 + $0x58] sm:$0xff]
  %v34 = vld [vmem:[%s1] sm:$0xff]
  %v35 = vld [vmem:[%s1 + $0x8] sm:$0xff]
  %v36 = vld [vmem:[%s1 + $0x10] sm:$0xff]
  %v37 = vld [vmem:[%s1 + $0x18] sm:$0xff]
  %v38 = vld [vmem:[%s1 + $0x20] sm:$0xff]
  %v39 = vld [vmem:[%s1 + $0x28] sm:$0xff]
  %v40 = vld [vmem:[%s1 + $0x30] sm:$0xff]
  %v41 = vld [vmem:[%s1 + $0x38] sm:$0xff]
  %v42 = vld [vmem:[%s1 + $0x40] sm:$0xff]
  %v43 = vld [vmem:[%s1 + $0x48] sm:$0xff]
  %v44 = vld [vmem:[%s1 + $0x50] sm:$0xff]
  %v45 = vld [vmem:[%s1 + $0x58] sm:$0xff]
  %v46 = vld [vmem:[%s2] sm:$0xff]
  %v47 = vld [vmem:[%s2 + $0x8] sm:$0xff]
  %vm48 = vcmask 130048
  %v50 = vsel %vm48, %v46, 0
  %v53 = vsel %vm48, %v47, 0
  %55 = vmatprep.subr.mxu0 0.0
  %56 = vmatpush1.msra.mxu0 %v34
  %57 = vmatprep.subr.mxu0 0.0
  %58 = vmatpush1.msra.mxu0 %v35
  %59 = vmatprep.subr.mxu0 0.0
  %60 = vmatpush1.msra.mxu0 0.0
  %61 = vmatprep.subr.mxu0 0.0
  %62 = vmatpush1.msra.mxu0 0.0
  %63 = vmatprep.subr.mxu0 0.0
  %64 = vmatpush1.msra.mxu0 0.0
  %65 = vmatprep.subr.mxu0 0.0
  %66 = vmatpush1.msra.mxu0 0.0
  %67 = vmatprep.subr.mxu0 0.0
  %68 = vmatpush1.msra.mxu0 0.0
  %69 = vmatprep.subr.mxu0 0.0
  %70 = vmatpush1.msra.mxu0 0.0
  %71 = vmatprep.subr.mxu0 0.0
  %72 = vmatpush1.msra.mxu0 0.0
  %73 = vmatprep.subr.mxu0 0.0
  %74 = vmatpush1.msra.mxu0 0.0
  %75 = vmatprep.subr.mxu0 0.0
  %76 = vmatpush1.msra.mxu0 0.0
  %77 = vmatprep.subr.mxu0 0.0
  %78 = vmatpush1.msra.mxu0 0.0
  %79 = vmatprep.subr.mxu0 0.0
  %80 = vmatpush1.msra.mxu0 0.0
  %81 = vmatprep.subr.mxu0 0.0
  %82 = vmatpush1.msra.mxu0 0.0
  %83 = vmatprep.subr.mxu0 0.0
  %84 = vmatpush1.msra.mxu0 0.0
  %85 = vmatprep.subr.mxu0 0.0
  %86 = vmatpush1.msra.mxu0 0.0
  %87 = vmatprep.subr.mxu0 0.0
  %88 = vmatpush1.msra.mxu0 0.0
  %89 = vmatprep.subr.mxu0 0.0
  %90 = vmatpush1.msra.mxu0 0.0
  %91 = vmatprep.subr.mxu0 0.0
  %92 = vmatpush1.msra.mxu0 0.0
  %93 = vmatprep.subr.mxu0 0.0
  %94 = vmatpush1.msra.mxu0 0.0
  %95 = vmatprep.subr.mxu0 0.0
  %96 = vmatpush1.msra.mxu0 0.0
  %97 = vmatprep.subr.mxu0 0.0
  %98 = vmatpush1.msra.mxu0 0.0
  %99 = vmatprep.subr.mxu0 0.0
  %100 = vmatpush1.msra.mxu0 0.0
  %101 = vmatprep.subr.mxu0 0.0
  %102 = vmatpush1.msra.mxu0 0.0
  %103 = vmatprep.subr.mxu0 0.0
  %104 = vmatpush1.msra.mxu0 0.0
  %105 = vmatprep.subr.mxu0 0.0
  %106 = vmatpush1.msra.mxu0 0.0
  %107 = vmatprep.subr.mxu0 0.0
  %108 = vmatpush1.msra.mxu0 0.0
  %109 = vmatprep.subr.mxu0 0.0
  %110 = vmatpush1.msra.mxu0 0.0
  %111 = vmatprep.subr.mxu0 0.0
  %112 = vmatpush1.msra.mxu0 0.0
  %113 = vmatprep.subr.mxu0 0.0
  %114 = vmatpush1.msra.mxu0 0.0
  %115 = vmatprep.subr.mxu0 0.0
  %116 = vmatpush1.msra.mxu0 0.0
  %117 = vmatprep.subr.mxu0 0.0
  %118 = vmatpush1.msra.mxu0 0.0
  %119 = vmatprep.mubr.f32.mxu0 0.0
  %120 = vmatmul.mubr.f32.gmra.mrb[0].mxu0 %v50
  %v121 = vpop.f32.mrb[0].mxu0
  %v122 = vadd.f32 0.0, %v121
  %v123 = vpop.f32.mrb[0].mxu0
  %124 = vmatprep.mubr.f32.mxu0 0.0
  %125 = vmatmul.mubr.f32.gmra.mrb[0].mxu0 %v53
  %v126 = vpop.f32.mrb[0].mxu0
  %v127 = vadd.f32 0.0, %v126
  %v128 = vpop.f32.mrb[0].mxu0
  %129 = vdwg.mxu0
  %130 = vmatprep.subr.mxu0 0.0
  %131 = vmatpush1.msra.mxu0 %v36
  %132 = vmatprep.subr.mxu0 0.0
  %133 = vmatpush1.msra.mxu0 %v37
  %134 = vmatprep.subr.mxu0 0.0
  %135 = vmatpush1.msra.mxu0 0.0
  %136 = vmatprep.subr.mxu0 0.0
  %137 = vmatpush1.msra.mxu0 0.0
  %138 = vmatprep.subr.mxu0 0.0
  %139 = vmatpush1.msra.mxu0 0.0
  %140 = vmatprep.subr.mxu0 0.0
  %141 = vmatpush1.msra.mxu0 0.0
  %142 = vmatprep.subr.mxu0 0.0
  %143 = vmatpush1.msra.mxu0 0.0
  %144 = vmatprep.subr.mxu0 0.0
  %145 = vmatpush1.msra.mxu0 0.0
  %146 = vmatprep.subr.mxu0 0.0
  %147 = vmatpush1.msra.mxu0 0.0
  %148 = vmatprep.subr.mxu0 0.0
  %149 = vmatpush1.msra.mxu0 0.0
  %150 = vmatprep.subr.mxu0 0.0
  %151 = vmatpush1.msra.mxu0 0.0
  %152 = vmatprep.subr.mxu0 0.0
  %153 = vmatpush1.msra.mxu0 0.0
  %154 = vmatprep.subr.mxu0 0.0
  %155 = vmatpush1.msra.mxu0 0.0
  %156 = vmatprep.subr.mxu0 0.0
  %157 = vmatpush1.msra.mxu0 0.0
  %158 = vmatprep.subr.mxu0 0.0
  %159 = vmatpush1.msra.mxu0 0.0
  %160 = vmatprep.subr.mxu0 0.0
  %161 = vmatpush1.msra.mxu0 0.0
  %162 = vmatprep.subr.mxu0 0.0
  %163 = vmatpush1.msra.mxu0 0.0
  %164 = vmatprep.subr.mxu0 0.0
  %165 = vmatpush1.msra.mxu0 0.0
  %166 = vmatprep.subr.mxu0 0.0
  %167 = vmatpush1.msra.mxu0 0.0
  %168 = vmatprep.subr.mxu0 0.0
  %169 = vmatpush1.msra.mxu0 0.0
  %170 = vmatprep.subr.mxu0 0.0
  %171 = vmatpush1.msra.mxu0 0.0
  %172 = vmatprep.subr.mxu0 0.0
  %173 = vmatpush1.msra.mxu0 0.0
  %174 = vmatprep.subr.mxu0 0.0
  %175 = vmatpush1.msra.mxu0 0.0
  %176 = vmatprep.subr.mxu0 0.0
  %177 = vmatpush1.msra.mxu0 0.0
  %178 = vmatprep.subr.mxu0 0.0
  %179 = vmatpush1.msra.mxu0 0.0
  %180 = vmatprep.subr.mxu0 0.0
  %181 = vmatpush1.msra.mxu0 0.0
  %182 = vmatprep.subr.mxu0 0.0
  %183 = vmatpush1.msra.mxu0 0.0
  %184 = vmatprep.subr.mxu0 0.0
  %185 = vmatpush1.msra.mxu0 0.0
  %186 = vmatprep.subr.mxu0 0.0
  %187 = vmatpush1.msra.mxu0 0.0
  %188 = vmatprep.subr.mxu0 0.0
  %189 = vmatpush1.msra.mxu0 0.0
  %190 = vmatprep.subr.mxu0 0.0
  %191 = vmatpush1.msra.mxu0 0.0
  %192 = vmatprep.subr.mxu0 0.0
  %193 = vmatpush1.msra.mxu0 0.0
  %194 = vmatprep.mubr.f32.mxu0 0.0
  %195 = vmatmul.mubr.f32.gmra.mrb[0].mxu0 %v50
  %v196 = vpop.f32.mrb[0].mxu0
  %v197 = vadd.f32 0.0, %v196
  %v198 = vpop.f32.mrb[0].mxu0
  %199 = vmatprep.mubr.f32.mxu0 0.0
  %200 = vmatmul.mubr.f32.gmra.mrb[0].mxu0 %v53
  %v201 = vpop.f32.mrb[0].mxu0
  %v202 = vadd.f32 0.0, %v201
  %v203 = vpop.f32.mrb[0].mxu0
  %204 = vdwg.mxu0
  %205 = vmatprep.subr.mxu0 0.0
  %206 = vmatpush1.msra.mxu0 %v38
  %207 = vmatprep.subr.mxu0 0.0
  %208 = vmatpush1.msra.mxu0 %v39
  %209 = vmatprep.subr.mxu0 0.0
  %210 = vmatpush1.msra.mxu0 0.0
  %211 = vmatprep.subr.mxu0 0.0
  %212 = vmatpush1.msra.mxu0 0.0
  %213 = vmatprep.subr.mxu0 0.0
  %214 = vmatpush1.msra.mxu0 0.0
  %215 = vmatprep.subr.mxu0 0.0
  %216 = vmatpush1.msra.mxu0 0.0
  %217 = vmatprep.subr.mxu0 0.0
  %218 = vmatpush1.msra.mxu0 0.0
  %219 = vmatprep.subr.mxu0 0.0
  %220 = vmatpush1.msra.mxu0 0.0
  %221 = vmatprep.subr.mxu0 0.0
  %222 = vmatpush1.msra.mxu0 0.0
  %223 = vmatprep.subr.mxu0 0.0
  %224 = vmatpush1.msra.mxu0 0.0
  %225 = vmatprep.subr.mxu0 0.0
  %226 = vmatpush1.msra.mxu0 0.0
  %227 = vmatprep.subr.mxu0 0.0
  %228 = vmatpush1.msra.mxu0 0.0
  %229 = vmatprep.subr.mxu0 0.0
  %230 = vmatpush1.msra.mxu0 0.0
  %231 = vmatprep.subr.mxu0 0.0
  %232 = vmatpush1.msra.mxu0 0.0
  %233 = vmatprep.subr.mxu0 0.0
  %234 = vmatpush1.msra.mxu0 0.0
  %235 = vmatprep.subr.mxu0 0.0
  %236 = vmatpush1.msra.mxu0 0.0
  %237 = vmatprep.subr.mxu0 0.0
  %238 = vmatpush1.msra.mxu0 0.0
  %239 = vmatprep.subr.mxu0 0.0
  %240 = vmatpush1.msra.mxu0 0.0
  %241 = vmatprep.subr.mxu0 0.0
  %242 = vmatpush1.msra.mxu0 0.0
  %243 = vmatprep.subr.mxu0 0.0
  %244 = vmatpush1.msra.mxu0 0.0
  %245 = vmatprep.subr.mxu0 0.0
  %246 = vmatpush1.msra.mxu0 0.0
  %247 = vmatprep.subr.mxu0 0.0
  %248 = vmatpush1.msra.mxu0 0.0
  %249 = vmatprep.subr.mxu0 0.0
  %250 = vmatpush1.msra.mxu0 0.0
  %251 = vmatprep.subr.mxu0 0.0
  %252 = vmatpush1.msra.mxu0 0.0
  %253 = vmatprep.subr.mxu0 0.0
  %254 = vmatpush1.msra.mxu0 0.0
  %255 = vmatprep.subr.mxu0 0.0
  %256 = vmatpush1.msra.mxu0 0.0
  %257 = vmatprep.subr.mxu0 0.0
  %258 = vmatpush1.msra.mxu0 0.0
  %259 = vmatprep.subr.mxu0 0.0
  %260 = vmatpush1.msra.mxu0 0.0
  %261 = vmatprep.subr.mxu0 0.0
  %262 = vmatpush1.msra.mxu0 0.0
  %263 = vmatprep.subr.mxu0 0.0
  %264 = vmatpush1.msra.mxu0 0.0
  %265 = vmatprep.subr.mxu0 0.0
  %266 = vmatpush1.msra.mxu0 0.0
  %267 = vmatprep.subr.mxu0 0.0
  %268 = vmatpush1.msra.mxu0 0.0
  %269 = vmatprep.mubr.f32.mxu0 0.0
  %270 = vmatmul.mubr.f32.gmra.mrb[0].mxu0 %v50
  %v271 = vpop.f32.mrb[0].mxu0
  %v272 = vadd.f32 0.0, %v271
  %v273 = vpop.f32.mrb[0].mxu0
  %274 = vmatprep.mubr.f32.mxu0 0.0
  %275 = vmatmul.mubr.f32.gmra.mrb[0].mxu0 %v53
  %v276 = vpop.f32.mrb[0].mxu0
  %v277 = vadd.f32 0.0, %v276
  %v278 = vpop.f32.mrb[0].mxu0
  %279 = vdwg.mxu0
  %280 = vmatprep.subr.mxu0 0.0
  %281 = vmatpush1.msra.mxu0 %v40
  %282 = vmatprep.subr.mxu0 0.0
  %283 = vmatpush1.msra.mxu0 %v41
  %284 = vmatprep.subr.mxu0 0.0
  %285 = vmatpush1.msra.mxu0 0.0
  %286 = vmatprep.subr.mxu0 0.0
  %287 = vmatpush1.msra.mxu0 0.0
  %288 = vmatprep.subr.mxu0 0.0
  %289 = vmatpush1.msra.mxu0 0.0
  %290 = vmatprep.subr.mxu0 0.0
  %291 = vmatpush1.msra.mxu0 0.0
  %292 = vmatprep.subr.mxu0 0.0
  %293 = vmatpush1.msra.mxu0 0.0
  %294 = vmatprep.subr.mxu0 0.0
  %295 = vmatpush1.msra.mxu0 0.0
  %296 = vmatprep.subr.mxu0 0.0
  %297 = vmatpush1.msra.mxu0 0.0
  %298 = vmatprep.subr.mxu0 0.0
  %299 = vmatpush1.msra.mxu0 0.0
  %300 = vmatprep.subr.mxu0 0.0
  %301 = vmatpush1.msra.mxu0 0.0
  %302 = vmatprep.subr.mxu0 0.0
  %303 = vmatpush1.msra.mxu0 0.0
  %304 = vmatprep.subr.mxu0 0.0
  %305 = vmatpush1.msra.mxu0 0.0
  %306 = vmatprep.subr.mxu0 0.0
  %307 = vmatpush1.msra.mxu0 0.0
  %308 = vmatprep.subr.mxu0 0.0
  %309 = vmatpush1.msra.mxu0 0.0
  %310 = vmatprep.subr.mxu0 0.0
  %311 = vmatpush1.msra.mxu0 0.0
  %312 = vmatprep.subr.mxu0 0.0
  %313 = vmatpush1.msra.mxu0 0.0
  %314 = vmatprep.subr.mxu0 0.0
  %315 = vmatpush1.msra.mxu0 0.0
  %316 = vmatprep.subr.mxu0 0.0
  %317 = vmatpush1.msra.mxu0 0.0
  %318 = vmatprep.subr.mxu0 0.0
  %319 = vmatpush1.msra.mxu0 0.0
  %320 = vmatprep.subr.mxu0 0.0
  %321 = vmatpush1.msra.mxu0 0.0
  %322 = vmatprep.subr.mxu0 0.0
  %323 = vmatpush1.msra.mxu0 0.0
  %324 = vmatprep.subr.mxu0 0.0
  %325 = vmatpush1.msra.mxu0 0.0
  %326 = vmatprep.subr.mxu0 0.0
  %327 = vmatpush1.msra.mxu0 0.0
  %328 = vmatprep.subr.mxu0 0.0
  %329 = vmatpush1.msra.mxu0 0.0
  %330 = vmatprep.subr.mxu0 0.0
  %331 = vmatpush1.msra.mxu0 0.0
  %332 = vmatprep.subr.mxu0 0.0
  %333 = vmatpush1.msra.mxu0 0.0
  %334 = vmatprep.subr.mxu0 0.0
  %335 = vmatpush1.msra.mxu0 0.0
  %336 = vmatprep.subr.mxu0 0.0
  %337 = vmatpush1.msra.mxu0 0.0
  %338 = vmatprep.subr.mxu0 0.0
  %339 = vmatpush1.msra.mxu0 0.0
  %340 = vmatprep.subr.mxu0 0.0
  %341 = vmatpush1.msra.mxu0 0.0
  %342 = vmatprep.subr.mxu0 0.0
  %343 = vmatpush1.msra.mxu0 0.0
  %344 = vmatprep.mubr.f32.mxu0 0.0
  %345 = vmatmul.mubr.f32.gmra.mrb[0].mxu0 %v50
  %v346 = vpop.f32.mrb[0].mxu0
  %v347 = vadd.f32 0.0, %v346
  %v348 = vpop.f32.mrb[0].mxu0
  %349 = vmatprep.mubr.f32.mxu0 0.0
  %350 = vmatmul.mubr.f32.gmra.mrb[0].mxu0 %v53
  %v351 = vpop.f32.mrb[0].mxu0
  %v352 = vadd.f32 0.0, %v351
  %v353 = vpop.f32.mrb[0].mxu0
  %354 = vdwg.mxu0
  %355 = vmatprep.subr.mxu0 0.0
  %356 = vmatpush1.msra.mxu0 %v42
  %357 = vmatprep.subr.mxu0 0.0
  %358 = vmatpush1.msra.mxu0 %v43
  %359 = vmatprep.subr.mxu0 0.0
  %360 = vmatpush1.msra.mxu0 0.0
  %361 = vmatprep.subr.mxu0 0.0
  %362 = vmatpush1.msra.mxu0 0.0
  %363 = vmatprep.subr.mxu0 0.0
  %364 = vmatpush1.msra.mxu0 0.0
  %365 = vmatprep.subr.mxu0 0.0
  %366 = vmatpush1.msra.mxu0 0.0
  %367 = vmatprep.subr.mxu0 0.0
  %368 = vmatpush1.msra.mxu0 0.0
  %369 = vmatprep.subr.mxu0 0.0
  %370 = vmatpush1.msra.mxu0 0.0
  %371 = vmatprep.subr.mxu0 0.0
  %372 = vmatpush1.msra.mxu0 0.0
  %373 = vmatprep.subr.mxu0 0.0
  %374 = vmatpush1.msra.mxu0 0.0
  %375 = vmatprep.subr.mxu0 0.0
  %376 = vmatpush1.msra.mxu0 0.0
  %377 = vmatprep.subr.mxu0 0.0
  %378 = vmatpush1.msra.mxu0 0.0
  %379 = vmatprep.subr.mxu0 0.0
  %380 = vmatpush1.msra.mxu0 0.0
  %381 = vmatprep.subr.mxu0 0.0
  %382 = vmatpush1.msra.mxu0 0.0
  %383 = vmatprep.subr.mxu0 0.0
  %384 = vmatpush1.msra.mxu0 0.0
  %385 = vmatprep.subr.mxu0 0.0
  %386 = vmatpush1.msra.mxu0 0.0
  %387 = vmatprep.subr.mxu0 0.0
  %388 = vmatpush1.msra.mxu0 0.0
  %389 = vmatprep.subr.mxu0 0.0
  %390 = vmatpush1.msra.mxu0 0.0
  %391 = vmatprep.subr.mxu0 0.0
  %392 = vmatpush1.msra.mxu0 0.0
  %393 = vmatprep.subr.mxu0 0.0
  %394 = vmatpush1.msra.mxu0 0.0
  %395 = vmatprep.subr.mxu0 0.0
  %396 = vmatpush1.msra.mxu0 0.0
  %397 = vmatprep.subr.mxu0 0.0
  %398 = vmatpush1.msra.mxu0 0.0
  %399 = vmatprep.subr.mxu0 0.0
  %400 = vmatpush1.msra.mxu0 0.0
  %401 = vmatprep.subr.mxu0 0.0
  %402 = vmatpush1.msra.mxu0 0.0
  %403 = vmatprep.subr.mxu0 0.0
  %404 = vmatpush1.msra.mxu0 0.0
  %405 = vmatprep.subr.mxu0 0.0
  %406 = vmatpush1.msra.mxu0 0.0
  %407 = vmatprep.subr.mxu0 0.0
  %408 = vmatpush1.msra.mxu0 0.0
  %409 = vmatprep.subr.mxu0 0.0
  %410 = vmatpush1.msra.mxu0 0.0
  %411 = vmatprep.subr.mxu0 0.0
  %412 = vmatpush1.msra.mxu0 0.0
  %413 = vmatprep.subr.mxu0 0.0
  %414 = vmatpush1.msra.mxu0 0.0
  %415 = vmatprep.subr.mxu0 0.0
  %416 = vmatpush1.msra.mxu0 0.0
  %417 = vmatprep.subr.mxu0 0.0
  %418 = vmatpush1.msra.mxu0 0.0
  %419 = vmatprep.mubr.f32.mxu0 0.0
  %420 = vmatmul.mubr.f32.gmra.mrb[0].mxu0 %v50
  %v421 = vpop.f32.mrb[0].mxu0
  %v422 = vadd.f32 0.0, %v421
  %v423 = vpop.f32.mrb[0].mxu0
  %424 = vmatprep.mubr.f32.mxu0 0.0
  %425 = vmatmul.mubr.f32.gmra.mrb[0].mxu0 %v53
  %v426 = vpop.f32.mrb[0].mxu0
  %v427 = vadd.f32 0.0, %v426
  %v428 = vpop.f32.mrb[0].mxu0
  %429 = vdwg.mxu0
  %430 = vmatprep.subr.mxu0 0.0
  %431 = vmatpush1.msra.mxu0 %v44
  %432 = vmatprep.subr.mxu0 0.0
  %433 = vmatpush1.msra.mxu0 %v45
  %434 = vmatprep.subr.mxu0 0.0
  %435 = vmatpush1.msra.mxu0 0.0
  %436 = vmatprep.subr.mxu0 0.0
  %437 = vmatpush1.msra.mxu0 0.0
  %438 = vmatprep.subr.mxu0 0.0
  %439 = vmatpush1.msra.mxu0 0.0
  %440 = vmatprep.subr.mxu0 0.0
  %441 = vmatpush1.msra.mxu0 0.0
  %442 = vmatprep.subr.mxu0 0.0
  %443 = vmatpush1.msra.mxu0 0.0
  %444 = vmatprep.subr.mxu0 0.0
  %445 = vmatpush1.msra.mxu0 0.0
  %446 = vmatprep.subr.mxu0 0.0
  %447 = vmatpush1.msra.mxu0 0.0
  %448 = vmatprep.subr.mxu0 0.0
  %449 = vmatpush1.msra.mxu0 0.0
  %450 = vmatprep.subr.mxu0 0.0
  %451 = vmatpush1.msra.mxu0 0.0
  %452 = vmatprep.subr.mxu0 0.0
  %453 = vmatpush1.msra.mxu0 0.0
  %454 = vmatprep.subr.mxu0 0.0
  %455 = vmatpush1.msra.mxu0 0.0
  %456 = vmatprep.subr.mxu0 0.0
  %457 = vmatpush1.msra.mxu0 0.0
  %458 = vmatprep.subr.mxu0 0.0
  %459 = vmatpush1.msra.mxu0 0.0
  %460 = vmatprep.subr.mxu0 0.0
  %461 = vmatpush1.msra.mxu0 0.0
  %462 = vmatprep.subr.mxu0 0.0
  %463 = vmatpush1.msra.mxu0 0.0
  %464 = vmatprep.subr.mxu0 0.0
  %465 = vmatpush1.msra.mxu0 0.0
  %466 = vmatprep.subr.mxu0 0.0
  %467 = vmatpush1.msra.mxu0 0.0
  %468 = vmatprep.subr.mxu0 0.0
  %469 = vmatpush1.msra.mxu0 0.0
  %470 = vmatprep.subr.mxu0 0.0
  %471 = vmatpush1.msra.mxu0 0.0
  %472 = vmatprep.subr.mxu0 0.0
  %473 = vmatpush1.msra.mxu0 0.0
  %474 = vmatprep.subr.mxu0 0.0
  %475 = vmatpush1.msra.mxu0 0.0
  %476 = vmatprep.subr.mxu0 0.0
  %477 = vmatpush1.msra.mxu0 0.0
  %478 = vmatprep.subr.mxu0 0.0
  %479 = vmatpush1.msra.mxu0 0.0
  %480 = vmatprep.subr.mxu0 0.0
  %481 = vmatpush1.msra.mxu0 0.0
  %482 = vmatprep.subr.mxu0 0.0
  %483 = vmatpush1.msra.mxu0 0.0
  %484 = vmatprep.subr.mxu0 0.0
  %485 = vmatpush1.msra.mxu0 0.0
  %486 = vmatprep.subr.mxu0 0.0
  %487 = vmatpush1.msra.mxu0 0.0
  %488 = vmatprep.subr.mxu0 0.0
  %489 = vmatpush1.msra.mxu0 0.0
  %490 = vmatprep.subr.mxu0 0.0
  %491 = vmatpush1.msra.mxu0 0.0
  %492 = vmatprep.subr.mxu0 0.0
  %493 = vmatpush1.msra.mxu0 0.0
  %494 = vmatprep.mubr.f32.mxu0 0.0
  %495 = vmatmul.mubr.f32.gmra.mrb[0].mxu0 %v50
  %v496 = vpop.f32.mrb[0].mxu0
  %v497 = vadd.f32 0.0, %v496
  %v498 = vpop.f32.mrb[0].mxu0
  %499 = vmatprep.mubr.f32.mxu0 0.0
  %500 = vmatmul.mubr.f32.gmra.mrb[0].mxu0 %v53
  %v501 = vpop.f32.mrb[0].mxu0
  %v502 = vadd.f32 0.0, %v501
  %v503 = vpop.f32.mrb[0].mxu0
  %504 = vdwg.mxu0
  %v505 = vmul.f32 %v22, %v122
  %v506 = vmul.f32 %v23, %v127
  %v507 = vmul.f32 %v24, %v197
  %v508 = vmul.f32 %v25, %v202
  %v509 = vmul.f32 %v26, %v272
  %v510 = vmul.f32 %v27, %v277
  %v511 = vmul.f32 %v28, %v347
  %v512 = vmul.f32 %v29, %v352
  %v513 = vmul.f32 %v30, %v422
  %v514 = vmul.f32 %v31, %v427
  %v515 = vmul.f32 %v32, %v497
  %v516 = vmul.f32 %v33, %v502
  %v517 = vld [vmem:[%s3] sm:$0xff]
  %v518 = vld [vmem:[%s3 + $0x8] sm:$0xff]
  %v519 = vld [vmem:[%s3 + $0x10] sm:$0xff]
  %v520 = vld [vmem:[%s3 + $0x18] sm:$0xff]
  %v521 = vld [vmem:[#allocation2] sm:$0x1]
  %v523 = vlaneseq
  %v524 = vshrl.u32 %v523, 7
  %v525 = vsub.s32 0, %v524
  %v526 = vrot.slane %v521, %v525
  %527 = vset.pattern.permute.xlu0 0
  %528 = vperm.xlu0 %527, %v526
  %v529 = vpop.permute.xlu0 %528
  %vm531 = vcmask 261120
  %v533 = vsel %vm531, %v505, 0
  %v536 = vsel %vm531, %v506, 0
  %v539 = vsel %vm531, %v507, 0
  %v542 = vsel %vm531, %v508, 0
  %v545 = vsel %vm531, %v509, 0
  %v548 = vsel %vm531, %v510, 0
  %v551 = vsel %vm531, %v511, 0
  %v554 = vsel %vm531, %v512, 0
  %v557 = vsel %vm531, %v513, 0
  %v560 = vsel %vm531, %v514, 0
  %v563 = vsel %vm531, %v515, 0
  %v566 = vsel %vm531, %v516, 0
  %568 = vmatprep.subr.mxu0 0.0
  %569 = vmatpush1.msra.mxu0 %v517
  %570 = vmatprep.subr.mxu0 0.0
  %571 = vmatpush1.msra.mxu0 %v518
  %572 = vmatprep.subr.mxu0 0.0
  %573 = vmatpush1.msra.mxu0 %v519
  %574 = vmatprep.subr.mxu0 0.0
  %575 = vmatpush1.msra.mxu0 %v520
  %576 = vmatprep.subr.mxu0 0.0
  %577 = vmatpush1.msra.mxu0 0.0
  %578 = vmatprep.subr.mxu0 0.0
  %579 = vmatpush1.msra.mxu0 0.0
  %580 = vmatprep.subr.mxu0 0.0
  %581 = vmatpush1.msra.mxu0 0.0
  %582 = vmatprep.subr.mxu0 0.0
  %583 = vmatpush1.msra.mxu0 0.0
  %584 = vmatprep.subr.mxu0 0.0
  %585 = vmatpush1.msra.mxu0 0.0
  %586 = vmatprep.subr.mxu0 0.0
  %587 = vmatpush1.msra.mxu0 0.0
  %588 = vmatprep.subr.mxu0 0.0
  %589 = vmatpush1.msra.mxu0 0.0
  %590 = vmatprep.subr.mxu0 0.0
  %591 = vmatpush1.msra.mxu0 0.0
  %592 = vmatprep.subr.mxu0 0.0
  %593 = vmatpush1.msra.mxu0 0.0
  %594 = vmatprep.subr.mxu0 0.0
  %595 = vmatpush1.msra.mxu0 0.0
  %596 = vmatprep.subr.mxu0 0.0
  %597 = vmatpush1.msra.mxu0 0.0
  %598 = vmatprep.subr.mxu0 0.0
  %599 = vmatpush1.msra.mxu0 0.0
  %600 = vmatprep.subr.mxu0 0.0
  %601 = vmatpush1.msra.mxu0 0.0
  %602 = vmatprep.subr.mxu0 0.0
  %603 = vmatpush1.msra.mxu0 0.0
  %604 = vmatprep.subr.mxu0 0.0
  %605 = vmatpush1.msra.mxu0 0.0
  %606 = vmatprep.subr.mxu0 0.0
  %607 = vmatpush1.msra.mxu0 0.0
  %608 = vmatprep.subr.mxu0 0.0
  %609 = vmatpush1.msra.mxu0 0.0
  %610 = vmatprep.subr.mxu0 0.0
  %611 = vmatpush1.msra.mxu0 0.0
  %612 = vmatprep.subr.mxu0 0.0
  %613 = vmatpush1.msra.mxu0 0.0
  %614 = vmatprep.subr.mxu0 0.0
  %615 = vmatpush1.msra.mxu0 0.0
  %616 = vmatprep.subr.mxu0 0.0
  %617 = vmatpush1.msra.mxu0 0.0
  %618 = vmatprep.subr.mxu0 0.0
  %619 = vmatpush1.msra.mxu0 0.0
  %620 = vmatprep.subr.mxu0 0.0
  %621 = vmatpush1.msra.mxu0 0.0
  %622 = vmatprep.subr.mxu0 0.0
  %623 = vmatpush1.msra.mxu0 0.0
  %624 = vmatprep.subr.mxu0 0.0
  %625 = vmatpush1.msra.mxu0 0.0
  %626 = vmatprep.subr.mxu0 0.0
  %627 = vmatpush1.msra.mxu0 0.0
  %628 = vmatprep.subr.mxu0 0.0
  %629 = vmatpush1.msra.mxu0 0.0
  %630 = vmatprep.subr.mxu0 0.0
  %631 = vmatpush1.msra.mxu0 0.0
  %632 = vmatprep.mubr.f32.mxu0 0.0
  %633 = vmatmul.mubr.f32.gmra.mrb[0].mxu0 %v533
  %v634 = vpop.f32.mrb[0].mxu0
  %v635 = vadd.f32 %v529, %v634
  %v636 = vpop.f32.mrb[0].mxu0
  %637 = vmatprep.mubr.f32.mxu0 0.0
  %638 = vmatmul.mubr.f32.gmra.mrb[0].mxu0 %v536
  %v639 = vpop.f32.mrb[0].mxu0
  %v640 = vadd.f32 %v529, %v639
  %v641 = vpop.f32.mrb[0].mxu0
  %642 = vmatprep.mubr.f32.mxu0 0.0
  %643 = vmatmul.mubr.f32.gmra.mrb[0].mxu0 %v539
  %v644 = vpop.f32.mrb[0].mxu0
  %v645 = vadd.f32 %v529, %v644
  %v646 = vpop.f32.mrb[0].mxu0
  %647 = vmatprep.mubr.f32.mxu0 0.0
  %648 = vmatmul.mubr.f32.gmra.mrb[0].mxu0 %v542
  %v649 = vpop.f32.mrb[0].mxu0
  %v650 = vadd.f32 %v529, %v649
  %v651 = vpop.f32.mrb[0].mxu0
  %652 = vmatprep.mubr.f32.mxu0 0.0
  %653 = vmatmul.mubr.f32.gmra.mrb[0].mxu0 %v545
  %v654 = vpop.f32.mrb[0].mxu0
  %v655 = vadd.f32 %v529, %v654
  %v656 = vpop.f32.mrb[0].mxu0
  %657 = vmatprep.mubr.f32.mxu0 0.0
  %658 = vmatmul.mubr.f32.gmra.mrb[0].mxu0 %v548
  %v659 = vpop.f32.mrb[0].mxu0
  %v660 = vadd.f32 %v529, %v659
  %v661 = vpop.f32.mrb[0].mxu0
  %662 = vmatprep.mubr.f32.mxu0 0.0
  %663 = vmatmul.mubr.f32.gmra.mrb[0].mxu0 %v551
  %v664 = vpop.f32.mrb[0].mxu0
  %v665 = vadd.f32 %v529, %v664
  %v666 = vpop.f32.mrb[0].mxu0
  %667 = vmatprep.mubr.f32.mxu0 0.0
  %668 = vmatmul.mubr.f32.gmra.mrb[0].mxu0 %v554
  %v669 = vpop.f32.mrb[0].mxu0
  %v670 = vadd.f32 %v529, %v669
  %v671 = vpop.f32.mrb[0].mxu0
  %672 = vmatprep.mubr.f32.mxu0 0.0
  %673 = vmatmul.mubr.f32.gmra.mrb[0].mxu0 %v557
  %v674 = vpop.f32.mrb[0].mxu0
  %v675 = vadd.f32 %v529, %v674
  %v676 = vpop.f32.mrb[0].mxu0
  %677 = vmatprep.mubr.f32.mxu0 0.0
  %678 = vmatmul.mubr.f32.gmra.mrb[0].mxu0 %v560
  %v679 = vpop.f32.mrb[0].mxu0
  %v680 = vadd.f32 %v529, %v679
  %v681 = vpop.f32.mrb[0].mxu0
  %682 = vmatprep.mubr.f32.mxu0 0.0
  %683 = vmatmul.mubr.f32.gmra.mrb[0].mxu0 %v563
  %v684 = vpop.f32.mrb[0].mxu0
  %v685 = vadd.f32 %v529, %v684
  %v686 = vpop.f32.mrb[0].mxu0
  %687 = vmatprep.mubr.f32.mxu0 0.0
  %688 = vmatmul.mubr.f32.gmra.mrb[0].mxu0 %v566
  %v689 = vpop.f32.mrb[0].mxu0
  %v690 = vadd.f32 %v529, %v689
  %v691 = vpop.f32.mrb[0].mxu0
  %692 = vdwg.mxu0
  %vm693 = vcmask 31744
  %694 = vst.msk [vmem:[%s5] sm:$0xff] %vm693, %v635
  %695 = vst.msk [vmem:[%s5 + $0x8] sm:$0xff] %vm693, %v640
  %696 = vst.msk [vmem:[%s5 + $0x10] sm:$0xff] %vm693, %v645
  %697 = vst.msk [vmem:[%s5 + $0x18] sm:$0xff] %vm693, %v650
  %698 = vst.msk [vmem:[%s5 + $0x20] sm:$0xff] %vm693, %v655
  %699 = vst.msk [vmem:[%s5 + $0x28] sm:$0xff] %vm693, %v660
  %700 = vst.msk [vmem:[%s5 + $0x30] sm:$0xff] %vm693, %v665
  %701 = vst.msk [vmem:[%s5 + $0x38] sm:$0xff] %vm693, %v670
  %702 = vst.msk [vmem:[%s5 + $0x40] sm:$0xff] %vm693, %v675
  %703 = vst.msk [vmem:[%s5 + $0x48] sm:$0xff] %vm693, %v680
  %704 = vst.msk [vmem:[%s5 + $0x50] sm:$0xff] %vm693, %v685
  %705 = vst.msk [vmem:[%s5 + $0x58] sm:$0xff] %vm693, %v690
  // Predicated region
  $region22: #{gat_layer_v2_forward.7} parent=0 // pred_check
    _
  $region23: #{gat_layer_v2_forward.7} parent=0 // pred_check_branch
    %707 = sbr.rel (0) target = $region25
  $region24: #{gat_layer_v2_forward.7} parent=0 // pred_region
    _
  $region25: #{gat_layer_v2_forward.7} parent=0 // pred_fallthru
    _
  // Predicated region
  $region26: #{gat_layer_v2_forward.7} parent=0 // pred_check
    _
  $region27: #{gat_layer_v2_forward.7} parent=0 // pred_check_branch
    %709 = sbr.rel (0) target = $region29
  $region28: #{gat_layer_v2_forward.7} parent=0 // pred_region
    _
  $region29: #{gat_layer_v2_forward.7} parent=0 // pred_fallthru
    _

// kernel: eq.15
$region0: #{eq.15}
  %s0 = inlined_call_operand.vmem [shape: s32[24,8], index: 0, kind: input, shape index: {}]
  %s1 = inlined_call_operand.vmem [shape: s32[6,32], index: 1, kind: output, shape index: {}]
  %v2 = vld [vmem:[%s0] ss:$4 sm:$0x3f]
  %vm3 = vcmask 64512
  %4 = vst.msk [vmem:[%s1] sm:$0x3f] %vm3, %v2
  %s5 = scalar_lea.vmem %s0, 3
  %v6 = vld [vmem:[%s5] ss:$4 sm:$0x3f]
  %7 = vrot.lane.b32.xlu0 %v6, 24
  %v8 = vpop.permute.xlu0 %7
  %vm9 = vcmask 261312
  %10 = vst.msk [vmem:[%s1] sm:$0x3f] %vm9, %v8
  %s11 = scalar_lea.vmem %s0, 2
  %v12 = vld [vmem:[%s11] ss:$4 sm:$0x3f]
  %13 = vrot.lane.b32.xlu0 %v12, 16
  %v14 = vpop.permute.xlu0 %13
  %vm15 = vcmask 195712
  %16 = vst.msk [vmem:[%s1] sm:$0x3f] %vm15, %v14
  %s17 = scalar_lea.vmem %s0, 1
  %v18 = vld [vmem:[%s17] ss:$4 sm:$0x3f]
  %19 = vrot.lane.b32.xlu0 %v18, 8
  %v20 = vpop.permute.xlu0 %19
  %vm21 = vcmask 130112
  %22 = vst.msk [vmem:[%s1] sm:$0x3f] %vm21, %v20

// kernel: gat_layer_v2_forward.9
$region0: #{gat_layer_v2_forward.9}
  #allocation0 [shape = 'u32[]', space=smem, size = 0x4, offset = 0x4, fixed_abs, tag = 'smem constant byte address 0x4 - core index']
  #allocation1 [shape = 'u32[144,128]{1,0:T(1,128)}', space=vmem, size = 0x12000, scoped, tag = 'internal scratch']
  %s0 = inlined_call_operand.vmem [shape: f32[96,32], index: 0, kind: input, shape index: {}]
  %s1 = inlined_call_operand.vmem [shape: f32[32,32], index: 1, kind: input, shape index: {}]
  %s2 = inlined_call_operand.vmem [shape: f32[1,32], index: 2, kind: input, shape index: {}]
  %s3 = inlined_call_operand.vmem [shape: f32[1,32], index: 3, kind: input, shape index: {}]
  %s4 = inlined_call_operand.vmem [shape: f32[1,32], index: 4, kind: input, shape index: {}]
  %s5 = inlined_call_operand.vmem [shape: f32[32,32], index: 5, kind: input, shape index: {}]
  %s6 = inlined_call_operand.vmem [shape: f32[1,32], index: 6, kind: input, shape index: {}]
  %s7 = inlined_call_operand.vmem [shape: f32[32,32], index: 7, kind: input, shape index: {}]
  %s8 = inlined_call_operand.vmem [shape: f32[1,32], index: 8, kind: input, shape index: {}]
  %s9 = inlined_call_operand.hbm [shape: f32[96,32], index: 9, kind: output, shape index: {}]
  %s10 = sld [smem:[#allocation0]]
  $region46: #{gat_layer_v2_forward.9} parent=0
    _
  %s12 = ssub.s32 1, %s10
  %s13 = scalar_select 0, %s12, %s10
  $region1: #{gat_layer_v2_forward.9} parent=0
    #allocation2 [shape = 'u8[49152]{0}', space=vmem, size = 0xc000, scoped, tag = 'output window, operand 0, single buffered']
    #allocation3 [shape = 's32[1]{0}', space=sflag, size = 0x4, scoped, tag = 'scoped memory for gat_layer_v2_forward.9']
    %14 = vsyncpa [#allocation3], 0
    // Predicated region
    $region2: #{gat_layer_v2_forward.9} parent=1 // pred_check
      _
    $region3: #{gat_layer_v2_forward.9} parent=1 // pred_check_branch
      %16 = sbr.rel (0) target = $region5
    $region4: #{gat_layer_v2_forward.9} parent=1 // pred_region
      _
    $region5: #{gat_layer_v2_forward.9} parent=1 // pred_fallthru
      _
    // Predicated region
    $region6: #{gat_layer_v2_forward.9} parent=1 // pred_check
      _
    $region7: #{gat_layer_v2_forward.9} parent=1 // pred_check_branch
      %18 = sbr.rel (0) target = $region9
    $region8: #{gat_layer_v2_forward.9} parent=1 // pred_region
      _
    $region9: #{gat_layer_v2_forward.9} parent=1 // pred_fallthru
      _
    // Predicated region
    $region10: #{gat_layer_v2_forward.9} parent=1 // pred_check
      _
    $region11: #{gat_layer_v2_forward.9} parent=1 // pred_check_branch
      %20 = sbr.rel (0) target = $region13
    $region12: #{gat_layer_v2_forward.9} parent=1 // pred_region
      _
    $region13: #{gat_layer_v2_forward.9} parent=1 // pred_fallthru
      _
    // Predicated region
    $region14: #{gat_layer_v2_forward.9} parent=1 // pred_check
      _
    $region15: #{gat_layer_v2_forward.9} parent=1 // pred_check_branch
      %22 = sbr.rel (0) target = $region17
    $region16: #{gat_layer_v2_forward.9} parent=1 // pred_region
      _
    $region17: #{gat_layer_v2_forward.9} parent=1 // pred_fallthru
      _
    // Predicated region
    $region18: #{gat_layer_v2_forward.9} parent=1 // pred_check
      _
    $region19: #{gat_layer_v2_forward.9} parent=1 // pred_check_branch
      %24 = sbr.rel (0) target = $region21
    $region20: #{gat_layer_v2_forward.9} parent=1 // pred_region
      _
    $region21: #{gat_layer_v2_forward.9} parent=1 // pred_fallthru
      _
    // Predicated region
    $region22: #{gat_layer_v2_forward.9} parent=1 // pred_check
      _
    $region23: #{gat_layer_v2_forward.9} parent=1 // pred_check_branch
      %26 = sbr.rel (0) target = $region25
    $region24: #{gat_layer_v2_forward.9} parent=1 // pred_region
      _
    $region25: #{gat_layer_v2_forward.9} parent=1 // pred_fallthru
      _
    // Predicated region
    $region26: #{gat_layer_v2_forward.9} parent=1 // pred_check
      _
    $region27: #{gat_layer_v2_forward.9} parent=1 // pred_check_branch
      %28 = sbr.rel (0) target = $region29
    $region28: #{gat_layer_v2_forward.9} parent=1 // pred_region
      _
    $region29: #{gat_layer_v2_forward.9} parent=1 // pred_fallthru
      _
    // Predicated region
    $region30: #{gat_layer_v2_forward.9} parent=1 // pred_check
      _
    $region31: #{gat_layer_v2_forward.9} parent=1 // pred_check_branch
      %30 = sbr.rel (0) target = $region33
    $region32: #{gat_layer_v2_forward.9} parent=1 // pred_region
      _
    $region33: #{gat_layer_v2_forward.9} parent=1 // pred_fallthru
      _
    // Predicated region
    $region34: #{gat_layer_v2_forward.9} parent=1 // pred_check
      _
    $region35: #{gat_layer_v2_forward.9} parent=1 // pred_check_branch
      %32 = sbr.rel (0) target = $region37
    $region36: #{gat_layer_v2_forward.9} parent=1 // pred_region
      _
    $region37: #{gat_layer_v2_forward.9} parent=1 // pred_fallthru
      _
    %v33 = vld [vmem:[%s0] sm:$0xff]
    %v34 = vld [vmem:[%s0 + $0x8] sm:$0xff]
    %v35 = vld [vmem:[%s0 + $0x10] sm:$0xff]
    %v36 = vld [vmem:[%s0 + $0x18] sm:$0xff]
    %v37 = vld [vmem:[%s0 + $0x20] sm:$0xff]
    %v38 = vld [vmem:[%s0 + $0x28] sm:$0xff]
    %v39 = vld [vmem:[%s0 + $0x30] sm:$0xff]
    %v40 = vld [vmem:[%s0 + $0x38] sm:$0xff]
    %v41 = vld [vmem:[%s0 + $0x40] sm:$0xff]
    %v42 = vld [vmem:[%s0 + $0x48] sm:$0xff]
    %v43 = vld [vmem:[%s0 + $0x50] sm:$0xff]
    %v44 = vld [vmem:[%s0 + $0x58] sm:$0xff]
    %v45 = vld [vmem:[%s1] sm:$0xff]
    %v46 = vld [vmem:[%s1 + $0x8] sm:$0xff]
    %v47 = vld [vmem:[%s1 + $0x10] sm:$0xff]
    %v48 = vld [vmem:[%s1 + $0x18] sm:$0xff]
    %v49 = vld [vmem:[%s2] sm:$0x1]
    %v51 = vlaneseq
    %v52 = vshrl.u32 %v51, 7
    %v53 = vsub.s32 0, %v52
    %v54 = vrot.slane %v49, %v53
    %vm56 = vcmask 261120
    %v58 = vsel %vm56, %v33, 0
    %v61 = vsel %vm56, %v34, 0
    %v64 = vsel %vm56, %v35, 0
    %v67 = vsel %vm56, %v36, 0
    %v70 = vsel %vm56, %v37, 0
    %v73 = vsel %vm56, %v38, 0
    %v76 = vsel %vm56, %v39, 0
    %v79 = vsel %vm56, %v40, 0
    %v82 = vsel %vm56, %v41, 0
    %v85 = vsel %vm56, %v42, 0
    %v88 = vsel %vm56, %v43, 0
    %v91 = vsel %vm56, %v44, 0
    %93 = vmatprep.subr.mxu0 0.0
    %94 = vmatpush1.msra.mxu0 %v45
    %95 = vmatprep.subr.mxu0 0.0
    %96 = vmatpush1.msra.mxu0 %v46
    %97 = vmatprep.subr.mxu0 0.0
    %98 = vmatpush1.msra.mxu0 %v47
    %99 = vmatprep.subr.mxu0 0.0
    %100 = vmatpush1.msra.mxu0 %v48
    %101 = vmatprep.subr.mxu0 0.0
    %102 = vmatpush1.msra.mxu0 0.0
    %103 = vmatprep.subr.mxu0 0.0
    %104 = vmatpush1.msra.mxu0 0.0
    %105 = vmatprep.subr.mxu0 0.0
    %106 = vmatpush1.msra.mxu0 0.0
    %107 = vmatprep.subr.mxu0 0.0
    %108 = vmatpush1.msra.mxu0 0.0
    %109 = vmatprep.subr.mxu0 0.0
    %110 = vmatpush1.msra.mxu0 0.0
    %111 = vmatprep.subr.mxu0 0.0
    %112 = vmatpush1.msra.mxu0 0.0
    %113 = vmatprep.subr.mxu0 0.0
    %114 = vmatpush1.msra.mxu0 0.0
    %115 = vmatprep.subr.mxu0 0.0
    %116 = vmatpush1.msra.mxu0 0.0
    %117 = vmatprep.subr.mxu0 0.0
    %118 = vmatpush1.msra.mxu0 0.0
    %119 = vmatprep.subr.mxu0 0.0
    %120 = vmatpush1.msra.mxu0 0.0
    %121 = vmatprep.subr.mxu0 0.0
    %122 = vmatpush1.msra.mxu0 0.0
    %123 = vmatprep.subr.mxu0 0.0
    %124 = vmatpush1.msra.mxu0 0.0
    %125 = vmatprep.subr.mxu0 0.0
    %126 = vmatpush1.msra.mxu0 0.0
    %127 = vmatprep.subr.mxu0 0.0
    %128 = vmatpush1.msra.mxu0 0.0
    %129 = vmatprep.subr.mxu0 0.0
    %130 = vmatpush1.msra.mxu0 0.0
    %131 = vmatprep.subr.mxu0 0.0
    %132 = vmatpush1.msra.mxu0 0.0
    %133 = vmatprep.subr.mxu0 0.0
    %134 = vmatpush1.msra.mxu0 0.0
    %135 = vmatprep.subr.mxu0 0.0
    %136 = vmatpush1.msra.mxu0 0.0
    %137 = vmatprep.subr.mxu0 0.0
    %138 = vmatpush1.msra.mxu0 0.0
    %139 = vmatprep.subr.mxu0 0.0
    %140 = vmatpush1.msra.mxu0 0.0
    %141 = vmatprep.subr.mxu0 0.0
    %142 = vmatpush1.msra.mxu0 0.0
    %143 = vmatprep.subr.mxu0 0.0
    %144 = vmatpush1.msra.mxu0 0.0
    %145 = vmatprep.subr.mxu0 0.0
    %146 = vmatpush1.msra.mxu0 0.0
    %147 = vmatprep.subr.mxu0 0.0
    %148 = vmatpush1.msra.mxu0 0.0
    %149 = vmatprep.subr.mxu0 0.0
    %150 = vmatpush1.msra.mxu0 0.0
    %151 = vmatprep.subr.mxu0 0.0
    %152 = vmatpush1.msra.mxu0 0.0
    %153 = vmatprep.subr.mxu0 0.0
    %154 = vmatpush1.msra.mxu0 0.0
    %155 = vmatprep.subr.mxu0 0.0
    %156 = vmatpush1.msra.mxu0 0.0
    %157 = vmatprep.mubr.f32.mxu0 0.0
    %158 = vmatmul.mubr.f32.gmra.mrb[0].mxu0 %v58
    %v159 = vpop.f32.mrb[0].mxu0
    %v160 = vadd.f32 %v54, %v159
    %v161 = vpop.f32.mrb[0].mxu0
    %162 = vmatprep.mubr.f32.mxu0 0.0
    %163 = vmatmul.mubr.f32.gmra.mrb[0].mxu0 %v61
    %v164 = vpop.f32.mrb[0].mxu0
    %v165 = vadd.f32 %v54, %v164
    %v166 = vpop.f32.mrb[0].mxu0
    %167 = vmatprep.mubr.f32.mxu0 0.0
    %168 = vmatmul.mubr.f32.gmra.mrb[0].mxu0 %v64
    %v169 = vpop.f32.mrb[0].mxu0
    %v170 = vadd.f32 %v54, %v169
    %v171 = vpop.f32.mrb[0].mxu0
    %172 = vmatprep.mubr.f32.mxu0 0.0
    %173 = vmatmul.mubr.f32.gmra.mrb[0].mxu0 %v67
    %v174 = vpop.f32.mrb[0].mxu0
    %v175 = vadd.f32 %v54, %v174
    %v176 = vpop.f32.mrb[0].mxu0
    %177 = vmatprep.mubr.f32.mxu0 0.0
    %178 = vmatmul.mubr.f32.gmra.mrb[0].mxu0 %v70
    %v179 = vpop.f32.mrb[0].mxu0
    %v180 = vadd.f32 %v54, %v179
    %v181 = vpop.f32.mrb[0].mxu0
    %182 = vmatprep.mubr.f32.mxu0 0.0
    %183 = vmatmul.mubr.f32.gmra.mrb[0].mxu0 %v73
    %v184 = vpop.f32.mrb[0].mxu0
    %v185 = vadd.f32 %v54, %v184
    %v186 = vpop.f32.mrb[0].mxu0
    %187 = vmatprep.mubr.f32.mxu0 0.0
    %188 = vmatmul.mubr.f32.gmra.mrb[0].mxu0 %v76
    %v189 = vpop.f32.mrb[0].mxu0
    %v190 = vadd.f32 %v54, %v189
    %v191 = vpop.f32.mrb[0].mxu0
    %192 = vmatprep.mubr.f32.mxu0 0.0
    %193 = vmatmul.mubr.f32.gmra.mrb[0].mxu0 %v79
    %v194 = vpop.f32.mrb[0].mxu0
    %v195 = vadd.f32 %v54, %v194
    %v196 = vpop.f32.mrb[0].mxu0
    %197 = vmatprep.mubr.f32.mxu0 0.0
    %198 = vmatmul.mubr.f32.gmra.mrb[0].mxu0 %v82
    %v199 = vpop.f32.mrb[0].mxu0
    %v200 = vadd.f32 %v54, %v199
    %v201 = vpop.f32.mrb[0].mxu0
    %202 = vmatprep.mubr.f32.mxu0 0.0
    %203 = vmatmul.mubr.f32.gmra.mrb[0].mxu0 %v85
    %v204 = vpop.f32.mrb[0].mxu0
    %v205 = vadd.f32 %v54, %v204
    %v206 = vpop.f32.mrb[0].mxu0
    %207 = vmatprep.mubr.f32.mxu0 0.0
    %208 = vmatmul.mubr.f32.gmra.mrb[0].mxu0 %v88
    %v209 = vpop.f32.mrb[0].mxu0
    %v210 = vadd.f32 %v54, %v209
    %v211 = vpop.f32.mrb[0].mxu0
    %212 = vmatprep.mubr.f32.mxu0 0.0
    %213 = vmatmul.mubr.f32.gmra.mrb[0].mxu0 %v91
    %v214 = vpop.f32.mrb[0].mxu0
    %v215 = vadd.f32 %v54, %v214
    %v216 = vpop.f32.mrb[0].mxu0
    %217 = vdwg.mxu0
    %v218 = vsel %vm56, %v160, 0.0
    %219 = vadd.xlane.f32.xlu0 %v218
    %v220 = vpop.xlane.xlu0 %219
    %v221 = vsel %vm56, %v165, 0.0
    %222 = vadd.xlane.f32.xlu0 %v221
    %v223 = vpop.xlane.xlu0 %222
    %v224 = vsel %vm56, %v170, 0.0
    %225 = vadd.xlane.f32.xlu0 %v224
    %v226 = vpop.xlane.xlu0 %225
    %v227 = vsel %vm56, %v175, 0.0
    %228 = vadd.xlane.f32.xlu0 %v227
    %v229 = vpop.xlane.xlu0 %228
    %v230 = vsel %vm56, %v180, 0.0
    %231 = vadd.xlane.f32.xlu0 %v230
    %v232 = vpop.xlane.xlu0 %231
    %v233 = vsel %vm56, %v185, 0.0
    %234 = vadd.xlane.f32.xlu0 %v233
    %v235 = vpop.xlane.xlu0 %234
    %v236 = vsel %vm56, %v190, 0.0
    %237 = vadd.xlane.f32.xlu0 %v236
    %v238 = vpop.xlane.xlu0 %237
    %v239 = vsel %vm56, %v195, 0.0
    %240 = vadd.xlane.f32.xlu0 %v239
    %v241 = vpop.xlane.xlu0 %240
    %v242 = vsel %vm56, %v200, 0.0
    %243 = vadd.xlane.f32.xlu0 %v242
    %v244 = vpop.xlane.xlu0 %243
    %v245 = vsel %vm56, %v205, 0.0
    %246 = vadd.xlane.f32.xlu0 %v245
    %v247 = vpop.xlane.xlu0 %246
    %v248 = vsel %vm56, %v210, 0.0
    %249 = vadd.xlane.f32.xlu0 %v248
    %v250 = vpop.xlane.xlu0 %249
    %v251 = vsel %vm56, %v215, 0.0
    %252 = vadd.xlane.f32.xlu0 %v251
    %v253 = vpop.xlane.xlu0 %252
    %v254 = vrcp.pop 32.0
    %v255 = vmul.f32 %v220, %v254
    %v256 = vmul.f32 %v223, %v254
    %v257 = vmul.f32 %v226, %v254
    %v258 = vmul.f32 %v229, %v254
    %v259 = vmul.f32 %v232, %v254
    %v260 = vmul.f32 %v235, %v254
    %v261 = vmul.f32 %v238, %v254
    %v262 = vmul.f32 %v241, %v254
    %v263 = vmul.f32 %v244, %v254
    %v264 = vmul.f32 %v247, %v254
    %v265 = vmul.f32 %v250, %v254
    %v266 = vmul.f32 %v253, %v254
    %v267 = vsub.f32 %v160, %v255
    %v268 = vsub.f32 %v165, %v256
    %v269 = vsub.f32 %v170, %v257
    %v270 = vsub.f32 %v175, %v258
    %v271 = vsub.f32 %v180, %v259
    %v272 = vsub.f32 %v185, %v260
    %v273 = vsub.f32 %v190, %v261
    %v274 = vsub.f32 %v195, %v262
    %v275 = vsub.f32 %v200, %v263
    %v276 = vsub.f32 %v205, %v264
    %v277 = vsub.f32 %v210, %v265
    %v278 = vsub.f32 %v215, %v266
    %v279 = vmul.f32 %v267, %v267
    %v280 = vmul.f32 %v268, %v268
    %v281 = vmul.f32 %v269, %v269
    %v282 = vmul.f32 %v270, %v270
    %v283 = vmul.f32 %v271, %v271
    %v284 = vmul.f32 %v272, %v272
    %v285 = vmul.f32 %v273, %v273
    %v286 = vmul.f32 %v274, %v274
    %v287 = vmul.f32 %v275, %v275
    %v288 = vmul.f32 %v276, %v276
    %v289 = vmul.f32 %v277, %v277
    %v290 = vmul.f32 %v278, %v278
    %v291 = vsel %vm56, %v279, 0.0
    %292 = vadd.xlane.f32.xlu0 %v291
    %v293 = vpop.xlane.xlu0 %292
    %v294 = vsel %vm56, %v280, 0.0
    %295 = vadd.xlane.f32.xlu0 %v294
    %v296 = vpop.xlane.xlu0 %295
    %v297 = vsel %vm56, %v281, 0.0
    %298 = vadd.xlane.f32.xlu0 %v297
    %v299 = vpop.xlane.xlu0 %298
    %v300 = vsel %vm56, %v282, 0.0
    %301 = vadd.xlane.f32.xlu0 %v300
    %v302 = vpop.xlane.xlu0 %301
    %v303 = vsel %vm56, %v283, 0.0
    %304 = vadd.xlane.f32.xlu0 %v303
    %v305 = vpop.xlane.xlu0 %304
    %v306 = vsel %vm56, %v284, 0.0
    %307 = vadd.xlane.f32.xlu0 %v306
    %v308 = vpop.xlane.xlu0 %307
    %v309 = vsel %vm56, %v285, 0.0
    %310 = vadd.xlane.f32.xlu0 %v309
    %v311 = vpop.xlane.xlu0 %310
    %v312 = vsel %vm56, %v286, 0.0
    %313 = vadd.xlane.f32.xlu0 %v312
    %v314 = vpop.xlane.xlu0 %313
    %v315 = vsel %vm56, %v287, 0.0
    %316 = vadd.xlane.f32.xlu0 %v315
    %v317 = vpop.xlane.xlu0 %316
    %v318 = vsel %vm56, %v288, 0.0
    %319 = vadd.xlane.f32.xlu0 %v318
    %v320 = vpop.xlane.xlu0 %319
    %v321 = vsel %vm56, %v289, 0.0
    %322 = vadd.xlane.f32.xlu0 %v321
    %v323 = vpop.xlane.xlu0 %322
    %v324 = vsel %vm56, %v290, 0.0
    %325 = vadd.xlane.f32.xlu0 %v324
    %v326 = vpop.xlane.xlu0 %325
    %v327 = vmul.f32 %v293, %v254
    %v328 = vmul.f32 %v296, %v254
    %v329 = vmul.f32 %v299, %v254
    %v330 = vmul.f32 %v302, %v254
    %v331 = vmul.f32 %v305, %v254
    %v332 = vmul.f32 %v308, %v254
    %v333 = vmul.f32 %v311, %v254
    %v334 = vmul.f32 %v314, %v254
    %v335 = vmul.f32 %v317, %v254
    %v336 = vmul.f32 %v320, %v254
    %v337 = vmul.f32 %v323, %v254
    %v338 = vmul.f32 %v326, %v254
    %v339 = vadd.f32 %v327, 1e-05
    %v340 = vadd.f32 %v328, 1e-05
    %v341 = vadd.f32 %v329, 1e-05
    %v342 = vadd.f32 %v330, 1e-05
    %v343 = vadd.f32 %v331, 1e-05
    %v344 = vadd.f32 %v332, 1e-05
    %v345 = vadd.f32 %v333, 1e-05
    %v346 = vadd.f32 %v334, 1e-05
    %v347 = vadd.f32 %v335, 1e-05
    %v348 = vadd.f32 %v336, 1e-05
    %v349 = vadd.f32 %v337, 1e-05
    %v350 = vadd.f32 %v338, 1e-05
    %v351 = vrsqrt.pop %v339
    %v352 = vrsqrt.pop %v340
    %v353 = vrsqrt.pop %v341
    %v354 = vrsqrt.pop %v342
    %v355 = vrsqrt.pop %v343
    %v356 = vrsqrt.pop %v344
    %v357 = vrsqrt.pop %v345
    %v358 = vrsqrt.pop %v346
    %v359 = vrsqrt.pop %v347
    %v360 = vrsqrt.pop %v348
    %v361 = vrsqrt.pop %v349
    %v362 = vrsqrt.pop %v350
    %v363 = vmul.f32 %v267, %v351
    %v364 = vmul.f32 %v268, %v352
    %v365 = vmul.f32 %v269, %v353
    %v366 = vmul.f32 %v270, %v354
    %v367 = vmul.f32 %v271, %v355
    %v368 = vmul.f32 %v272, %v356
    %v369 = vmul.f32 %v273, %v357
    %v370 = vmul.f32 %v274, %v358
    %v371 = vmul.f32 %v275, %v359
    %v372 = vmul.f32 %v276, %v360
    %v373 = vmul.f32 %v277, %v361
    %v374 = vmul.f32 %v278, %v362
    %v375 = vld [vmem:[%s3] sm:$0x1]
    %v377 = vlaneseq
    %v378 = vshrl.u32 %v377, 7
    %v379 = vsub.s32 0, %v378
    %v380 = vrot.slane %v375, %v379
    %v382 = vmul.f32 %v363, %v380
    %v383 = vmul.f32 %v364, %v380
    %v384 = vmul.f32 %v365, %v380
    %v385 = vmul.f32 %v366, %v380
    %v386 = vmul.f32 %v367, %v380
    %v387 = vmul.f32 %v368, %v380
    %v388 = vmul.f32 %v369, %v380
    %v389 = vmul.f32 %v370, %v380
    %v390 = vmul.f32 %v371, %v380
    %v391 = vmul.f32 %v372, %v380
    %v392 = vmul.f32 %v373, %v380
    %v393 = vmul.f32 %v374, %v380
    %v394 = vld [vmem:[%s4] sm:$0x1]
    %v396 = vlaneseq
    %v397 = vshrl.u32 %v396, 7
    %v398 = vsub.s32 0, %v397
    %v399 = vrot.slane %v394, %v398
    %v401 = vadd.f32 %v382, %v399
    %v402 = vadd.f32 %v383, %v399
    %v403 = vadd.f32 %v384, %v399
    %v404 = vadd.f32 %v385, %v399
    %v405 = vadd.f32 %v386, %v399
    %v406 = vadd.f32 %v387, %v399
    %v407 = vadd.f32 %v388, %v399
    %v408 = vadd.f32 %v389, %v399
    %v409 = vadd.f32 %v390, %v399
    %v410 = vadd.f32 %v391, %v399
    %v411 = vadd.f32 %v392, %v399
    %v412 = vadd.f32 %v393, %v399
    %v413 = vld [vmem:[%s5] sm:$0xff]
    %v414 = vld [vmem:[%s5 + $0x8] sm:$0xff]
    %v415 = vld [vmem:[%s5 + $0x10] sm:$0xff]
    %v416 = vld [vmem:[%s5 + $0x18] sm:$0xff]
    %v417 = vld [vmem:[%s6] sm:$0x1]
    %v419 = vlaneseq
    %v420 = vshrl.u32 %v419, 7
    %v421 = vsub.s32 0, %v420
    %v422 = vrot.slane %v417, %v421
    %v425 = vsel %vm56, %v401, 0
    %v428 = vsel %vm56, %v402, 0
    %v431 = vsel %vm56, %v403, 0
    %v434 = vsel %vm56, %v404, 0
    %v437 = vsel %vm56, %v405, 0
    %v440 = vsel %vm56, %v406, 0
    %v443 = vsel %vm56, %v407, 0
    %v446 = vsel %vm56, %v408, 0
    %v449 = vsel %vm56, %v409, 0
    %v452 = vsel %vm56, %v410, 0
    %v455 = vsel %vm56, %v411, 0
    %v458 = vsel %vm56, %v412, 0
    %460 = vmatprep.subr.mxu0 0.0
    %461 = vmatpush1.msra.mxu0 %v413
    %462 = vmatprep.subr.mxu0 0.0
    %463 = vmatpush1.msra.mxu0 %v414
    %464 = vmatprep.subr.mxu0 0.0
    %465 = vmatpush1.msra.mxu0 %v415
    %466 = vmatprep.subr.mxu0 0.0
    %467 = vmatpush1.msra.mxu0 %v416
    %468 = vmatprep.subr.mxu0 0.0
    %469 = vmatpush1.msra.mxu0 0.0
    %470 = vmatprep.subr.mxu0 0.0
    %471 = vmatpush1.msra.mxu0 0.0
    %472 = vmatprep.subr.mxu0 0.0
    %473 = vmatpush1.msra.mxu0 0.0
    %474 = vmatprep.subr.mxu0 0.0
    %475 = vmatpush1.msra.mxu0 0.0
    %476 = vmatprep.subr.mxu0 0.0
    %477 = vmatpush1.msra.mxu0 0.0
    %478 = vmatprep.subr.mxu0 0.0
    %479 = vmatpush1.msra.mxu0 0.0
    %480 = vmatprep.subr.mxu0 0.0
    %481 = vmatpush1.msra.mxu0 0.0
    %482 = vmatprep.subr.mxu0 0.0
    %483 = vmatpush1.msra.mxu0 0.0
    %484 = vmatprep.subr.mxu0 0.0
    %485 = vmatpush1.msra.mxu0 0.0
    %486 = vmatprep.subr.mxu0 0.0
    %487 = vmatpush1.msra.mxu0 0.0
    %488 = vmatprep.subr.mxu0 0.0
    %489 = vmatpush1.msra.mxu0 0.0
    %490 = vmatprep.subr.mxu0 0.0
    %491 = vmatpush1.msra.mxu0 0.0
    %492 = vmatprep.subr.mxu0 0.0
    %493 = vmatpush1.msra.mxu0 0.0
    %494 = vmatprep.subr.mxu0 0.0
    %495 = vmatpush1.msra.mxu0 0.0
    %496 = vmatprep.subr.mxu0 0.0
    %497 = vmatpush1.msra.mxu0 0.0
    %498 = vmatprep.subr.mxu0 0.0
    %499 = vmatpush1.msra.mxu0 0.0
    %500 = vmatprep.subr.mxu0 0.0
    %501 = vmatpush1.msra.mxu0 0.0
    %502 = vmatprep.subr.mxu0 0.0
    %503 = vmatpush1.msra.mxu0 0.0
    %504 = vmatprep.subr.mxu0 0.0
    %505 = vmatpush1.msra.mxu0 0.0
    %506 = vmatprep.subr.mxu0 0.0
    %507 = vmatpush1.msra.mxu0 0.0
    %508 = vmatprep.subr.mxu0 0.0
    %509 = vmatpush1.msra.mxu0 0.0
    %510 = vmatprep.subr.mxu0 0.0
    %511 = vmatpush1.msra.mxu0 0.0
    %512 = vmatprep.subr.mxu0 0.0
    %513 = vmatpush1.msra.mxu0 0.0
    %514 = vmatprep.subr.mxu0 0.0
    %515 = vmatpush1.msra.mxu0 0.0
    %516 = vmatprep.subr.mxu0 0.0
    %517 = vmatpush1.msra.mxu0 0.0
    %518 = vmatprep.subr.mxu0 0.0
    %519 = vmatpush1.msra.mxu0 0.0
    %520 = vmatprep.subr.mxu0 0.0
    %521 = vmatpush1.msra.mxu0 0.0
    %522 = vmatprep.subr.mxu0 0.0
    %523 = vmatpush1.msra.mxu0 0.0
    %524 = vmatprep.mubr.f32.mxu0 0.0
    %525 = vmatmul.mubr.f32.gmra.mrb[0].mxu0 %v425
    %v526 = vpop.f32.mrb[0].mxu0
    %v527 = vadd.f32 %v422, %v526
    %v528 = vpop.f32.mrb[0].mxu0
    %529 = vmatprep.mubr.f32.mxu0 0.0
    %530 = vmatmul.mubr.f32.gmra.mrb[0].mxu0 %v428
    %v531 = vpop.f32.mrb[0].mxu0
    %v532 = vadd.f32 %v422, %v531
    %v533 = vpop.f32.mrb[0].mxu0
    %534 = vmatprep.mubr.f32.mxu0 0.0
    %535 = vmatmul.mubr.f32.gmra.mrb[0].mxu0 %v431
    %v536 = vpop.f32.mrb[0].mxu0
    %v537 = vadd.f32 %v422, %v536
    %v538 = vpop.f32.mrb[0].mxu0
    %539 = vmatprep.mubr.f32.mxu0 0.0
    %540 = vmatmul.mubr.f32.gmra.mrb[0].mxu0 %v434
    %v541 = vpop.f32.mrb[0].mxu0
    %v542 = vadd.f32 %v422, %v541
    %v543 = vpop.f32.mrb[0].mxu0
    %544 = vmatprep.mubr.f32.mxu0 0.0
    %545 = vmatmul.mubr.f32.gmra.mrb[0].mxu0 %v437
    %v546 = vpop.f32.mrb[0].mxu0
    %v547 = vadd.f32 %v422, %v546
    %v548 = vpop.f32.mrb[0].mxu0
    %549 = vmatprep.mubr.f32.mxu0 0.0
    %550 = vmatmul.mubr.f32.gmra.mrb[0].mxu0 %v440
    %v551 = vpop.f32.mrb[0].mxu0
    %v552 = vadd.f32 %v422, %v551
    %v553 = vpop.f32.mrb[0].mxu0
    %554 = vmatprep.mubr.f32.mxu0 0.0
    %555 = vmatmul.mubr.f32.gmra.mrb[0].mxu0 %v443
    %v556 = vpop.f32.mrb[0].mxu0
    %v557 = vadd.f32 %v422, %v556
    %v558 = vpop.f32.mrb[0].mxu0
    %559 = vmatprep.mubr.f32.mxu0 0.0
    %560 = vmatmul.mubr.f32.gmra.mrb[0].mxu0 %v446
    %v561 = vpop.f32.mrb[0].mxu0
    %v562 = vadd.f32 %v422, %v561
    %v563 = vpop.f32.mrb[0].mxu0
    %564 = vmatprep.mubr.f32.mxu0 0.0
    %565 = vmatmul.mubr.f32.gmra.mrb[0].mxu0 %v449
    %v566 = vpop.f32.mrb[0].mxu0
    %v567 = vadd.f32 %v422, %v566
    %v568 = vpop.f32.mrb[0].mxu0
    %569 = vmatprep.mubr.f32.mxu0 0.0
    %570 = vmatmul.mubr.f32.gmra.mrb[0].mxu0 %v452
    %v571 = vpop.f32.mrb[0].mxu0
    %v572 = vadd.f32 %v422, %v571
    %v573 = vpop.f32.mrb[0].mxu0
    %574 = vmatprep.mubr.f32.mxu0 0.0
    %575 = vmatmul.mubr.f32.gmra.mrb[0].mxu0 %v455
    %v576 = vpop.f32.mrb[0].mxu0
    %v577 = vadd.f32 %v422, %v576
    %v578 = vpop.f32.mrb[0].mxu0
    %579 = vmatprep.mubr.f32.mxu0 0.0
    %580 = vmatmul.mubr.f32.gmra.mrb[0].mxu0 %v458
    %v581 = vpop.f32.mrb[0].mxu0
    %v582 = vadd.f32 %v422, %v581
    %v583 = vpop.f32.mrb[0].mxu0
    %584 = vdwg.mxu0
    %v585 = vmax.f32 %v527, 0.0
    %v586 = vmax.f32 %v532, 0.0
    %v587 = vmax.f32 %v537, 0.0
    %v588 = vmax.f32 %v542, 0.0
    %v589 = vmax.f32 %v547, 0.0
    %v590 = vmax.f32 %v552, 0.0
    %v591 = vmax.f32 %v557, 0.0
    %v592 = vmax.f32 %v562, 0.0
    %v593 = vmax.f32 %v567, 0.0
    %v594 = vmax.f32 %v572, 0.0
    %v595 = vmax.f32 %v577, 0.0
    %v596 = vmax.f32 %v582, 0.0
    %v597 = vld [vmem:[%s7] sm:$0xff]
    %v598 = vld [vmem:[%s7 + $0x8] sm:$0xff]
    %v599 = vld [vmem:[%s7 + $0x10] sm:$0xff]
    %v600 = vld [vmem:[%s7 + $0x18] sm:$0xff]
    %v601 = vld [vmem:[%s8] sm:$0x1]
    %v603 = vlaneseq
    %v604 = vshrl.u32 %v603, 7
    %v605 = vsub.s32 0, %v604
    %v606 = vrot.slane %v601, %v605
    %v609 = vsel %vm56, %v585, 0
    %v612 = vsel %vm56, %v586, 0
    %v615 = vsel %vm56, %v587, 0
    %v618 = vsel %vm56, %v588, 0
    %v621 = vsel %vm56, %v589, 0
    %v624 = vsel %vm56, %v590, 0
    %v627 = vsel %vm56, %v591, 0
    %v630 = vsel %vm56, %v592, 0
    %v633 = vsel %vm56, %v593, 0
    %v636 = vsel %vm56, %v594, 0
    %v639 = vsel %vm56, %v595, 0
    %v642 = vsel %vm56, %v596, 0
    %644 = vmatprep.subr.mxu0 0.0
    %645 = vmatpush1.msra.mxu0 %v597
    %646 = vmatprep.subr.mxu0 0.0
    %647 = vmatpush1.msra.mxu0 %v598
    %648 = vmatprep.subr.mxu0 0.0
    %649 = vmatpush1.msra.mxu0 %v599
    %650 = vmatprep.subr.mxu0 0.0
    %651 = vmatpush1.msra.mxu0 %v600
    %652 = vmatprep.subr.mxu0 0.0
    %653 = vmatpush1.msra.mxu0 0.0
    %654 = vmatprep.subr.mxu0 0.0
    %655 = vmatpush1.msra.mxu0 0.0
    %656 = vmatprep.subr.mxu0 0.0
    %657 = vmatpush1.msra.mxu0 0.0
    %658 = vmatprep.subr.mxu0 0.0
    %659 = vmatpush1.msra.mxu0 0.0
    %660 = vmatprep.subr.mxu0 0.0
    %661 = vmatpush1.msra.mxu0 0.0
    %662 = vmatprep.subr.mxu0 0.0
    %663 = vmatpush1.msra.mxu0 0.0
    %664 = vmatprep.subr.mxu0 0.0
    %665 = vmatpush1.msra.mxu0 0.0
    %666 = vmatprep.subr.mxu0 0.0
    %667 = vmatpush1.msra.mxu0 0.0
    %668 = vmatprep.subr.mxu0 0.0
    %669 = vmatpush1.msra.mxu0 0.0
    %670 = vmatprep.subr.mxu0 0.0
    %671 = vmatpush1.msra.mxu0 0.0
    %672 = vmatprep.subr.mxu0 0.0
    %673 = vmatpush1.msra.mxu0 0.0
    %674 = vmatprep.subr.mxu0 0.0
    %675 = vmatpush1.msra.mxu0 0.0
    %676 = vmatprep.subr.mxu0 0.0
    %677 = vmatpush1.msra.mxu0 0.0
    %678 = vmatprep.subr.mxu0 0.0
    %679 = vmatpush1.msra.mxu0 0.0
    %680 = vmatprep.subr.mxu0 0.0
    %681 = vmatpush1.msra.mxu0 0.0
    %682 = vmatprep.subr.mxu0 0.0
    %683 = vmatpush1.msra.mxu0 0.0
    %684 = vmatprep.subr.mxu0 0.0
    %685 = vmatpush1.msra.mxu0 0.0
    %686 = vmatprep.subr.mxu0 0.0
    %687 = vmatpush1.msra.mxu0 0.0
    %688 = vmatprep.subr.mxu0 0.0
    %689 = vmatpush1.msra.mxu0 0.0
    %690 = vmatprep.subr.mxu0 0.0
    %691 = vmatpush1.msra.mxu0 0.0
    %692 = vmatprep.subr.mxu0 0.0
    %693 = vmatpush1.msra.mxu0 0.0
    %694 = vmatprep.subr.mxu0 0.0
    %695 = vmatpush1.msra.mxu0 0.0
    %696 = vmatprep.subr.mxu0 0.0
    %697 = vmatpush1.msra.mxu0 0.0
    %698 = vmatprep.subr.mxu0 0.0
    %699 = vmatpush1.msra.mxu0 0.0
    %700 = vmatprep.subr.mxu0 0.0
    %701 = vmatpush1.msra.mxu0 0.0
    %702 = vmatprep.subr.mxu0 0.0
    %703 = vmatpush1.msra.mxu0 0.0
    %704 = vmatprep.subr.mxu0 0.0
    %705 = vmatpush1.msra.mxu0 0.0
    %706 = vmatprep.subr.mxu0 0.0
    %707 = vmatpush1.msra.mxu0 0.0
    %708 = vmatprep.mubr.f32.mxu0 0.0
    %709 = vmatmul.mubr.f32.gmra.mrb[0].mxu0 %v609
    %v710 = vpop.f32.mrb[0].mxu0
    %v711 = vadd.f32 %v606, %v710
    %v712 = vpop.f32.mrb[0].mxu0
    %713 = vmatprep.mubr.f32.mxu0 0.0
    %714 = vmatmul.mubr.f32.gmra.mrb[0].mxu0 %v612
    %v715 = vpop.f32.mrb[0].mxu0
    %v716 = vadd.f32 %v606, %v715
    %v717 = vpop.f32.mrb[0].mxu0
    %718 = vmatprep.mubr.f32.mxu0 0.0
    %719 = vmatmul.mubr.f32.gmra.mrb[0].mxu0 %v615
    %v720 = vpop.f32.mrb[0].mxu0
    %v721 = vadd.f32 %v606, %v720
    %v722 = vpop.f32.mrb[0].mxu0
    %723 = vmatprep.mubr.f32.mxu0 0.0
    %724 = vmatmul.mubr.f32.gmra.mrb[0].mxu0 %v618
    %v725 = vpop.f32.mrb[0].mxu0
    %v726 = vadd.f32 %v606, %v725
    %v727 = vpop.f32.mrb[0].mxu0
    %728 = vmatprep.mubr.f32.mxu0 0.0
    %729 = vmatmul.mubr.f32.gmra.mrb[0].mxu0 %v621
    %v730 = vpop.f32.mrb[0].mxu0
    %v731 = vadd.f32 %v606, %v730
    %v732 = vpop.f32.mrb[0].mxu0
    %733 = vmatprep.mubr.f32.mxu0 0.0
    %734 = vmatmul.mubr.f32.gmra.mrb[0].mxu0 %v624
    %v735 = vpop.f32.mrb[0].mxu0
    %v736 = vadd.f32 %v606, %v735
    %v737 = vpop.f32.mrb[0].mxu0
    %738 = vmatprep.mubr.f32.mxu0 0.0
    %739 = vmatmul.mubr.f32.gmra.mrb[0].mxu0 %v627
    %v740 = vpop.f32.mrb[0].mxu0
    %v741 = vadd.f32 %v606, %v740
    %v742 = vpop.f32.mrb[0].mxu0
    %743 = vmatprep.mubr.f32.mxu0 0.0
    %744 = vmatmul.mubr.f32.gmra.mrb[0].mxu0 %v630
    %v745 = vpop.f32.mrb[0].mxu0
    %v746 = vadd.f32 %v606, %v745
    %v747 = vpop.f32.mrb[0].mxu0
    %748 = vmatprep.mubr.f32.mxu0 0.0
    %749 = vmatmul.mubr.f32.gmra.mrb[0].mxu0 %v633
    %v750 = vpop.f32.mrb[0].mxu0
    %v751 = vadd.f32 %v606, %v750
    %v752 = vpop.f32.mrb[0].mxu0
    %753 = vmatprep.mubr.f32.mxu0 0.0
    %754 = vmatmul.mubr.f32.gmra.mrb[0].mxu0 %v636
    %v755 = vpop.f32.mrb[0].mxu0
    %v756 = vadd.f32 %v606, %v755
    %v757 = vpop.f32.mrb[0].mxu0
    %758 = vmatprep.mubr.f32.mxu0 0.0
    %759 = vmatmul.mubr.f32.gmra.mrb[0].mxu0 %v639
    %v760 = vpop.f32.mrb[0].mxu0
    %v761 = vadd.f32 %v606, %v760
    %v762 = vpop.f32.mrb[0].mxu0
    %763 = vmatprep.mubr.f32.mxu0 0.0
    %764 = vmatmul.mubr.f32.gmra.mrb[0].mxu0 %v642
    %v765 = vpop.f32.mrb[0].mxu0
    %v766 = vadd.f32 %v606, %v765
    %v767 = vpop.f32.mrb[0].mxu0
    %768 = vdwg.mxu0
    %v769 = vadd.f32 %v401, %v711
    %v770 = vadd.f32 %v402, %v716
    %v771 = vadd.f32 %v403, %v721
    %v772 = vadd.f32 %v404, %v726
    %v773 = vadd.f32 %v405, %v731
    %v774 = vadd.f32 %v406, %v736
    %v775 = vadd.f32 %v407, %v741
    %v776 = vadd.f32 %v408, %v746
    %v777 = vadd.f32 %v409, %v751
    %v778 = vadd.f32 %v410, %v756
    %v779 = vadd.f32 %v411, %v761
    %v780 = vadd.f32 %v412, %v766
    %v781 = vsel %vm56, %v769, 0.0
    %782 = vadd.xlane.f32.xlu0 %v781
    %v783 = vpop.xlane.xlu0 %782
    %v784 = vsel %vm56, %v770, 0.0
    %785 = vadd.xlane.f32.xlu0 %v784
    %v786 = vpop.xlane.xlu0 %785
    %v787 = vsel %vm56, %v771, 0.0
    %788 = vadd.xlane.f32.xlu0 %v787
    %v789 = vpop.xlane.xlu0 %788
    %v790 = vsel %vm56, %v772, 0.0
    %791 = vadd.xlane.f32.xlu0 %v790
    %v792 = vpop.xlane.xlu0 %791
    %v793 = vsel %vm56, %v773, 0.0
    %794 = vadd.xlane.f32.xlu0 %v793
    %v795 = vpop.xlane.xlu0 %794
    %v796 = vsel %vm56, %v774, 0.0
    %797 = vadd.xlane.f32.xlu0 %v796
    %v798 = vpop.xlane.xlu0 %797
    %v799 = vsel %vm56, %v775, 0.0
    %800 = vadd.xlane.f32.xlu0 %v799
    %v801 = vpop.xlane.xlu0 %800
    %v802 = vsel %vm56, %v776, 0.0
    %803 = vadd.xlane.f32.xlu0 %v802
    %v804 = vpop.xlane.xlu0 %803
    %v805 = vsel %vm56, %v777, 0.0
    %806 = vadd.xlane.f32.xlu0 %v805
    %v807 = vpop.xlane.xlu0 %806
    %v808 = vsel %vm56, %v778, 0.0
    %809 = vadd.xlane.f32.xlu0 %v808
    %v810 = vpop.xlane.xlu0 %809
    %v811 = vsel %vm56, %v779, 0.0
    %812 = vadd.xlane.f32.xlu0 %v811
    %v813 = vpop.xlane.xlu0 %812
    %v814 = vsel %vm56, %v780, 0.0
    %815 = vadd.xlane.f32.xlu0 %v814
    %v816 = vpop.xlane.xlu0 %815
    %v817 = vmul.f32 %v783, %v254
    %v818 = vmul.f32 %v786, %v254
    %v819 = vmul.f32 %v789, %v254
    %v820 = vmul.f32 %v792, %v254
    %v821 = vmul.f32 %v795, %v254
    %v822 = vmul.f32 %v798, %v254
    %v823 = vmul.f32 %v801, %v254
    %v824 = vmul.f32 %v804, %v254
    %v825 = vmul.f32 %v807, %v254
    %v826 = vmul.f32 %v810, %v254
    %v827 = vmul.f32 %v813, %v254
    %v828 = vmul.f32 %v816, %v254
    %v829 = vsub.f32 %v769, %v817
    %v830 = vsub.f32 %v770, %v818
    %v831 = vsub.f32 %v771, %v819
    %v832 = vsub.f32 %v772, %v820
    %v833 = vsub.f32 %v773, %v821
    %v834 = vsub.f32 %v774, %v822
    %v835 = vsub.f32 %v775, %v823
    %v836 = vsub.f32 %v776, %v824
    %v837 = vsub.f32 %v777, %v825
    %v838 = vsub.f32 %v778, %v826
    %v839 = vsub.f32 %v779, %v827
    %v840 = vsub.f32 %v780, %v828
    %v841 = vmul.f32 %v829, %v829
    %v842 = vmul.f32 %v830, %v830
    %v843 = vmul.f32 %v831, %v831
    %v844 = vmul.f32 %v832, %v832
    %v845 = vmul.f32 %v833, %v833
    %v846 = vmul.f32 %v834, %v834
    %v847 = vmul.f32 %v835, %v835
    %v848 = vmul.f32 %v836, %v836
    %v849 = vmul.f32 %v837, %v837
    %v850 = vmul.f32 %v838, %v838
    %v851 = vmul.f32 %v839, %v839
    %v852 = vmul.f32 %v840, %v840
    %v853 = vsel %vm56, %v841, 0.0
    %854 = vadd.xlane.f32.xlu0 %v853
    %v855 = vpop.xlane.xlu0 %854
    %v856 = vsel %vm56, %v842, 0.0
    %857 = vadd.xlane.f32.xlu0 %v856
    %v858 = vpop.xlane.xlu0 %857
    %v859 = vsel %vm56, %v843, 0.0
    %860 = vadd.xlane.f32.xlu0 %v859
    %v861 = vpop.xlane.xlu0 %860
    %v862 = vsel %vm56, %v844, 0.0
    %863 = vadd.xlane.f32.xlu0 %v862
    %v864 = vpop.xlane.xlu0 %863
    %v865 = vsel %vm56, %v845, 0.0
    %866 = vadd.xlane.f32.xlu0 %v865
    %v867 = vpop.xlane.xlu0 %866
    %v868 = vsel %vm56, %v846, 0.0
    %869 = vadd.xlane.f32.xlu0 %v868
    %v870 = vpop.xlane.xlu0 %869
    %v871 = vsel %vm56, %v847, 0.0
    %872 = vadd.xlane.f32.xlu0 %v871
    %v873 = vpop.xlane.xlu0 %872
    %v874 = vsel %vm56, %v848, 0.0
    %875 = vadd.xlane.f32.xlu0 %v874
    %v876 = vpop.xlane.xlu0 %875
    %v877 = vsel %vm56, %v849, 0.0
    %878 = vadd.xlane.f32.xlu0 %v877
    %v879 = vpop.xlane.xlu0 %878
    %v880 = vsel %vm56, %v850, 0.0
    %881 = vadd.xlane.f32.xlu0 %v880
    %v882 = vpop.xlane.xlu0 %881
    %v883 = vsel %vm56, %v851, 0.0
    %884 = vadd.xlane.f32.xlu0 %v883
    %v885 = vpop.xlane.xlu0 %884
    %v886 = vsel %vm56, %v852, 0.0
    %887 = vadd.xlane.f32.xlu0 %v886
    %v888 = vpop.xlane.xlu0 %887
    %v889 = vmul.f32 %v855, %v254
    %v890 = vmul.f32 %v858, %v254
    %v891 = vmul.f32 %v861, %v254
    %v892 = vmul.f32 %v864, %v254
    %v893 = vmul.f32 %v867, %v254
    %v894 = vmul.f32 %v870, %v254
    %v895 = vmul.f32 %v873, %v254
    %v896 = vmul.f32 %v876, %v254
    %v897 = vmul.f32 %v879, %v254
    %v898 = vmul.f32 %v882, %v254
    %v899 = vmul.f32 %v885, %v254
    %v900 = vmul.f32 %v888, %v254
    %v901 = vadd.f32 %v889, 1e-05
    %v902 = vadd.f32 %v890, 1e-05
    %v903 = vadd.f32 %v891, 1e-05
    %v904 = vadd.f32 %v892, 1e-05
    %v905 = vadd.f32 %v893, 1e-05
    %v906 = vadd.f32 %v894, 1e-05
    %v907 = vadd.f32 %v895, 1e-05
    %v908 = vadd.f32 %v896, 1e-05
    %v909 = vadd.f32 %v897, 1e-05
    %v910 = vadd.f32 %v898, 1e-05
    %v911 = vadd.f32 %v899, 1e-05
    %v912 = vadd.f32 %v900, 1e-05
    %v913 = vrsqrt.pop %v901
    %v914 = vrsqrt.pop %v902
    %v915 = vrsqrt.pop %v903
    %v916 = vrsqrt.pop %v904
    %v917 = vrsqrt.pop %v905
    %v918 = vrsqrt.pop %v906
    %v919 = vrsqrt.pop %v907
    %v920 = vrsqrt.pop %v908
    %v921 = vrsqrt.pop %v909
    %v922 = vrsqrt.pop %v910
    %v923 = vrsqrt.pop %v911
    %v924 = vrsqrt.pop %v912
    %v925 = vmul.f32 %v829, %v913
    %v926 = vmul.f32 %v830, %v914
    %v927 = vmul.f32 %v831, %v915
    %v928 = vmul.f32 %v832, %v916
    %v929 = vmul.f32 %v833, %v917
    %v930 = vmul.f32 %v834, %v918
    %v931 = vmul.f32 %v835, %v919
    %v932 = vmul.f32 %v836, %v920
    %v933 = vmul.f32 %v837, %v921
    %v934 = vmul.f32 %v838, %v922
    %v935 = vmul.f32 %v839, %v923
    %v936 = vmul.f32 %v840, %v924
    %937 = vst.msk [vmem:[#allocation2] sm:$0xff] %vm56, %v925
    %938 = vst.msk [vmem:[#allocation2 + $0x8] sm:$0xff] %vm56, %v926
    %939 = vst.msk [vmem:[#allocation2 + $0x10] sm:$0xff] %vm56, %v927
    %940 = vst.msk [vmem:[#allocation2 + $0x18] sm:$0xff] %vm56, %v928
    %941 = vst.msk [vmem:[#allocation2 + $0x20] sm:$0xff] %vm56, %v929
    %942 = vst.msk [vmem:[#allocation2 + $0x28] sm:$0xff] %vm56, %v930
    %943 = vst.msk [vmem:[#allocation2 + $0x30] sm:$0xff] %vm56, %v931
    %944 = vst.msk [vmem:[#allocation2 + $0x38] sm:$0xff] %vm56, %v932
    %945 = vst.msk [vmem:[#allocation2 + $0x40] sm:$0xff] %vm56, %v933
    %946 = vst.msk [vmem:[#allocation2 + $0x48] sm:$0xff] %vm56, %v934
    %947 = vst.msk [vmem:[#allocation2 + $0x50] sm:$0xff] %vm56, %v935
    %948 = vst.msk [vmem:[#allocation2 + $0x58] sm:$0xff] %vm56, %v936
    // Predicated region
    $region38: #{gat_layer_v2_forward.9} parent=1 // pred_check
      _
    $region39: #{gat_layer_v2_forward.9} parent=1 // pred_check_branch
      %950 = sbr.rel (0) target = $region41
    $region40: #{gat_layer_v2_forward.9} parent=1 // pred_region
      %s952 = ssub.s32 1536, 1536
      %953 = vsyncadd [#allocation3], %s952
      %s954 = sshll.u32 [#allocation2], 4
      %s955 = int_to_ptr.vmem [resolvable:$true] %s954
      %960 = dma.vmem_to_hbm [thread:$0]  %s955, 1536, %s9, [#allocation3], 128, 128, 8
    $region41: #{gat_layer_v2_forward.9} parent=1 // pred_fallthru
      _
    // Predicated region
    $region42: #{gat_layer_v2_forward.9} parent=1 // pred_check
      _
    $region43: #{gat_layer_v2_forward.9} parent=1 // pred_check_branch
      %962 = sbr.rel (0) target = $region45
    $region44: #{gat_layer_v2_forward.9} parent=1 // pred_region
      %963 = dma.done [#allocation3], 1536
    $region45: #{gat_layer_v2_forward.9} parent=1 // pred_fallthru
      _
    %964 = vsyncpa [#allocation3], 1

// kernel: gat_layer_v2_forward.8
$region0: #{gat_layer_v2_forward.8}
  #allocation0 [shape = 'u32[]', space=smem, size = 0x4, offset = 0x4, fixed_abs, tag = 'smem constant byte address 0x4 - core index']
  #allocation1 [shape = 'u32[144,128]{1,0:T(1,128)}', space=vmem, size = 0x12000, scoped, tag = 'internal scratch']
  %s0 = inlined_call_operand.vmem [shape: f32[6,32,16], index: 0, kind: input, shape index: {}]
  %s1 = inlined_call_operand.vmem [shape: f32[6,16,32], index: 1, kind: input, shape index: {}]
  %s2 = inlined_call_operand.vmem [shape: f32[6,16,32], index: 2, kind: input, shape index: {}]
  %s3 = inlined_call_operand.vmem [shape: f32[6,16,32], index: 3, kind: input, shape index: {}]
  %s4 = inlined_call_operand.vmem [shape: f32[32,32], index: 4, kind: input, shape index: {}]
  %s5 = inlined_call_operand.vmem [shape: f32[6,16,32], index: 5, kind: output, shape index: {}]
  %s6 = sld [smem:[#allocation0]]
  $region30: #{gat_layer_v2_forward.8} parent=0
    _
  %s8 = ssub.s32 1, %s6
  %s9 = scalar_select 0, %s8, %s6
  // Predicated region
  $region2: #{gat_layer_v2_forward.8} parent=0 // pred_check
    _
  $region3: #{gat_layer_v2_forward.8} parent=0 // pred_check_branch
    %11 = sbr.rel (0) target = $region5
  $region4: #{gat_layer_v2_forward.8} parent=0 // pred_region
    _
  $region5: #{gat_layer_v2_forward.8} parent=0 // pred_fallthru
    _
  // Predicated region
  $region6: #{gat_layer_v2_forward.8} parent=0 // pred_check
    _
  $region7: #{gat_layer_v2_forward.8} parent=0 // pred_check_branch
    %13 = sbr.rel (0) target = $region9
  $region8: #{gat_layer_v2_forward.8} parent=0 // pred_region
    _
  $region9: #{gat_layer_v2_forward.8} parent=0 // pred_fallthru
    _
  // Predicated region
  $region10: #{gat_layer_v2_forward.8} parent=0 // pred_check
    _
  $region11: #{gat_layer_v2_forward.8} parent=0 // pred_check_branch
    %15 = sbr.rel (0) target = $region13
  $region12: #{gat_layer_v2_forward.8} parent=0 // pred_region
    _
  $region13: #{gat_layer_v2_forward.8} parent=0 // pred_fallthru
    _
  // Predicated region
  $region14: #{gat_layer_v2_forward.8} parent=0 // pred_check
    _
  $region15: #{gat_layer_v2_forward.8} parent=0 // pred_check_branch
    %17 = sbr.rel (0) target = $region17
  $region16: #{gat_layer_v2_forward.8} parent=0 // pred_region
    _
  $region17: #{gat_layer_v2_forward.8} parent=0 // pred_fallthru
    _
  // Predicated region
  $region18: #{gat_layer_v2_forward.8} parent=0 // pred_check
    _
  $region19: #{gat_layer_v2_forward.8} parent=0 // pred_check_branch
    %19 = sbr.rel (0) target = $region21
  $region20: #{gat_layer_v2_forward.8} parent=0 // pred_region
    _
  $region21: #{gat_layer_v2_forward.8} parent=0 // pred_fallthru
    _
  %v20 = vld [vmem:[%s0] sm:$0xff]
  %v21 = vld [vmem:[%s0 + $0x8] sm:$0xff]
  %v22 = vld [vmem:[%s0 + $0x10] sm:$0xff]
  %v23 = vld [vmem:[%s0 + $0x18] sm:$0xff]
  %v24 = vld [vmem:[%s0 + $0x20] sm:$0xff]
  %v25 = vld [vmem:[%s0 + $0x28] sm:$0xff]
  %v26 = vld [vmem:[%s0 + $0x30] sm:$0xff]
  %v27 = vld [vmem:[%s0 + $0x38] sm:$0xff]
  %v28 = vld [vmem:[%s0 + $0x40] sm:$0xff]
  %v29 = vld [vmem:[%s0 + $0x48] sm:$0xff]
  %v30 = vld [vmem:[%s0 + $0x50] sm:$0xff]
  %v31 = vld [vmem:[%s0 + $0x58] sm:$0xff]
  %v32 = vld [vmem:[%s0 + $0x60] sm:$0xff]
  %v33 = vld [vmem:[%s0 + $0x68] sm:$0xff]
  %v34 = vld [vmem:[%s0 + $0x70] sm:$0xff]
  %v35 = vld [vmem:[%s0 + $0x78] sm:$0xff]
  %v36 = vld [vmem:[%s0 + $0x80] sm:$0xff]
  %v37 = vld [vmem:[%s0 + $0x88] sm:$0xff]
  %v38 = vld [vmem:[%s0 + $0x90] sm:$0xff]
  %v39 = vld [vmem:[%s0 + $0x98] sm:$0xff]
  %v40 = vld [vmem:[%s0 + $0xa0] sm:$0xff]
  %v41 = vld [vmem:[%s0 + $0xa8] sm:$0xff]
  %v42 = vld [vmem:[%s0 + $0xb0] sm:$0xff]
  %v43 = vld [vmem:[%s0 + $0xb8] sm:$0xff]
  %v44 = vld [vmem:[%s1] sm:$0xff]
  %v45 = vld [vmem:[%s1 + $0x8] sm:$0xff]
  %v46 = vld [vmem:[%s1 + $0x10] sm:$0xff]
  %v47 = vld [vmem:[%s1 + $0x18] sm:$0xff]
  %v48 = vld [vmem:[%s1 + $0x20] sm:$0xff]
  %v49 = vld [vmem:[%s1 + $0x28] sm:$0xff]
  %v50 = vld [vmem:[%s1 + $0x30] sm:$0xff]
  %v51 = vld [vmem:[%s1 + $0x38] sm:$0xff]
  %v52 = vld [vmem:[%s1 + $0x40] sm:$0xff]
  %v53 = vld [vmem:[%s1 + $0x48] sm:$0xff]
  %v54 = vld [vmem:[%s1 + $0x50] sm:$0xff]
  %v55 = vld [vmem:[%s1 + $0x58] sm:$0xff]
  %v56 = vld [vmem:[%s2] sm:$0xff]
  %v57 = vld [vmem:[%s2 + $0x8] sm:$0xff]
  %v58 = vld [vmem:[%s2 + $0x10] sm:$0xff]
  %v59 = vld [vmem:[%s2 + $0x18] sm:$0xff]
  %v60 = vld [vmem:[%s2 + $0x20] sm:$0xff]
  %v61 = vld [vmem:[%s2 + $0x28] sm:$0xff]
  %v62 = vld [vmem:[%s2 + $0x30] sm:$0xff]
  %v63 = vld [vmem:[%s2 + $0x38] sm:$0xff]
  %v64 = vld [vmem:[%s2 + $0x40] sm:$0xff]
  %v65 = vld [vmem:[%s2 + $0x48] sm:$0xff]
  %v66 = vld [vmem:[%s2 + $0x50] sm:$0xff]
  %v67 = vld [vmem:[%s2 + $0x58] sm:$0xff]
  %v68 = vld [vmem:[%s3] sm:$0xff]
  %v69 = vld [vmem:[%s3 + $0x8] sm:$0xff]
  %v70 = vld [vmem:[%s3 + $0x10] sm:$0xff]
  %v71 = vld [vmem:[%s3 + $0x18] sm:$0xff]
  %v72 = vld [vmem:[%s3 + $0x20] sm:$0xff]
  %v73 = vld [vmem:[%s3 + $0x28] sm:$0xff]
  %v74 = vld [vmem:[%s3 + $0x30] sm:$0xff]
  %v75 = vld [vmem:[%s3 + $0x38] sm:$0xff]
  %v76 = vld [vmem:[%s3 + $0x40] sm:$0xff]
  %v77 = vld [vmem:[%s3 + $0x48] sm:$0xff]
  %v78 = vld [vmem:[%s3 + $0x50] sm:$0xff]
  %v79 = vld [vmem:[%s3 + $0x58] sm:$0xff]
  %v80 = vld [vmem:[%s4] sm:$0xff]
  %v81 = vld [vmem:[%s4 + $0x8] sm:$0xff]
  %v82 = vld [vmem:[%s4 + $0x10] sm:$0xff]
  %v83 = vld [vmem:[%s4 + $0x18] sm:$0xff]
  %vm84 = vcmask 130048
  %v86 = vsel %vm84, %v20, 0
  %v89 = vsel %vm84, %v21, 0
  %v92 = vsel %vm84, %v22, 0
  %v95 = vsel %vm84, %v23, 0
  %97 = vmatprep.subr.mxu0 0.0
  %98 = vmatpush1.msra.mxu0 %v44
  %99 = vmatprep.subr.mxu0 0.0
  %100 = vmatpush1.msra.mxu0 %v45
  %101 = vmatprep.subr.mxu0 0.0
  %102 = vmatpush1.msra.mxu0 0.0
  %103 = vmatprep.subr.mxu0 0.0
  %104 = vmatpush1.msra.mxu0 0.0
  %105 = vmatprep.subr.mxu0 0.0
  %106 = vmatpush1.msra.mxu0 0.0
  %107 = vmatprep.subr.mxu0 0.0
  %108 = vmatpush1.msra.mxu0 0.0
  %109 = vmatprep.subr.mxu0 0.0
  %110 = vmatpush1.msra.mxu0 0.0
  %111 = vmatprep.subr.mxu0 0.0
  %112 = vmatpush1.msra.mxu0 0.0
  %113 = vmatprep.subr.mxu0 0.0
  %114 = vmatpush1.msra.mxu0 0.0
  %115 = vmatprep.subr.mxu0 0.0
  %116 = vmatpush1.msra.mxu0 0.0
  %117 = vmatprep.subr.mxu0 0.0
  %118 = vmatpush1.msra.mxu0 0.0
  %119 = vmatprep.subr.mxu0 0.0
  %120 = vmatpush1.msra.mxu0 0.0
  %121 = vmatprep.subr.mxu0 0.0
  %122 = vmatpush1.msra.mxu0 0.0
  %123 = vmatprep.subr.mxu0 0.0
  %124 = vmatpush1.msra.mxu0 0.0
  %125 = vmatprep.subr.mxu0 0.0
  %126 = vmatpush1.msra.mxu0 0.0
  %127 = vmatprep.subr.mxu0 0.0
  %128 = vmatpush1.msra.mxu0 0.0
  %129 = vmatprep.subr.mxu0 0.0
  %130 = vmatpush1.msra.mxu0 0.0
  %131 = vmatprep.subr.mxu0 0.0
  %132 = vmatpush1.msra.mxu0 0.0
  %133 = vmatprep.subr.mxu0 0.0
  %134 = vmatpush1.msra.mxu0 0.0
  %135 = vmatprep.subr.mxu0 0.0
  %136 = vmatpush1.msra.mxu0 0.0
  %137 = vmatprep.subr.mxu0 0.0
  %138 = vmatpush1.msra.mxu0 0.0
  %139 = vmatprep.subr.mxu0 0.0
  %140 = vmatpush1.msra.mxu0 0.0
  %141 = vmatprep.subr.mxu0 0.0
  %142 = vmatpush1.msra.mxu0 0.0
  %143 = vmatprep.subr.mxu0 0.0
  %144 = vmatpush1.msra.mxu0 0.0
  %145 = vmatprep.subr.mxu0 0.0
  %146 = vmatpush1.msra.mxu0 0.0
  %147 = vmatprep.subr.mxu0 0.0
  %148 = vmatpush1.msra.mxu0 0.0
  %149 = vmatprep.subr.mxu0 0.0
  %150 = vmatpush1.msra.mxu0 0.0
  %151 = vmatprep.subr.mxu0 0.0
  %152 = vmatpush1.msra.mxu0 0.0
  %153 = vmatprep.subr.mxu0 0.0
  %154 = vmatpush1.msra.mxu0 0.0
  %155 = vmatprep.subr.mxu0 0.0
  %156 = vmatpush1.msra.mxu0 0.0
  %157 = vmatprep.subr.mxu0 0.0
  %158 = vmatpush1.msra.mxu0 0.0
  %159 = vmatprep.subr.mxu0 0.0
  %160 = vmatpush1.msra.mxu0 0.0
  %161 = vmatprep.mubr.f32.mxu0 0.0
  %162 = vmatmul.mubr.f32.gmra.mrb[0].mxu0 %v86
  %v163 = vpop.f32.mrb[0].mxu0
  %v164 = vadd.f32 0.0, %v163
  %v165 = vpop.f32.mrb[0].mxu0
  %166 = vmatprep.mubr.f32.mxu0 0.0
  %167 = vmatmul.mubr.f32.gmra.mrb[0].mxu0 %v89
  %v168 = vpop.f32.mrb[0].mxu0
  %v169 = vadd.f32 0.0, %v168
  %v170 = vpop.f32.mrb[0].mxu0
  %171 = vmatprep.mubr.f32.mxu0 0.0
  %172 = vmatmul.mubr.f32.gmra.mrb[0].mxu0 %v92
  %v173 = vpop.f32.mrb[0].mxu0
  %v174 = vadd.f32 0.0, %v173
  %v175 = vpop.f32.mrb[0].mxu0
  %176 = vmatprep.mubr.f32.mxu0 0.0
  %177 = vmatmul.mubr.f32.gmra.mrb[0].mxu0 %v95
  %v178 = vpop.f32.mrb[0].mxu0
  %v179 = vadd.f32 0.0, %v178
  %v180 = vpop.f32.mrb[0].mxu0
  %181 = vdwg.mxu0
  %v183 = vsel %vm84, %v24, 0
  %v186 = vsel %vm84, %v25, 0
  %v189 = vsel %vm84, %v26, 0
  %v192 = vsel %vm84, %v27, 0
  %194 = vmatprep.subr.mxu0 0.0
  %195 = vmatpush1.msra.mxu0 %v46
  %196 = vmatprep.subr.mxu0 0.0
  %197 = vmatpush1.msra.mxu0 %v47
  %198 = vmatprep.subr.mxu0 0.0
  %199 = vmatpush1.msra.mxu0 0.0
  %200 = vmatprep.subr.mxu0 0.0
  %201 = vmatpush1.msra.mxu0 0.0
  %202 = vmatprep.subr.mxu0 0.0
  %203 = vmatpush1.msra.mxu0 0.0
  %204 = vmatprep.subr.mxu0 0.0
  %205 = vmatpush1.msra.mxu0 0.0
  %206 = vmatprep.subr.mxu0 0.0
  %207 = vmatpush1.msra.mxu0 0.0
  %208 = vmatprep.subr.mxu0 0.0
  %209 = vmatpush1.msra.mxu0 0.0
  %210 = vmatprep.subr.mxu0 0.0
  %211 = vmatpush1.msra.mxu0 0.0
  %212 = vmatprep.subr.mxu0 0.0
  %213 = vmatpush1.msra.mxu0 0.0
  %214 = vmatprep.subr.mxu0 0.0
  %215 = vmatpush1.msra.mxu0 0.0
  %216 = vmatprep.subr.mxu0 0.0
  %217 = vmatpush1.msra.mxu0 0.0
  %218 = vmatprep.subr.mxu0 0.0
  %219 = vmatpush1.msra.mxu0 0.0
  %220 = vmatprep.subr.mxu0 0.0
  %221 = vmatpush1.msra.mxu0 0.0
  %222 = vmatprep.subr.mxu0 0.0
  %223 = vmatpush1.msra.mxu0 0.0
  %224 = vmatprep.subr.mxu0 0.0
  %225 = vmatpush1.msra.mxu0 0.0
  %226 = vmatprep.subr.mxu0 0.0
  %227 = vmatpush1.msra.mxu0 0.0
  %228 = vmatprep.subr.mxu0 0.0
  %229 = vmatpush1.msra.mxu0 0.0
  %230 = vmatprep.subr.mxu0 0.0
  %231 = vmatpush1.msra.mxu0 0.0
  %232 = vmatprep.subr.mxu0 0.0
  %233 = vmatpush1.msra.mxu0 0.0
  %234 = vmatprep.subr.mxu0 0.0
  %235 = vmatpush1.msra.mxu0 0.0
  %236 = vmatprep.subr.mxu0 0.0
  %237 = vmatpush1.msra.mxu0 0.0
  %238 = vmatprep.subr.mxu0 0.0
  %239 = vmatpush1.msra.mxu0 0.0
  %240 = vmatprep.subr.mxu0 0.0
  %241 = vmatpush1.msra.mxu0 0.0
  %242 = vmatprep.subr.mxu0 0.0
  %243 = vmatpush1.msra.mxu0 0.0
  %244 = vmatprep.subr.mxu0 0.0
  %245 = vmatpush1.msra.mxu0 0.0
  %246 = vmatprep.subr.mxu0 0.0
  %247 = vmatpush1.msra.mxu0 0.0
  %248 = vmatprep.subr.mxu0 0.0
  %249 = vmatpush1.msra.mxu0 0.0
  %250 = vmatprep.subr.mxu0 0.0
  %251 = vmatpush1.msra.mxu0 0.0
  %252 = vmatprep.subr.mxu0 0.0
  %253 = vmatpush1.msra.mxu0 0.0
  %254 = vmatprep.subr.mxu0 0.0
  %255 = vmatpush1.msra.mxu0 0.0
  %256 = vmatprep.subr.mxu0 0.0
  %257 = vmatpush1.msra.mxu0 0.0
  %258 = vmatprep.mubr.f32.mxu0 0.0
  %259 = vmatmul.mubr.f32.gmra.mrb[0].mxu0 %v183
  %v260 = vpop.f32.mrb[0].mxu0
  %v261 = vadd.f32 0.0, %v260
  %v262 = vpop.f32.mrb[0].mxu0
  %263 = vmatprep.mubr.f32.mxu0 0.0
  %264 = vmatmul.mubr.f32.gmra.mrb[0].mxu0 %v186
  %v265 = vpop.f32.mrb[0].mxu0
  %v266 = vadd.f32 0.0, %v265
  %v267 = vpop.f32.mrb[0].mxu0
  %268 = vmatprep.mubr.f32.mxu0 0.0
  %269 = vmatmul.mubr.f32.gmra.mrb[0].mxu0 %v189
  %v270 = vpop.f32.mrb[0].mxu0
  %v271 = vadd.f32 0.0, %v270
  %v272 = vpop.f32.mrb[0].mxu0
  %273 = vmatprep.mubr.f32.mxu0 0.0
  %274 = vmatmul.mubr.f32.gmra.mrb[0].mxu0 %v192
  %v275 = vpop.f32.mrb[0].mxu0
  %v276 = vadd.f32 0.0, %v275
  %v277 = vpop.f32.mrb[0].mxu0
  %278 = vdwg.mxu0
  %v280 = vsel %vm84, %v28, 0
  %v283 = vsel %vm84, %v29, 0
  %v286 = vsel %vm84, %v30, 0
  %v289 = vsel %vm84, %v31, 0
  %291 = vmatprep.subr.mxu0 0.0
  %292 = vmatpush1.msra.mxu0 %v48
  %293 = vmatprep.subr.mxu0 0.0
  %294 = vmatpush1.msra.mxu0 %v49
  %295 = vmatprep.subr.mxu0 0.0
  %296 = vmatpush1.msra.mxu0 0.0
  %297 = vmatprep.subr.mxu0 0.0
  %298 = vmatpush1.msra.mxu0 0.0
  %299 = vmatprep.subr.mxu0 0.0
  %300 = vmatpush1.msra.mxu0 0.0
  %301 = vmatprep.subr.mxu0 0.0
  %302 = vmatpush1.msra.mxu0 0.0
  %303 = vmatprep.subr.mxu0 0.0
  %304 = vmatpush1.msra.mxu0 0.0
  %305 = vmatprep.subr.mxu0 0.0
  %306 = vmatpush1.msra.mxu0 0.0
  %307 = vmatprep.subr.mxu0 0.0
  %308 = vmatpush1.msra.mxu0 0.0
  %309 = vmatprep.subr.mxu0 0.0
  %310 = vmatpush1.msra.mxu0 0.0
  %311 = vmatprep.subr.mxu0 0.0
  %312 = vmatpush1.msra.mxu0 0.0
  %313 = vmatprep.subr.mxu0 0.0
  %314 = vmatpush1.msra.mxu0 0.0
  %315 = vmatprep.subr.mxu0 0.0
  %316 = vmatpush1.msra.mxu0 0.0
  %317 = vmatprep.subr.mxu0 0.0
  %318 = vmatpush1.msra.mxu0 0.0
  %319 = vmatprep.subr.mxu0 0.0
  %320 = vmatpush1.msra.mxu0 0.0
  %321 = vmatprep.subr.mxu0 0.0
  %322 = vmatpush1.msra.mxu0 0.0
  %323 = vmatprep.subr.mxu0 0.0
  %324 = vmatpush1.msra.mxu0 0.0
  %325 = vmatprep.subr.mxu0 0.0
  %326 = vmatpush1.msra.mxu0 0.0
  %327 = vmatprep.subr.mxu0 0.0
  %328 = vmatpush1.msra.mxu0 0.0
  %329 = vmatprep.subr.mxu0 0.0
  %330 = vmatpush1.msra.mxu0 0.0
  %331 = vmatprep.subr.mxu0 0.0
  %332 = vmatpush1.msra.mxu0 0.0
  %333 = vmatprep.subr.mxu0 0.0
  %334 = vmatpush1.msra.mxu0 0.0
  %335 = vmatprep.subr.mxu0 0.0
  %336 = vmatpush1.msra.mxu0 0.0
  %337 = vmatprep.subr.mxu0 0.0
  %338 = vmatpush1.msra.mxu0 0.0
  %339 = vmatprep.subr.mxu0 0.0
  %340 = vmatpush1.msra.mxu0 0.0
  %341 = vmatprep.subr.mxu0 0.0
  %342 = vmatpush1.msra.mxu0 0.0
  %343 = vmatprep.subr.mxu0 0.0
  %344 = vmatpush1.msra.mxu0 0.0
  %345 = vmatprep.subr.mxu0 0.0
  %346 = vmatpush1.msra.mxu0 0.0
  %347 = vmatprep.subr.mxu0 0.0
  %348 = vmatpush1.msra.mxu0 0.0
  %349 = vmatprep.subr.mxu0 0.0
  %350 = vmatpush1.msra.mxu0 0.0
  %351 = vmatprep.subr.mxu0 0.0
  %352 = vmatpush1.msra.mxu0 0.0
  %353 = vmatprep.subr.mxu0 0.0
  %354 = vmatpush1.msra.mxu0 0.0
  %355 = vmatprep.mubr.f32.mxu0 0.0
  %356 = vmatmul.mubr.f32.gmra.mrb[0].mxu0 %v280
  %v357 = vpop.f32.mrb[0].mxu0
  %v358 = vadd.f32 0.0, %v357
  %v359 = vpop.f32.mrb[0].mxu0
  %360 = vmatprep.mubr.f32.mxu0 0.0
  %361 = vmatmul.mubr.f32.gmra.mrb[0].mxu0 %v283
  %v362 = vpop.f32.mrb[0].mxu0
  %v363 = vadd.f32 0.0, %v362
  %v364 = vpop.f32.mrb[0].mxu0
  %365 = vmatprep.mubr.f32.mxu0 0.0
  %366 = vmatmul.mubr.f32.gmra.mrb[0].mxu0 %v286
  %v367 = vpop.f32.mrb[0].mxu0
  %v368 = vadd.f32 0.0, %v367
  %v369 = vpop.f32.mrb[0].mxu0
  %370 = vmatprep.mubr.f32.mxu0 0.0
  %371 = vmatmul.mubr.f32.gmra.mrb[0].mxu0 %v289
  %v372 = vpop.f32.mrb[0].mxu0
  %v373 = vadd.f32 0.0, %v372
  %v374 = vpop.f32.mrb[0].mxu0
  %375 = vdwg.mxu0
  %v377 = vsel %vm84, %v32, 0
  %v380 = vsel %vm84, %v33, 0
  %v383 = vsel %vm84, %v34, 0
  %v386 = vsel %vm84, %v35, 0
  %388 = vmatprep.subr.mxu0 0.0
  %389 = vmatpush1.msra.mxu0 %v50
  %390 = vmatprep.subr.mxu0 0.0
  %391 = vmatpush1.msra.mxu0 %v51
  %392 = vmatprep.subr.mxu0 0.0
  %393 = vmatpush1.msra.mxu0 0.0
  %394 = vmatprep.subr.mxu0 0.0
  %395 = vmatpush1.msra.mxu0 0.0
  %396 = vmatprep.subr.mxu0 0.0
  %397 = vmatpush1.msra.mxu0 0.0
  %398 = vmatprep.subr.mxu0 0.0
  %399 = vmatpush1.msra.mxu0 0.0
  %400 = vmatprep.subr.mxu0 0.0
  %401 = vmatpush1.msra.mxu0 0.0
  %402 = vmatprep.subr.mxu0 0.0
  %403 = vmatpush1.msra.mxu0 0.0
  %404 = vmatprep.subr.mxu0 0.0
  %405 = vmatpush1.msra.mxu0 0.0
  %406 = vmatprep.subr.mxu0 0.0
  %407 = vmatpush1.msra.mxu0 0.0
  %408 = vmatprep.subr.mxu0 0.0
  %409 = vmatpush1.msra.mxu0 0.0
  %410 = vmatprep.subr.mxu0 0.0
  %411 = vmatpush1.msra.mxu0 0.0
  %412 = vmatprep.subr.mxu0 0.0
  %413 = vmatpush1.msra.mxu0 0.0
  %414 = vmatprep.subr.mxu0 0.0
  %415 = vmatpush1.msra.mxu0 0.0
  %416 = vmatprep.subr.mxu0 0.0
  %417 = vmatpush1.msra.mxu0 0.0
  %418 = vmatprep.subr.mxu0 0.0
  %419 = vmatpush1.msra.mxu0 0.0
  %420 = vmatprep.subr.mxu0 0.0
  %421 = vmatpush1.msra.mxu0 0.0
  %422 = vmatprep.subr.mxu0 0.0
  %423 = vmatpush1.msra.mxu0 0.0
  %424 = vmatprep.subr.mxu0 0.0
  %425 = vmatpush1.msra.mxu0 0.0
  %426 = vmatprep.subr.mxu0 0.0
  %427 = vmatpush1.msra.mxu0 0.0
  %428 = vmatprep.subr.mxu0 0.0
  %429 = vmatpush1.msra.mxu0 0.0
  %430 = vmatprep.subr.mxu0 0.0
  %431 = vmatpush1.msra.mxu0 0.0
  %432 = vmatprep.subr.mxu0 0.0
  %433 = vmatpush1.msra.mxu0 0.0
  %434 = vmatprep.subr.mxu0 0.0
  %435 = vmatpush1.msra.mxu0 0.0
  %436 = vmatprep.subr.mxu0 0.0
  %437 = vmatpush1.msra.mxu0 0.0
  %438 = vmatprep.subr.mxu0 0.0
  %439 = vmatpush1.msra.mxu0 0.0
  %440 = vmatprep.subr.mxu0 0.0
  %441 = vmatpush1.msra.mxu0 0.0
  %442 = vmatprep.subr.mxu0 0.0
  %443 = vmatpush1.msra.mxu0 0.0
  %444 = vmatprep.subr.mxu0 0.0
  %445 = vmatpush1.msra.mxu0 0.0
  %446 = vmatprep.subr.mxu0 0.0
  %447 = vmatpush1.msra.mxu0 0.0
  %448 = vmatprep.subr.mxu0 0.0
  %449 = vmatpush1.msra.mxu0 0.0
  %450 = vmatprep.subr.mxu0 0.0
  %451 = vmatpush1.msra.mxu0 0.0
  %452 = vmatprep.mubr.f32.mxu0 0.0
  %453 = vmatmul.mubr.f32.gmra.mrb[0].mxu0 %v377
  %v454 = vpop.f32.mrb[0].mxu0
  %v455 = vadd.f32 0.0, %v454
  %v456 = vpop.f32.mrb[0].mxu0
  %457 = vmatprep.mubr.f32.mxu0 0.0
  %458 = vmatmul.mubr.f32.gmra.mrb[0].mxu0 %v380
  %v459 = vpop.f32.mrb[0].mxu0
  %v460 = vadd.f32 0.0, %v459
  %v461 = vpop.f32.mrb[0].mxu0
  %462 = vmatprep.mubr.f32.mxu0 0.0
  %463 = vmatmul.mubr.f32.gmra.mrb[0].mxu0 %v383
  %v464 = vpop.f32.mrb[0].mxu0
  %v465 = vadd.f32 0.0, %v464
  %v466 = vpop.f32.mrb[0].mxu0
  %467 = vmatprep.mubr.f32.mxu0 0.0
  %468 = vmatmul.mubr.f32.gmra.mrb[0].mxu0 %v386
  %v469 = vpop.f32.mrb[0].mxu0
  %v470 = vadd.f32 0.0, %v469
  %v471 = vpop.f32.mrb[0].mxu0
  %472 = vdwg.mxu0
  %v474 = vsel %vm84, %v36, 0
  %v477 = vsel %vm84, %v37, 0
  %v480 = vsel %vm84, %v38, 0
  %v483 = vsel %vm84, %v39, 0
  %485 = vmatprep.subr.mxu0 0.0
  %486 = vmatpush1.msra.mxu0 %v52
  %487 = vmatprep.subr.mxu0 0.0
  %488 = vmatpush1.msra.mxu0 %v53
  %489 = vmatprep.subr.mxu0 0.0
  %490 = vmatpush1.msra.mxu0 0.0
  %491 = vmatprep.subr.mxu0 0.0
  %492 = vmatpush1.msra.mxu0 0.0
  %493 = vmatprep.subr.mxu0 0.0
  %494 = vmatpush1.msra.mxu0 0.0
  %495 = vmatprep.subr.mxu0 0.0
  %496 = vmatpush1.msra.mxu0 0.0
  %497 = vmatprep.subr.mxu0 0.0
  %498 = vmatpush1.msra.mxu0 0.0
  %499 = vmatprep.subr.mxu0 0.0
  %500 = vmatpush1.msra.mxu0 0.0
  %501 = vmatprep.subr.mxu0 0.0
  %502 = vmatpush1.msra.mxu0 0.0
  %503 = vmatprep.subr.mxu0 0.0
  %504 = vmatpush1.msra.mxu0 0.0
  %505 = vmatprep.subr.mxu0 0.0
  %506 = vmatpush1.msra.mxu0 0.0
  %507 = vmatprep.subr.mxu0 0.0
  %508 = vmatpush1.msra.mxu0 0.0
  %509 = vmatprep.subr.mxu0 0.0
  %510 = vmatpush1.msra.mxu0 0.0
  %511 = vmatprep.subr.mxu0 0.0
  %512 = vmatpush1.msra.mxu0 0.0
  %513 = vmatprep.subr.mxu0 0.0
  %514 = vmatpush1.msra.mxu0 0.0
  %515 = vmatprep.subr.mxu0 0.0
  %516 = vmatpush1.msra.mxu0 0.0
  %517 = vmatprep.subr.mxu0 0.0
  %518 = vmatpush1.msra.mxu0 0.0
  %519 = vmatprep.subr.mxu0 0.0
  %520 = vmatpush1.msra.mxu0 0.0
  %521 = vmatprep.subr.mxu0 0.0
  %522 = vmatpush1.msra.mxu0 0.0
  %523 = vmatprep.subr.mxu0 0.0
  %524 = vmatpush1.msra.mxu0 0.0
  %525 = vmatprep.subr.mxu0 0.0
  %526 = vmatpush1.msra.mxu0 0.0
  %527 = vmatprep.subr.mxu0 0.0
  %528 = vmatpush1.msra.mxu0 0.0
  %529 = vmatprep.subr.mxu0 0.0
  %530 = vmatpush1.msra.mxu0 0.0
  %531 = vmatprep.subr.mxu0 0.0
  %532 = vmatpush1.msra.mxu0 0.0
  %533 = vmatprep.subr.mxu0 0.0
  %534 = vmatpush1.msra.mxu0 0.0
  %535 = vmatprep.subr.mxu0 0.0
  %536 = vmatpush1.msra.mxu0 0.0
  %537 = vmatprep.subr.mxu0 0.0
  %538 = vmatpush1.msra.mxu0 0.0
  %539 = vmatprep.subr.mxu0 0.0
  %540 = vmatpush1.msra.mxu0 0.0
  %541 = vmatprep.subr.mxu0 0.0
  %542 = vmatpush1.msra.mxu0 0.0
  %543 = vmatprep.subr.mxu0 0.0
  %544 = vmatpush1.msra.mxu0 0.0
  %545 = vmatprep.subr.mxu0 0.0
  %546 = vmatpush1.msra.mxu0 0.0
  %547 = vmatprep.subr.mxu0 0.0
  %548 = vmatpush1.msra.mxu0 0.0
  %549 = vmatprep.mubr.f32.mxu0 0.0
  %550 = vmatmul.mubr.f32.gmra.mrb[0].mxu0 %v474
  %v551 = vpop.f32.mrb[0].mxu0
  %v552 = vadd.f32 0.0, %v551
  %v553 = vpop.f32.mrb[0].mxu0
  %554 = vmatprep.mubr.f32.mxu0 0.0
  %555 = vmatmul.mubr.f32.gmra.mrb[0].mxu0 %v477
  %v556 = vpop.f32.mrb[0].mxu0
  %v557 = vadd.f32 0.0, %v556
  %v558 = vpop.f32.mrb[0].mxu0
  %559 = vmatprep.mubr.f32.mxu0 0.0
  %560 = vmatmul.mubr.f32.gmra.mrb[0].mxu0 %v480
  %v561 = vpop.f32.mrb[0].mxu0
  %v562 = vadd.f32 0.0, %v561
  %v563 = vpop.f32.mrb[0].mxu0
  %564 = vmatprep.mubr.f32.mxu0 0.0
  %565 = vmatmul.mubr.f32.gmra.mrb[0].mxu0 %v483
  %v566 = vpop.f32.mrb[0].mxu0
  %v567 = vadd.f32 0.0, %v566
  %v568 = vpop.f32.mrb[0].mxu0
  %569 = vdwg.mxu0
  %v571 = vsel %vm84, %v40, 0
  %v574 = vsel %vm84, %v41, 0
  %v577 = vsel %vm84, %v42, 0
  %v580 = vsel %vm84, %v43, 0
  %582 = vmatprep.subr.mxu0 0.0
  %583 = vmatpush1.msra.mxu0 %v54
  %584 = vmatprep.subr.mxu0 0.0
  %585 = vmatpush1.msra.mxu0 %v55
  %586 = vmatprep.subr.mxu0 0.0
  %587 = vmatpush1.msra.mxu0 0.0
  %588 = vmatprep.subr.mxu0 0.0
  %589 = vmatpush1.msra.mxu0 0.0
  %590 = vmatprep.subr.mxu0 0.0
  %591 = vmatpush1.msra.mxu0 0.0
  %592 = vmatprep.subr.mxu0 0.0
  %593 = vmatpush1.msra.mxu0 0.0
  %594 = vmatprep.subr.mxu0 0.0
  %595 = vmatpush1.msra.mxu0 0.0
  %596 = vmatprep.subr.mxu0 0.0
  %597 = vmatpush1.msra.mxu0 0.0
  %598 = vmatprep.subr.mxu0 0.0
  %599 = vmatpush1.msra.mxu0 0.0
  %600 = vmatprep.subr.mxu0 0.0
  %601 = vmatpush1.msra.mxu0 0.0
  %602 = vmatprep.subr.mxu0 0.0
  %603 = vmatpush1.msra.mxu0 0.0
  %604 = vmatprep.subr.mxu0 0.0
  %605 = vmatpush1.msra.mxu0 0.0
  %606 = vmatprep.subr.mxu0 0.0
  %607 = vmatpush1.msra.mxu0 0.0
  %608 = vmatprep.subr.mxu0 0.0
  %609 = vmatpush1.msra.mxu0 0.0
  %610 = vmatprep.subr.mxu0 0.0
  %611 = vmatpush1.msra.mxu0 0.0
  %612 = vmatprep.subr.mxu0 0.0
  %613 = vmatpush1.msra.mxu0 0.0
  %614 = vmatprep.subr.mxu0 0.0
  %615 = vmatpush1.msra.mxu0 0.0
  %616 = vmatprep.subr.mxu0 0.0
  %617 = vmatpush1.msra.mxu0 0.0
  %618 = vmatprep.subr.mxu0 0.0
  %619 = vmatpush1.msra.mxu0 0.0
  %620 = vmatprep.subr.mxu0 0.0
  %621 = vmatpush1.msra.mxu0 0.0
  %622 = vmatprep.subr.mxu0 0.0
  %623 = vmatpush1.msra.mxu0 0.0
  %624 = vmatprep.subr.mxu0 0.0
  %625 = vmatpush1.msra.mxu0 0.0
  %626 = vmatprep.subr.mxu0 0.0
  %627 = vmatpush1.msra.mxu0 0.0
  %628 = vmatprep.subr.mxu0 0.0
  %629 = vmatpush1.msra.mxu0 0.0
  %630 = vmatprep.subr.mxu0 0.0
  %631 = vmatpush1.msra.mxu0 0.0
  %632 = vmatprep.subr.mxu0 0.0
  %633 = vmatpush1.msra.mxu0 0.0
  %634 = vmatprep.subr.mxu0 0.0
  %635 = vmatpush1.msra.mxu0 0.0
  %636 = vmatprep.subr.mxu0 0.0
  %637 = vmatpush1.msra.mxu0 0.0
  %638 = vmatprep.subr.mxu0 0.0
  %639 = vmatpush1.msra.mxu0 0.0
  %640 = vmatprep.subr.mxu0 0.0
  %641 = vmatpush1.msra.mxu0 0.0
  %642 = vmatprep.subr.mxu0 0.0
  %643 = vmatpush1.msra.mxu0 0.0
  %644 = vmatprep.subr.mxu0 0.0
  %645 = vmatpush1.msra.mxu0 0.0
  %646 = vmatprep.mubr.f32.mxu0 0.0
  %647 = vmatmul.mubr.f32.gmra.mrb[0].mxu0 %v571
  %v648 = vpop.f32.mrb[0].mxu0
  %v649 = vadd.f32 0.0, %v648
  %v650 = vpop.f32.mrb[0].mxu0
  %651 = vmatprep.mubr.f32.mxu0 0.0
  %652 = vmatmul.mubr.f32.gmra.mrb[0].mxu0 %v574
  %v653 = vpop.f32.mrb[0].mxu0
  %v654 = vadd.f32 0.0, %v653
  %v655 = vpop.f32.mrb[0].mxu0
  %656 = vmatprep.mubr.f32.mxu0 0.0
  %657 = vmatmul.mubr.f32.gmra.mrb[0].mxu0 %v577
  %v658 = vpop.f32.mrb[0].mxu0
  %v659 = vadd.f32 0.0, %v658
  %v660 = vpop.f32.mrb[0].mxu0
  %661 = vmatprep.mubr.f32.mxu0 0.0
  %662 = vmatmul.mubr.f32.gmra.mrb[0].mxu0 %v580
  %v663 = vpop.f32.mrb[0].mxu0
  %v664 = vadd.f32 0.0, %v663
  %v665 = vpop.f32.mrb[0].mxu0
  %666 = vdwg.mxu0
  %v667 = vmul.f32 %v164, %v80
  %v668 = vmul.f32 %v169, %v81
  %v669 = vmul.f32 %v174, %v82
  %v670 = vmul.f32 %v179, %v83
  %v671 = vmul.f32 %v261, %v80
  %v672 = vmul.f32 %v266, %v81
  %v673 = vmul.f32 %v271, %v82
  %v674 = vmul.f32 %v276, %v83
  %v675 = vmul.f32 %v358, %v80
  %v676 = vmul.f32 %v363, %v81
  %v677 = vmul.f32 %v368, %v82
  %v678 = vmul.f32 %v373, %v83
  %v679 = vmul.f32 %v455, %v80
  %v680 = vmul.f32 %v460, %v81
  %v681 = vmul.f32 %v465, %v82
  %v682 = vmul.f32 %v470, %v83
  %v683 = vmul.f32 %v552, %v80
  %v684 = vmul.f32 %v557, %v81
  %v685 = vmul.f32 %v562, %v82
  %v686 = vmul.f32 %v567, %v83
  %v687 = vmul.f32 %v649, %v80
  %v688 = vmul.f32 %v654, %v81
  %v689 = vmul.f32 %v659, %v82
  %v690 = vmul.f32 %v664, %v83
  %vm691 = vcmask 261120
  %v693 = vsel %vm691, %v667, 0
  %v696 = vsel %vm691, %v668, 0
  %v699 = vsel %vm691, %v669, 0
  %v702 = vsel %vm691, %v670, 0
  %v705 = vsel %vm691, %v56, 0
  %v708 = vsel %vm691, %v57, 0
  %710 = vmatprep.subr.mxu0 0.0
  %711 = vmatpush1.xpose.msra.mxu0 %v705
  %712 = vmatprep.subr.mxu0 0.0
  %713 = vmatpush1.xpose.msra.mxu0 %v708
  %714 = vmatprep.subr.mxu0 0.0
  %715 = vmatpush1.xpose.msra.mxu0 0.0
  %716 = vmatprep.subr.mxu0 0.0
  %717 = vmatpush1.xpose.msra.mxu0 0.0
  %718 = vmatprep.subr.mxu0 0.0
  %719 = vmatpush1.xpose.msra.mxu0 0.0
  %720 = vmatprep.subr.mxu0 0.0
  %721 = vmatpush1.xpose.msra.mxu0 0.0
  %722 = vmatprep.subr.mxu0 0.0
  %723 = vmatpush1.xpose.msra.mxu0 0.0
  %724 = vmatprep.subr.mxu0 0.0
  %725 = vmatpush1.xpose.msra.mxu0 0.0
  %726 = vmatprep.subr.mxu0 0.0
  %727 = vmatpush1.xpose.msra.mxu0 0.0
  %728 = vmatprep.subr.mxu0 0.0
  %729 = vmatpush1.xpose.msra.mxu0 0.0
  %730 = vmatprep.subr.mxu0 0.0
  %731 = vmatpush1.xpose.msra.mxu0 0.0
  %732 = vmatprep.subr.mxu0 0.0
  %733 = vmatpush1.xpose.msra.mxu0 0.0
  %734 = vmatprep.subr.mxu0 0.0
  %735 = vmatpush1.xpose.msra.mxu0 0.0
  %736 = vmatprep.subr.mxu0 0.0
  %737 = vmatpush1.xpose.msra.mxu0 0.0
  %738 = vmatprep.subr.mxu0 0.0
  %739 = vmatpush1.xpose.msra.mxu0 0.0
  %740 = vmatprep.subr.mxu0 0.0
  %741 = vmatpush1.xpose.msra.mxu0 0.0
  %742 = vmatprep.subr.mxu0 0.0
  %743 = vmatpush1.xpose.msra.mxu0 0.0
  %744 = vmatprep.subr.mxu0 0.0
  %745 = vmatpush1.xpose.msra.mxu0 0.0
  %746 = vmatprep.subr.mxu0 0.0
  %747 = vmatpush1.xpose.msra.mxu0 0.0
  %748 = vmatprep.subr.mxu0 0.0
  %749 = vmatpush1.xpose.msra.mxu0 0.0
  %750 = vmatprep.subr.mxu0 0.0
  %751 = vmatpush1.xpose.msra.mxu0 0.0
  %752 = vmatprep.subr.mxu0 0.0
  %753 = vmatpush1.xpose.msra.mxu0 0.0
  %754 = vmatprep.subr.mxu0 0.0
  %755 = vmatpush1.xpose.msra.mxu0 0.0
  %756 = vmatprep.subr.mxu0 0.0
  %757 = vmatpush1.xpose.msra.mxu0 0.0
  %758 = vmatprep.subr.mxu0 0.0
  %759 = vmatpush1.xpose.msra.mxu0 0.0
  %760 = vmatprep.subr.mxu0 0.0
  %761 = vmatpush1.xpose.msra.mxu0 0.0
  %762 = vmatprep.subr.mxu0 0.0
  %763 = vmatpush1.xpose.msra.mxu0 0.0
  %764 = vmatprep.subr.mxu0 0.0
  %765 = vmatpush1.xpose.msra.mxu0 0.0
  %766 = vmatprep.subr.mxu0 0.0
  %767 = vmatpush1.xpose.msra.mxu0 0.0
  %768 = vmatprep.subr.mxu0 0.0
  %769 = vmatpush1.xpose.msra.mxu0 0.0
  %770 = vmatprep.subr.mxu0 0.0
  %771 = vmatpush1.xpose.msra.mxu0 0.0
  %772 = vmatprep.subr.mxu0 0.0
  %773 = vmatpush1.xpose.msra.mxu0 0.0
  %774 = vmatprep.mubr.f32.mxu0 0.0
  %775 = vmatmul.mubr.f32.gmra.mrb[0].mxu0 %v693
  %v776 = vpop.f32.mrb[0].mxu0
  %v777 = vadd.f32 0.0, %v776
  %v778 = vpop.f32.mrb[0].mxu0
  %779 = vmatprep.mubr.f32.mxu0 0.0
  %780 = vmatmul.mubr.f32.gmra.mrb[0].mxu0 %v696
  %v781 = vpop.f32.mrb[0].mxu0
  %v782 = vadd.f32 0.0, %v781
  %v783 = vpop.f32.mrb[0].mxu0
  %784 = vmatprep.mubr.f32.mxu0 0.0
  %785 = vmatmul.mubr.f32.gmra.mrb[0].mxu0 %v699
  %v786 = vpop.f32.mrb[0].mxu0
  %v787 = vadd.f32 0.0, %v786
  %v788 = vpop.f32.mrb[0].mxu0
  %789 = vmatprep.mubr.f32.mxu0 0.0
  %790 = vmatmul.mubr.f32.gmra.mrb[0].mxu0 %v702
  %v791 = vpop.f32.mrb[0].mxu0
  %v792 = vadd.f32 0.0, %v791
  %v793 = vpop.f32.mrb[0].mxu0
  %794 = vdwg.mxu0
  %v796 = vsel %vm691, %v671, 0
  %v799 = vsel %vm691, %v672, 0
  %v802 = vsel %vm691, %v673, 0
  %v805 = vsel %vm691, %v674, 0
  %v808 = vsel %vm691, %v58, 0
  %v811 = vsel %vm691, %v59, 0
  %813 = vmatprep.subr.mxu0 0.0
  %814 = vmatpush1.xpose.msra.mxu0 %v808
  %815 = vmatprep.subr.mxu0 0.0
  %816 = vmatpush1.xpose.msra.mxu0 %v811
  %817 = vmatprep.subr.mxu0 0.0
  %818 = vmatpush1.xpose.msra.mxu0 0.0
  %819 = vmatprep.subr.mxu0 0.0
  %820 = vmatpush1.xpose.msra.mxu0 0.0
  %821 = vmatprep.subr.mxu0 0.0
  %822 = vmatpush1.xpose.msra.mxu0 0.0
  %823 = vmatprep.subr.mxu0 0.0
  %824 = vmatpush1.xpose.msra.mxu0 0.0
  %825 = vmatprep.subr.mxu0 0.0
  %826 = vmatpush1.xpose.msra.mxu0 0.0
  %827 = vmatprep.subr.mxu0 0.0
  %828 = vmatpush1.xpose.msra.mxu0 0.0
  %829 = vmatprep.subr.mxu0 0.0
  %830 = vmatpush1.xpose.msra.mxu0 0.0
  %831 = vmatprep.subr.mxu0 0.0
  %832 = vmatpush1.xpose.msra.mxu0 0.0
  %833 = vmatprep.subr.mxu0 0.0
  %834 = vmatpush1.xpose.msra.mxu0 0.0
  %835 = vmatprep.subr.mxu0 0.0
  %836 = vmatpush1.xpose.msra.mxu0 0.0
  %837 = vmatprep.subr.mxu0 0.0
  %838 = vmatpush1.xpose.msra.mxu0 0.0
  %839 = vmatprep.subr.mxu0 0.0
  %840 = vmatpush1.xpose.msra.mxu0 0.0
  %841 = vmatprep.subr.mxu0 0.0
  %842 = vmatpush1.xpose.msra.mxu0 0.0
  %843 = vmatprep.subr.mxu0 0.0
  %844 = vmatpush1.xpose.msra.mxu0 0.0
  %845 = vmatprep.subr.mxu0 0.0
  %846 = vmatpush1.xpose.msra.mxu0 0.0
  %847 = vmatprep.subr.mxu0 0.0
  %848 = vmatpush1.xpose.msra.mxu0 0.0
  %849 = vmatprep.subr.mxu0 0.0
  %850 = vmatpush1.xpose.msra.mxu0 0.0
  %851 = vmatprep.subr.mxu0 0.0
  %852 = vmatpush1.xpose.msra.mxu0 0.0
  %853 = vmatprep.subr.mxu0 0.0
  %854 = vmatpush1.xpose.msra.mxu0 0.0
  %855 = vmatprep.subr.mxu0 0.0
  %856 = vmatpush1.xpose.msra.mxu0 0.0
  %857 = vmatprep.subr.mxu0 0.0
  %858 = vmatpush1.xpose.msra.mxu0 0.0
  %859 = vmatprep.subr.mxu0 0.0
  %860 = vmatpush1.xpose.msra.mxu0 0.0
  %861 = vmatprep.subr.mxu0 0.0
  %862 = vmatpush1.xpose.msra.mxu0 0.0
  %863 = vmatprep.subr.mxu0 0.0
  %864 = vmatpush1.xpose.msra.mxu0 0.0
  %865 = vmatprep.subr.mxu0 0.0
  %866 = vmatpush1.xpose.msra.mxu0 0.0
  %867 = vmatprep.subr.mxu0 0.0
  %868 = vmatpush1.xpose.msra.mxu0 0.0
  %869 = vmatprep.subr.mxu0 0.0
  %870 = vmatpush1.xpose.msra.mxu0 0.0
  %871 = vmatprep.subr.mxu0 0.0
  %872 = vmatpush1.xpose.msra.mxu0 0.0
  %873 = vmatprep.subr.mxu0 0.0
  %874 = vmatpush1.xpose.msra.mxu0 0.0
  %875 = vmatprep.subr.mxu0 0.0
  %876 = vmatpush1.xpose.msra.mxu0 0.0
  %877 = vmatprep.mubr.f32.mxu0 0.0
  %878 = vmatmul.mubr.f32.gmra.mrb[0].mxu0 %v796
  %v879 = vpop.f32.mrb[0].mxu0
  %v880 = vadd.f32 0.0, %v879
  %v881 = vpop.f32.mrb[0].mxu0
  %882 = vmatprep.mubr.f32.mxu0 0.0
  %883 = vmatmul.mubr.f32.gmra.mrb[0].mxu0 %v799
  %v884 = vpop.f32.mrb[0].mxu0
  %v885 = vadd.f32 0.0, %v884
  %v886 = vpop.f32.mrb[0].mxu0
  %887 = vmatprep.mubr.f32.mxu0 0.0
  %888 = vmatmul.mubr.f32.gmra.mrb[0].mxu0 %v802
  %v889 = vpop.f32.mrb[0].mxu0
  %v890 = vadd.f32 0.0, %v889
  %v891 = vpop.f32.mrb[0].mxu0
  %892 = vmatprep.mubr.f32.mxu0 0.0
  %893 = vmatmul.mubr.f32.gmra.mrb[0].mxu0 %v805
  %v894 = vpop.f32.mrb[0].mxu0
  %v895 = vadd.f32 0.0, %v894
  %v896 = vpop.f32.mrb[0].mxu0
  %897 = vdwg.mxu0
  %v899 = vsel %vm691, %v675, 0
  %v902 = vsel %vm691, %v676, 0
  %v905 = vsel %vm691, %v677, 0
  %v908 = vsel %vm691, %v678, 0
  %v911 = vsel %vm691, %v60, 0
  %v914 = vsel %vm691, %v61, 0
  %916 = vmatprep.subr.mxu0 0.0
  %917 = vmatpush1.xpose.msra.mxu0 %v911
  %918 = vmatprep.subr.mxu0 0.0
  %919 = vmatpush1.xpose.msra.mxu0 %v914
  %920 = vmatprep.subr.mxu0 0.0
  %921 = vmatpush1.xpose.msra.mxu0 0.0
  %922 = vmatprep.subr.mxu0 0.0
  %923 = vmatpush1.xpose.msra.mxu0 0.0
  %924 = vmatprep.subr.mxu0 0.0
  %925 = vmatpush1.xpose.msra.mxu0 0.0
  %926 = vmatprep.subr.mxu0 0.0
  %927 = vmatpush1.xpose.msra.mxu0 0.0
  %928 = vmatprep.subr.mxu0 0.0
  %929 = vmatpush1.xpose.msra.mxu0 0.0
  %930 = vmatprep.subr.mxu0 0.0
  %931 = vmatpush1.xpose.msra.mxu0 0.0
  %932 = vmatprep.subr.mxu0 0.0
  %933 = vmatpush1.xpose.msra.mxu0 0.0
  %934 = vmatprep.subr.mxu0 0.0
  %935 = vmatpush1.xpose.msra.mxu0 0.0
  %936 = vmatprep.subr.mxu0 0.0
  %937 = vmatpush1.xpose.msra.mxu0 0.0
  %938 = vmatprep.subr.mxu0 0.0
  %939 = vmatpush1.xpose.msra.mxu0 0.0
  %940 = vmatprep.subr.mxu0 0.0
  %941 = vmatpush1.xpose.msra.mxu0 0.0
  %942 = vmatprep.subr.mxu0 0.0
  %943 = vmatpush1.xpose.msra.mxu0 0.0
  %944 = vmatprep.subr.mxu0 0.0
  %945 = vmatpush1.xpose.msra.mxu0 0.0
  %946 = vmatprep.subr.mxu0 0.0
  %947 = vmatpush1.xpose.msra.mxu0 0.0
  %948 = vmatprep.subr.mxu0 0.0
  %949 = vmatpush1.xpose.msra.mxu0 0.0
  %950 = vmatprep.subr.mxu0 0.0
  %951 = vmatpush1.xpose.msra.mxu0 0.0
  %952 = vmatprep.subr.mxu0 0.0
  %953 = vmatpush1.xpose.msra.mxu0 0.0
  %954 = vmatprep.subr.mxu0 0.0
  %955 = vmatpush1.xpose.msra.mxu0 0.0
  %956 = vmatprep.subr.mxu0 0.0
  %957 = vmatpush1.xpose.msra.mxu0 0.0
  %958 = vmatprep.subr.mxu0 0.0
  %959 = vmatpush1.xpose.msra.mxu0 0.0
  %960 = vmatprep.subr.mxu0 0.0
  %961 = vmatpush1.xpose.msra.mxu0 0.0
  %962 = vmatprep.subr.mxu0 0.0
  %963 = vmatpush1.xpose.msra.mxu0 0.0
  %964 = vmatprep.subr.mxu0 0.0
  %965 = vmatpush1.xpose.msra.mxu0 0.0
  %966 = vmatprep.subr.mxu0 0.0
  %967 = vmatpush1.xpose.msra.mxu0 0.0
  %968 = vmatprep.subr.mxu0 0.0
  %969 = vmatpush1.xpose.msra.mxu0 0.0
  %970 = vmatprep.subr.mxu0 0.0
  %971 = vmatpush1.xpose.msra.mxu0 0.0
  %972 = vmatprep.subr.mxu0 0.0
  %973 = vmatpush1.xpose.msra.mxu0 0.0
  %974 = vmatprep.subr.mxu0 0.0
  %975 = vmatpush1.xpose.msra.mxu0 0.0
  %976 = vmatprep.subr.mxu0 0.0
  %977 = vmatpush1.xpose.msra.mxu0 0.0
  %978 = vmatprep.subr.mxu0 0.0
  %979 = vmatpush1.xpose.msra.mxu0 0.0
  %980 = vmatprep.mubr.f32.mxu0 0.0
  %981 = vmatmul.mubr.f32.gmra.mrb[0].mxu0 %v899
  %v982 = vpop.f32.mrb[0].mxu0
  %v983 = vadd.f32 0.0, %v982
  %v984 = vpop.f32.mrb[0].mxu0
  %985 = vmatprep.mubr.f32.mxu0 0.0
  %986 = vmatmul.mubr.f32.gmra.mrb[0].mxu0 %v902
  %v987 = vpop.f32.mrb[0].mxu0
  %v988 = vadd.f32 0.0, %v987
  %v989 = vpop.f32.mrb[0].mxu0
  %990 = vmatprep.mubr.f32.mxu0 0.0
  %991 = vmatmul.mubr.f32.gmra.mrb[0].mxu0 %v905
  %v992 = vpop.f32.mrb[0].mxu0
  %v993 = vadd.f32 0.0, %v992
  %v994 = vpop.f32.mrb[0].mxu0
  %995 = vmatprep.mubr.f32.mxu0 0.0
  %996 = vmatmul.mubr.f32.gmra.mrb[0].mxu0 %v908
  %v997 = vpop.f32.mrb[0].mxu0
  %v998 = vadd.f32 0.0, %v997
  %v999 = vpop.f32.mrb[0].mxu0
  %1000 = vdwg.mxu0
  %v1002 = vsel %vm691, %v679, 0
  %v1005 = vsel %vm691, %v680, 0
  %v1008 = vsel %vm691, %v681, 0
  %v1011 = vsel %vm691, %v682, 0
  %v1014 = vsel %vm691, %v62, 0
  %v1017 = vsel %vm691, %v63, 0
  %1019 = vmatprep.subr.mxu0 0.0
  %1020 = vmatpush1.xpose.msra.mxu0 %v1014
  %1021 = vmatprep.subr.mxu0 0.0
  %1022 = vmatpush1.xpose.msra.mxu0 %v1017
  %1023 = vmatprep.subr.mxu0 0.0
  %1024 = vmatpush1.xpose.msra.mxu0 0.0
  %1025 = vmatprep.subr.mxu0 0.0
  %1026 = vmatpush1.xpose.msra.mxu0 0.0
  %1027 = vmatprep.subr.mxu0 0.0
  %1028 = vmatpush1.xpose.msra.mxu0 0.0
  %1029 = vmatprep.subr.mxu0 0.0
  %1030 = vmatpush1.xpose.msra.mxu0 0.0
  %1031 = vmatprep.subr.mxu0 0.0
  %1032 = vmatpush1.xpose.msra.mxu0 0.0
  %1033 = vmatprep.subr.mxu0 0.0
  %1034 = vmatpush1.xpose.msra.mxu0 0.0
  %1035 = vmatprep.subr.mxu0 0.0
  %1036 = vmatpush1.xpose.msra.mxu0 0.0
  %1037 = vmatprep.subr.mxu0 0.0
  %1038 = vmatpush1.xpose.msra.mxu0 0.0
  %1039 = vmatprep.subr.mxu0 0.0
  %1040 = vmatpush1.xpose.msra.mxu0 0.0
  %1041 = vmatprep.subr.mxu0 0.0
  %1042 = vmatpush1.xpose.msra.mxu0 0.0
  %1043 = vmatprep.subr.mxu0 0.0
  %1044 = vmatpush1.xpose.msra.mxu0 0.0
  %1045 = vmatprep.subr.mxu0 0.0
  %1046 = vmatpush1.xpose.msra.mxu0 0.0
  %1047 = vmatprep.subr.mxu0 0.0
  %1048 = vmatpush1.xpose.msra.mxu0 0.0
  %1049 = vmatprep.subr.mxu0 0.0
  %1050 = vmatpush1.xpose.msra.mxu0 0.0
  %1051 = vmatprep.subr.mxu0 0.0
  %1052 = vmatpush1.xpose.msra.mxu0 0.0
  %1053 = vmatprep.subr.mxu0 0.0
  %1054 = vmatpush1.xpose.msra.mxu0 0.0
  %1055 = vmatprep.subr.mxu0 0.0
  %1056 = vmatpush1.xpose.msra.mxu0 0.0
  %1057 = vmatprep.subr.mxu0 0.0
  %1058 = vmatpush1.xpose.msra.mxu0 0.0
  %1059 = vmatprep.subr.mxu0 0.0
  %1060 = vmatpush1.xpose.msra.mxu0 0.0
  %1061 = vmatprep.subr.mxu0 0.0
  %1062 = vmatpush1.xpose.msra.mxu0 0.0
  %1063 = vmatprep.subr.mxu0 0.0
  %1064 = vmatpush1.xpose.msra.mxu0 0.0
  %1065 = vmatprep.subr.mxu0 0.0
  %1066 = vmatpush1.xpose.msra.mxu0 0.0
  %1067 = vmatprep.subr.mxu0 0.0
  %1068 = vmatpush1.xpose.msra.mxu0 0.0
  %1069 = vmatprep.subr.mxu0 0.0
  %1070 = vmatpush1.xpose.msra.mxu0 0.0
  %1071 = vmatprep.subr.mxu0 0.0
  %1072 = vmatpush1.xpose.msra.mxu0 0.0
  %1073 = vmatprep.subr.mxu0 0.0
  %1074 = vmatpush1.xpose.msra.mxu0 0.0
  %1075 = vmatprep.subr.mxu0 0.0
  %1076 = vmatpush1.xpose.msra.mxu0 0.0
  %1077 = vmatprep.subr.mxu0 0.0
  %1078 = vmatpush1.xpose.msra.mxu0 0.0
  %1079 = vmatprep.subr.mxu0 0.0
  %1080 = vmatpush1.xpose.msra.mxu0 0.0
  %1081 = vmatprep.subr.mxu0 0.0
  %1082 = vmatpush1.xpose.msra.mxu0 0.0
  %1083 = vmatprep.mubr.f32.mxu0 0.0
  %1084 = vmatmul.mubr.f32.gmra.mrb[0].mxu0 %v1002
  %v1085 = vpop.f32.mrb[0].mxu0
  %v1086 = vadd.f32 0.0, %v1085
  %v1087 = vpop.f32.mrb[0].mxu0
  %1088 = vmatprep.mubr.f32.mxu0 0.0
  %1089 = vmatmul.mubr.f32.gmra.mrb[0].mxu0 %v1005
  %v1090 = vpop.f32.mrb[0].mxu0
  %v1091 = vadd.f32 0.0, %v1090
  %v1092 = vpop.f32.mrb[0].mxu0
  %1093 = vmatprep.mubr.f32.mxu0 0.0
  %1094 = vmatmul.mubr.f32.gmra.mrb[0].mxu0 %v1008
  %v1095 = vpop.f32.mrb[0].mxu0
  %v1096 = vadd.f32 0.0, %v1095
  %v1097 = vpop.f32.mrb[0].mxu0
  %1098 = vmatprep.mubr.f32.mxu0 0.0
  %1099 = vmatmul.mubr.f32.gmra.mrb[0].mxu0 %v1011
  %v1100 = vpop.f32.mrb[0].mxu0
  %v1101 = vadd.f32 0.0, %v1100
  %v1102 = vpop.f32.mrb[0].mxu0
  %1103 = vdwg.mxu0
  %v1105 = vsel %vm691, %v683, 0
  %v1108 = vsel %vm691, %v684, 0
  %v1111 = vsel %vm691, %v685, 0
  %v1114 = vsel %vm691, %v686, 0
  %v1117 = vsel %vm691, %v64, 0
  %v1120 = vsel %vm691, %v65, 0
  %1122 = vmatprep.subr.mxu0 0.0
  %1123 = vmatpush1.xpose.msra.mxu0 %v1117
  %1124 = vmatprep.subr.mxu0 0.0
  %1125 = vmatpush1.xpose.msra.mxu0 %v1120
  %1126 = vmatprep.subr.mxu0 0.0
  %1127 = vmatpush1.xpose.msra.mxu0 0.0
  %1128 = vmatprep.subr.mxu0 0.0
  %1129 = vmatpush1.xpose.msra.mxu0 0.0
  %1130 = vmatprep.subr.mxu0 0.0
  %1131 = vmatpush1.xpose.msra.mxu0 0.0
  %1132 = vmatprep.subr.mxu0 0.0
  %1133 = vmatpush1.xpose.msra.mxu0 0.0
  %1134 = vmatprep.subr.mxu0 0.0
  %1135 = vmatpush1.xpose.msra.mxu0 0.0
  %1136 = vmatprep.subr.mxu0 0.0
  %1137 = vmatpush1.xpose.msra.mxu0 0.0
  %1138 = vmatprep.subr.mxu0 0.0
  %1139 = vmatpush1.xpose.msra.mxu0 0.0
  %1140 = vmatprep.subr.mxu0 0.0
  %1141 = vmatpush1.xpose.msra.mxu0 0.0
  %1142 = vmatprep.subr.mxu0 0.0
  %1143 = vmatpush1.xpose.msra.mxu0 0.0
  %1144 = vmatprep.subr.mxu0 0.0
  %1145 = vmatpush1.xpose.msra.mxu0 0.0
  %1146 = vmatprep.subr.mxu0 0.0
  %1147 = vmatpush1.xpose.msra.mxu0 0.0
  %1148 = vmatprep.subr.mxu0 0.0
  %1149 = vmatpush1.xpose.msra.mxu0 0.0
  %1150 = vmatprep.subr.mxu0 0.0
  %1151 = vmatpush1.xpose.msra.mxu0 0.0
  %1152 = vmatprep.subr.mxu0 0.0
  %1153 = vmatpush1.xpose.msra.mxu0 0.0
  %1154 = vmatprep.subr.mxu0 0.0
  %1155 = vmatpush1.xpose.msra.mxu0 0.0
  %1156 = vmatprep.subr.mxu0 0.0
  %1157 = vmatpush1.xpose.msra.mxu0 0.0
  %1158 = vmatprep.subr.mxu0 0.0
  %1159 = vmatpush1.xpose.msra.mxu0 0.0
  %1160 = vmatprep.subr.mxu0 0.0
  %1161 = vmatpush1.xpose.msra.mxu0 0.0
  %1162 = vmatprep.subr.mxu0 0.0
  %1163 = vmatpush1.xpose.msra.mxu0 0.0
  %1164 = vmatprep.subr.mxu0 0.0
  %1165 = vmatpush1.xpose.msra.mxu0 0.0
  %1166 = vmatprep.subr.mxu0 0.0
  %1167 = vmatpush1.xpose.msra.mxu0 0.0
  %1168 = vmatprep.subr.mxu0 0.0
  %1169 = vmatpush1.xpose.msra.mxu0 0.0
  %1170 = vmatprep.subr.mxu0 0.0
  %1171 = vmatpush1.xpose.msra.mxu0 0.0
  %1172 = vmatprep.subr.mxu0 0.0
  %1173 = vmatpush1.xpose.msra.mxu0 0.0
  %1174 = vmatprep.subr.mxu0 0.0
  %1175 = vmatpush1.xpose.msra.mxu0 0.0
  %1176 = vmatprep.subr.mxu0 0.0
  %1177 = vmatpush1.xpose.msra.mxu0 0.0
  %1178 = vmatprep.subr.mxu0 0.0
  %1179 = vmatpush1.xpose.msra.mxu0 0.0
  %1180 = vmatprep.subr.mxu0 0.0
  %1181 = vmatpush1.xpose.msra.mxu0 0.0
  %1182 = vmatprep.subr.mxu0 0.0
  %1183 = vmatpush1.xpose.msra.mxu0 0.0
  %1184 = vmatprep.subr.mxu0 0.0
  %1185 = vmatpush1.xpose.msra.mxu0 0.0
  %1186 = vmatprep.mubr.f32.mxu0 0.0
  %1187 = vmatmul.mubr.f32.gmra.mrb[0].mxu0 %v1105
  %v1188 = vpop.f32.mrb[0].mxu0
  %v1189 = vadd.f32 0.0, %v1188
  %v1190 = vpop.f32.mrb[0].mxu0
  %1191 = vmatprep.mubr.f32.mxu0 0.0
  %1192 = vmatmul.mubr.f32.gmra.mrb[0].mxu0 %v1108
  %v1193 = vpop.f32.mrb[0].mxu0
  %v1194 = vadd.f32 0.0, %v1193
  %v1195 = vpop.f32.mrb[0].mxu0
  %1196 = vmatprep.mubr.f32.mxu0 0.0
  %1197 = vmatmul.mubr.f32.gmra.mrb[0].mxu0 %v1111
  %v1198 = vpop.f32.mrb[0].mxu0
  %v1199 = vadd.f32 0.0, %v1198
  %v1200 = vpop.f32.mrb[0].mxu0
  %1201 = vmatprep.mubr.f32.mxu0 0.0
  %1202 = vmatmul.mubr.f32.gmra.mrb[0].mxu0 %v1114
  %v1203 = vpop.f32.mrb[0].mxu0
  %v1204 = vadd.f32 0.0, %v1203
  %v1205 = vpop.f32.mrb[0].mxu0
  %1206 = vdwg.mxu0
  %v1208 = vsel %vm691, %v687, 0
  %v1211 = vsel %vm691, %v688, 0
  %v1214 = vsel %vm691, %v689, 0
  %v1217 = vsel %vm691, %v690, 0
  %v1220 = vsel %vm691, %v66, 0
  %v1223 = vsel %vm691, %v67, 0
  %1225 = vmatprep.subr.mxu0 0.0
  %1226 = vmatpush1.xpose.msra.mxu0 %v1220
  %1227 = vmatprep.subr.mxu0 0.0
  %1228 = vmatpush1.xpose.msra.mxu0 %v1223
  %1229 = vmatprep.subr.mxu0 0.0
  %1230 = vmatpush1.xpose.msra.mxu0 0.0
  %1231 = vmatprep.subr.mxu0 0.0
  %1232 = vmatpush1.xpose.msra.mxu0 0.0
  %1233 = vmatprep.subr.mxu0 0.0
  %1234 = vmatpush1.xpose.msra.mxu0 0.0
  %1235 = vmatprep.subr.mxu0 0.0
  %1236 = vmatpush1.xpose.msra.mxu0 0.0
  %1237 = vmatprep.subr.mxu0 0.0
  %1238 = vmatpush1.xpose.msra.mxu0 0.0
  %1239 = vmatprep.subr.mxu0 0.0
  %1240 = vmatpush1.xpose.msra.mxu0 0.0
  %1241 = vmatprep.subr.mxu0 0.0
  %1242 = vmatpush1.xpose.msra.mxu0 0.0
  %1243 = vmatprep.subr.mxu0 0.0
  %1244 = vmatpush1.xpose.msra.mxu0 0.0
  %1245 = vmatprep.subr.mxu0 0.0
  %1246 = vmatpush1.xpose.msra.mxu0 0.0
  %1247 = vmatprep.subr.mxu0 0.0
  %1248 = vmatpush1.xpose.msra.mxu0 0.0
  %1249 = vmatprep.subr.mxu0 0.0
  %1250 = vmatpush1.xpose.msra.mxu0 0.0
  %1251 = vmatprep.subr.mxu0 0.0
  %1252 = vmatpush1.xpose.msra.mxu0 0.0
  %1253 = vmatprep.subr.mxu0 0.0
  %1254 = vmatpush1.xpose.msra.mxu0 0.0
  %1255 = vmatprep.subr.mxu0 0.0
  %1256 = vmatpush1.xpose.msra.mxu0 0.0
  %1257 = vmatprep.subr.mxu0 0.0
  %1258 = vmatpush1.xpose.msra.mxu0 0.0
  %1259 = vmatprep.subr.mxu0 0.0
  %1260 = vmatpush1.xpose.msra.mxu0 0.0
  %1261 = vmatprep.subr.mxu0 0.0
  %1262 = vmatpush1.xpose.msra.mxu0 0.0
  %1263 = vmatprep.subr.mxu0 0.0
  %1264 = vmatpush1.xpose.msra.mxu0 0.0
  %1265 = vmatprep.subr.mxu0 0.0
  %1266 = vmatpush1.xpose.msra.mxu0 0.0
  %1267 = vmatprep.subr.mxu0 0.0
  %1268 = vmatpush1.xpose.msra.mxu0 0.0
  %1269 = vmatprep.subr.mxu0 0.0
  %1270 = vmatpush1.xpose.msra.mxu0 0.0
  %1271 = vmatprep.subr.mxu0 0.0
  %1272 = vmatpush1.xpose.msra.mxu0 0.0
  %1273 = vmatprep.subr.mxu0 0.0
  %1274 = vmatpush1.xpose.msra.mxu0 0.0
  %1275 = vmatprep.subr.mxu0 0.0
  %1276 = vmatpush1.xpose.msra.mxu0 0.0
  %1277 = vmatprep.subr.mxu0 0.0
  %1278 = vmatpush1.xpose.msra.mxu0 0.0
  %1279 = vmatprep.subr.mxu0 0.0
  %1280 = vmatpush1.xpose.msra.mxu0 0.0
  %1281 = vmatprep.subr.mxu0 0.0
  %1282 = vmatpush1.xpose.msra.mxu0 0.0
  %1283 = vmatprep.subr.mxu0 0.0
  %1284 = vmatpush1.xpose.msra.mxu0 0.0
  %1285 = vmatprep.subr.mxu0 0.0
  %1286 = vmatpush1.xpose.msra.mxu0 0.0
  %1287 = vmatprep.subr.mxu0 0.0
  %1288 = vmatpush1.xpose.msra.mxu0 0.0
  %1289 = vmatprep.mubr.f32.mxu0 0.0
  %1290 = vmatmul.mubr.f32.gmra.mrb[0].mxu0 %v1208
  %v1291 = vpop.f32.mrb[0].mxu0
  %v1292 = vadd.f32 0.0, %v1291
  %v1293 = vpop.f32.mrb[0].mxu0
  %1294 = vmatprep.mubr.f32.mxu0 0.0
  %1295 = vmatmul.mubr.f32.gmra.mrb[0].mxu0 %v1211
  %v1296 = vpop.f32.mrb[0].mxu0
  %v1297 = vadd.f32 0.0, %v1296
  %v1298 = vpop.f32.mrb[0].mxu0
  %1299 = vmatprep.mubr.f32.mxu0 0.0
  %1300 = vmatmul.mubr.f32.gmra.mrb[0].mxu0 %v1214
  %v1301 = vpop.f32.mrb[0].mxu0
  %v1302 = vadd.f32 0.0, %v1301
  %v1303 = vpop.f32.mrb[0].mxu0
  %1304 = vmatprep.mubr.f32.mxu0 0.0
  %1305 = vmatmul.mubr.f32.gmra.mrb[0].mxu0 %v1217
  %v1306 = vpop.f32.mrb[0].mxu0
  %v1307 = vadd.f32 0.0, %v1306
  %v1308 = vpop.f32.mrb[0].mxu0
  %1309 = vdwg.mxu0
  %v1310 = vmul.f32 %v777, 0.35355338
  %v1311 = vmul.f32 %v782, 0.35355338
  %v1312 = vmul.f32 %v787, 0.35355338
  %v1313 = vmul.f32 %v792, 0.35355338
  %v1314 = vmul.f32 %v880, 0.35355338
  %v1315 = vmul.f32 %v885, 0.35355338
  %v1316 = vmul.f32 %v890, 0.35355338
  %v1317 = vmul.f32 %v895, 0.35355338
  %v1318 = vmul.f32 %v983, 0.35355338
  %v1319 = vmul.f32 %v988, 0.35355338
  %v1320 = vmul.f32 %v993, 0.35355338
  %v1321 = vmul.f32 %v998, 0.35355338
  %v1322 = vmul.f32 %v1086, 0.35355338
  %v1323 = vmul.f32 %v1091, 0.35355338
  %v1324 = vmul.f32 %v1096, 0.35355338
  %v1325 = vmul.f32 %v1101, 0.35355338
  %v1326 = vmul.f32 %v1189, 0.35355338
  %v1327 = vmul.f32 %v1194, 0.35355338
  %v1328 = vmul.f32 %v1199, 0.35355338
  %v1329 = vmul.f32 %v1204, 0.35355338
  %v1330 = vmul.f32 %v1292, 0.35355338
  %v1331 = vmul.f32 %v1297, 0.35355338
  %v1332 = vmul.f32 %v1302, 0.35355338
  %v1333 = vmul.f32 %v1307, 0.35355338
  %v1334 = vsel %vm84, %v1310, -inf
  %1335 = vmax.xlane.f32.xlu0 %v1334
  %v1336 = vpop.xlane.xlu0 %1335
  %v1337 = vsel %vm84, %v1311, -inf
  %1338 = vmax.xlane.f32.xlu0 %v1337
  %v1339 = vpop.xlane.xlu0 %1338
  %v1340 = vsel %vm84, %v1312, -inf
  %1341 = vmax.xlane.f32.xlu0 %v1340
  %v1342 = vpop.xlane.xlu0 %1341
  %v1343 = vsel %vm84, %v1313, -inf
  %1344 = vmax.xlane.f32.xlu0 %v1343
  %v1345 = vpop.xlane.xlu0 %1344
  %v1346 = vsel %vm84, %v1314, -inf
  %1347 = vmax.xlane.f32.xlu0 %v1346
  %v1348 = vpop.xlane.xlu0 %1347
  %v1349 = vsel %vm84, %v1315, -inf
  %1350 = vmax.xlane.f32.xlu0 %v1349
  %v1351 = vpop.xlane.xlu0 %1350
  %v1352 = vsel %vm84, %v1316, -inf
  %1353 = vmax.xlane.f32.xlu0 %v1352
  %v1354 = vpop.xlane.xlu0 %1353
  %v1355 = vsel %vm84, %v1317, -inf
  %1356 = vmax.xlane.f32.xlu0 %v1355
  %v1357 = vpop.xlane.xlu0 %1356
  %v1358 = vsel %vm84, %v1318, -inf
  %1359 = vmax.xlane.f32.xlu0 %v1358
  %v1360 = vpop.xlane.xlu0 %1359
  %v1361 = vsel %vm84, %v1319, -inf
  %1362 = vmax.xlane.f32.xlu0 %v1361
  %v1363 = vpop.xlane.xlu0 %1362
  %v1364 = vsel %vm84, %v1320, -inf
  %1365 = vmax.xlane.f32.xlu0 %v1364
  %v1366 = vpop.xlane.xlu0 %1365
  %v1367 = vsel %vm84, %v1321, -inf
  %1368 = vmax.xlane.f32.xlu0 %v1367
  %v1369 = vpop.xlane.xlu0 %1368
  %v1370 = vsel %vm84, %v1322, -inf
  %1371 = vmax.xlane.f32.xlu0 %v1370
  %v1372 = vpop.xlane.xlu0 %1371
  %v1373 = vsel %vm84, %v1323, -inf
  %1374 = vmax.xlane.f32.xlu0 %v1373
  %v1375 = vpop.xlane.xlu0 %1374
  %v1376 = vsel %vm84, %v1324, -inf
  %1377 = vmax.xlane.f32.xlu0 %v1376
  %v1378 = vpop.xlane.xlu0 %1377
  %v1379 = vsel %vm84, %v1325, -inf
  %1380 = vmax.xlane.f32.xlu0 %v1379
  %v1381 = vpop.xlane.xlu0 %1380
  %v1382 = vsel %vm84, %v1326, -inf
  %1383 = vmax.xlane.f32.xlu0 %v1382
  %v1384 = vpop.xlane.xlu0 %1383
  %v1385 = vsel %vm84, %v1327, -inf
  %1386 = vmax.xlane.f32.xlu0 %v1385
  %v1387 = vpop.xlane.xlu0 %1386
  %v1388 = vsel %vm84, %v1328, -inf
  %1389 = vmax.xlane.f32.xlu0 %v1388
  %v1390 = vpop.xlane.xlu0 %1389
  %v1391 = vsel %vm84, %v1329, -inf
  %1392 = vmax.xlane.f32.xlu0 %v1391
  %v1393 = vpop.xlane.xlu0 %1392
  %v1394 = vsel %vm84, %v1330, -inf
  %1395 = vmax.xlane.f32.xlu0 %v1394
  %v1396 = vpop.xlane.xlu0 %1395
  %v1397 = vsel %vm84, %v1331, -inf
  %1398 = vmax.xlane.f32.xlu0 %v1397
  %v1399 = vpop.xlane.xlu0 %1398
  %v1400 = vsel %vm84, %v1332, -inf
  %1401 = vmax.xlane.f32.xlu0 %v1400
  %v1402 = vpop.xlane.xlu0 %1401
  %v1403 = vsel %vm84, %v1333, -inf
  %1404 = vmax.xlane.f32.xlu0 %v1403
  %v1405 = vpop.xlane.xlu0 %1404
  %v1406 = vsub.f32 %v1310, %v1336
  %v1407 = vsub.f32 %v1311, %v1339
  %v1408 = vsub.f32 %v1312, %v1342
  %v1409 = vsub.f32 %v1313, %v1345
  %v1410 = vsub.f32 %v1314, %v1348
  %v1411 = vsub.f32 %v1315, %v1351
  %v1412 = vsub.f32 %v1316, %v1354
  %v1413 = vsub.f32 %v1317, %v1357
  %v1414 = vsub.f32 %v1318, %v1360
  %v1415 = vsub.f32 %v1319, %v1363
  %v1416 = vsub.f32 %v1320, %v1366
  %v1417 = vsub.f32 %v1321, %v1369
  %v1418 = vsub.f32 %v1322, %v1372
  %v1419 = vsub.f32 %v1323, %v1375
  %v1420 = vsub.f32 %v1324, %v1378
  %v1421 = vsub.f32 %v1325, %v1381
  %v1422 = vsub.f32 %v1326, %v1384
  %v1423 = vsub.f32 %v1327, %v1387
  %v1424 = vsub.f32 %v1328, %v1390
  %v1425 = vsub.f32 %v1329, %v1393
  %v1426 = vsub.f32 %v1330, %v1396
  %v1427 = vsub.f32 %v1331, %v1399
  %v1428 = vsub.f32 %v1332, %v1402
  %v1429 = vsub.f32 %v1333, %v1405
  %v1430 = vmul.f32 %v1406, 1.442695
  %v1431 = vpow.pop %v1430
  %v1432 = vmul.f32 %v1407, 1.442695
  %v1433 = vpow.pop %v1432
  %v1434 = vmul.f32 %v1408, 1.442695
  %v1435 = vpow.pop %v1434
  %v1436 = vmul.f32 %v1409, 1.442695
  %v1437 = vpow.pop %v1436
  %v1438 = vmul.f32 %v1410, 1.442695
  %v1439 = vpow.pop %v1438
  %v1440 = vmul.f32 %v1411, 1.442695
  %v1441 = vpow.pop %v1440
  %v1442 = vmul.f32 %v1412, 1.442695
  %v1443 = vpow.pop %v1442
  %v1444 = vmul.f32 %v1413, 1.442695
  %v1445 = vpow.pop %v1444
  %v1446 = vmul.f32 %v1414, 1.442695
  %v1447 = vpow.pop %v1446
  %v1448 = vmul.f32 %v1415, 1.442695
  %v1449 = vpow.pop %v1448
  %v1450 = vmul.f32 %v1416, 1.442695
  %v1451 = vpow.pop %v1450
  %v1452 = vmul.f32 %v1417, 1.442695
  %v1453 = vpow.pop %v1452
  %v1454 = vmul.f32 %v1418, 1.442695
  %v1455 = vpow.pop %v1454
  %v1456 = vmul.f32 %v1419, 1.442695
  %v1457 = vpow.pop %v1456
  %v1458 = vmul.f32 %v1420, 1.442695
  %v1459 = vpow.pop %v1458
  %v1460 = vmul.f32 %v1421, 1.442695
  %v1461 = vpow.pop %v1460
  %v1462 = vmul.f32 %v1422, 1.442695
  %v1463 = vpow.pop %v1462
  %v1464 = vmul.f32 %v1423, 1.442695
  %v1465 = vpow.pop %v1464
  %v1466 = vmul.f32 %v1424, 1.442695
  %v1467 = vpow.pop %v1466
  %v1468 = vmul.f32 %v1425, 1.442695
  %v1469 = vpow.pop %v1468
  %v1470 = vmul.f32 %v1426, 1.442695
  %v1471 = vpow.pop %v1470
  %v1472 = vmul.f32 %v1427, 1.442695
  %v1473 = vpow.pop %v1472
  %v1474 = vmul.f32 %v1428, 1.442695
  %v1475 = vpow.pop %v1474
  %v1476 = vmul.f32 %v1429, 1.442695
  %v1477 = vpow.pop %v1476
  %v1478 = vsel %vm84, %v1431, 0.0
  %1479 = vadd.xlane.f32.xlu0 %v1478
  %v1480 = vpop.xlane.xlu0 %1479
  %v1481 = vsel %vm84, %v1433, 0.0
  %1482 = vadd.xlane.f32.xlu0 %v1481
  %v1483 = vpop.xlane.xlu0 %1482
  %v1484 = vsel %vm84, %v1435, 0.0
  %1485 = vadd.xlane.f32.xlu0 %v1484
  %v1486 = vpop.xlane.xlu0 %1485
  %v1487 = vsel %vm84, %v1437, 0.0
  %1488 = vadd.xlane.f32.xlu0 %v1487
  %v1489 = vpop.xlane.xlu0 %1488
  %v1490 = vsel %vm84, %v1439, 0.0
  %1491 = vadd.xlane.f32.xlu0 %v1490
  %v1492 = vpop.xlane.xlu0 %1491
  %v1493 = vsel %vm84, %v1441, 0.0
  %1494 = vadd.xlane.f32.xlu0 %v1493
  %v1495 = vpop.xlane.xlu0 %1494
  %v1496 = vsel %vm84, %v1443, 0.0
  %1497 = vadd.xlane.f32.xlu0 %v1496
  %v1498 = vpop.xlane.xlu0 %1497
  %v1499 = vsel %vm84, %v1445, 0.0
  %1500 = vadd.xlane.f32.xlu0 %v1499
  %v1501 = vpop.xlane.xlu0 %1500
  %v1502 = vsel %vm84, %v1447, 0.0
  %1503 = vadd.xlane.f32.xlu0 %v1502
  %v1504 = vpop.xlane.xlu0 %1503
  %v1505 = vsel %vm84, %v1449, 0.0
  %1506 = vadd.xlane.f32.xlu0 %v1505
  %v1507 = vpop.xlane.xlu0 %1506
  %v1508 = vsel %vm84, %v1451, 0.0
  %1509 = vadd.xlane.f32.xlu0 %v1508
  %v1510 = vpop.xlane.xlu0 %1509
  %v1511 = vsel %vm84, %v1453, 0.0
  %1512 = vadd.xlane.f32.xlu0 %v1511
  %v1513 = vpop.xlane.xlu0 %1512
  %v1514 = vsel %vm84, %v1455, 0.0
  %1515 = vadd.xlane.f32.xlu0 %v1514
  %v1516 = vpop.xlane.xlu0 %1515
  %v1517 = vsel %vm84, %v1457, 0.0
  %1518 = vadd.xlane.f32.xlu0 %v1517
  %v1519 = vpop.xlane.xlu0 %1518
  %v1520 = vsel %vm84, %v1459, 0.0
  %1521 = vadd.xlane.f32.xlu0 %v1520
  %v1522 = vpop.xlane.xlu0 %1521
  %v1523 = vsel %vm84, %v1461, 0.0
  %1524 = vadd.xlane.f32.xlu0 %v1523
  %v1525 = vpop.xlane.xlu0 %1524
  %v1526 = vsel %vm84, %v1463, 0.0
  %1527 = vadd.xlane.f32.xlu0 %v1526
  %v1528 = vpop.xlane.xlu0 %1527
  %v1529 = vsel %vm84, %v1465, 0.0
  %1530 = vadd.xlane.f32.xlu0 %v1529
  %v1531 = vpop.xlane.xlu0 %1530
  %v1532 = vsel %vm84, %v1467, 0.0
  %1533 = vadd.xlane.f32.xlu0 %v1532
  %v1534 = vpop.xlane.xlu0 %1533
  %v1535 = vsel %vm84, %v1469, 0.0
  %1536 = vadd.xlane.f32.xlu0 %v1535
  %v1537 = vpop.xlane.xlu0 %1536
  %v1538 = vsel %vm84, %v1471, 0.0
  %1539 = vadd.xlane.f32.xlu0 %v1538
  %v1540 = vpop.xlane.xlu0 %1539
  %v1541 = vsel %vm84, %v1473, 0.0
  %1542 = vadd.xlane.f32.xlu0 %v1541
  %v1543 = vpop.xlane.xlu0 %1542
  %v1544 = vsel %vm84, %v1475, 0.0
  %1545 = vadd.xlane.f32.xlu0 %v1544
  %v1546 = vpop.xlane.xlu0 %1545
  %v1547 = vsel %vm84, %v1477, 0.0
  %1548 = vadd.xlane.f32.xlu0 %v1547
  %v1549 = vpop.xlane.xlu0 %1548
  %v1550 = vrcp.pop %v1480
  %v1551 = vmul.f32 %v1431, %v1550
  %v1552 = vrcp.pop %v1483
  %v1553 = vmul.f32 %v1433, %v1552
  %v1554 = vrcp.pop %v1486
  %v1555 = vmul.f32 %v1435, %v1554
  %v1556 = vrcp.pop %v1489
  %v1557 = vmul.f32 %v1437, %v1556
  %v1558 = vrcp.pop %v1492
  %v1559 = vmul.f32 %v1439, %v1558
  %v1560 = vrcp.pop %v1495
  %v1561 = vmul.f32 %v1441, %v1560
  %v1562 = vrcp.pop %v1498
  %v1563 = vmul.f32 %v1443, %v1562
  %v1564 = vrcp.pop %v1501
  %v1565 = vmul.f32 %v1445, %v1564
  %v1566 = vrcp.pop %v1504
  %v1567 = vmul.f32 %v1447, %v1566
  %v1568 = vrcp.pop %v1507
  %v1569 = vmul.f32 %v1449, %v1568
  %v1570 = vrcp.pop %v1510
  %v1571 = vmul.f32 %v1451, %v1570
  %v1572 = vrcp.pop %v1513
  %v1573 = vmul.f32 %v1453, %v1572
  %v1574 = vrcp.pop %v1516
  %v1575 = vmul.f32 %v1455, %v1574
  %v1576 = vrcp.pop %v1519
  %v1577 = vmul.f32 %v1457, %v1576
  %v1578 = vrcp.pop %v1522
  %v1579 = vmul.f32 %v1459, %v1578
  %v1580 = vrcp.pop %v1525
  %v1581 = vmul.f32 %v1461, %v1580
  %v1582 = vrcp.pop %v1528
  %v1583 = vmul.f32 %v1463, %v1582
  %v1584 = vrcp.pop %v1531
  %v1585 = vmul.f32 %v1465, %v1584
  %v1586 = vrcp.pop %v1534
  %v1587 = vmul.f32 %v1467, %v1586
  %v1588 = vrcp.pop %v1537
  %v1589 = vmul.f32 %v1469, %v1588
  %v1590 = vrcp.pop %v1540
  %v1591 = vmul.f32 %v1471, %v1590
  %v1592 = vrcp.pop %v1543
  %v1593 = vmul.f32 %v1473, %v1592
  %v1594 = vrcp.pop %v1546
  %v1595 = vmul.f32 %v1475, %v1594
  %v1596 = vrcp.pop %v1549
  %v1597 = vmul.f32 %v1477, %v1596
  %v1599 = vsel %vm84, %v1551, 0
  %v1602 = vsel %vm84, %v1553, 0
  %v1605 = vsel %vm84, %v1555, 0
  %v1608 = vsel %vm84, %v1557, 0
  %1610 = vmatprep.subr.mxu0 0.0
  %1611 = vmatpush1.msra.mxu0 %v68
  %1612 = vmatprep.subr.mxu0 0.0
  %1613 = vmatpush1.msra.mxu0 %v69
  %1614 = vmatprep.subr.mxu0 0.0
  %1615 = vmatpush1.msra.mxu0 0.0
  %1616 = vmatprep.subr.mxu0 0.0
  %1617 = vmatpush1.msra.mxu0 0.0
  %1618 = vmatprep.subr.mxu0 0.0
  %1619 = vmatpush1.msra.mxu0 0.0
  %1620 = vmatprep.subr.mxu0 0.0
  %1621 = vmatpush1.msra.mxu0 0.0
  %1622 = vmatprep.subr.mxu0 0.0
  %1623 = vmatpush1.msra.mxu0 0.0
  %1624 = vmatprep.subr.mxu0 0.0
  %1625 = vmatpush1.msra.mxu0 0.0
  %1626 = vmatprep.subr.mxu0 0.0
  %1627 = vmatpush1.msra.mxu0 0.0
  %1628 = vmatprep.subr.mxu0 0.0
  %1629 = vmatpush1.msra.mxu0 0.0
  %1630 = vmatprep.subr.mxu0 0.0
  %1631 = vmatpush1.msra.mxu0 0.0
  %1632 = vmatprep.subr.mxu0 0.0
  %1633 = vmatpush1.msra.mxu0 0.0
  %1634 = vmatprep.subr.mxu0 0.0
  %1635 = vmatpush1.msra.mxu0 0.0
  %1636 = vmatprep.subr.mxu0 0.0
  %1637 = vmatpush1.msra.mxu0 0.0
  %1638 = vmatprep.subr.mxu0 0.0
  %1639 = vmatpush1.msra.mxu0 0.0
  %1640 = vmatprep.subr.mxu0 0.0
  %1641 = vmatpush1.msra.mxu0 0.0
  %1642 = vmatprep.subr.mxu0 0.0
  %1643 = vmatpush1.msra.mxu0 0.0
  %1644 = vmatprep.subr.mxu0 0.0
  %1645 = vmatpush1.msra.mxu0 0.0
  %1646 = vmatprep.subr.mxu0 0.0
  %1647 = vmatpush1.msra.mxu0 0.0
  %1648 = vmatprep.subr.mxu0 0.0
  %1649 = vmatpush1.msra.mxu0 0.0
  %1650 = vmatprep.subr.mxu0 0.0
  %1651 = vmatpush1.msra.mxu0 0.0
  %1652 = vmatprep.subr.mxu0 0.0
  %1653 = vmatpush1.msra.mxu0 0.0
  %1654 = vmatprep.subr.mxu0 0.0
  %1655 = vmatpush1.msra.mxu0 0.0
  %1656 = vmatprep.subr.mxu0 0.0
  %1657 = vmatpush1.msra.mxu0 0.0
  %1658 = vmatprep.subr.mxu0 0.0
  %1659 = vmatpush1.msra.mxu0 0.0
  %1660 = vmatprep.subr.mxu0 0.0
  %1661 = vmatpush1.msra.mxu0 0.0
  %1662 = vmatprep.subr.mxu0 0.0
  %1663 = vmatpush1.msra.mxu0 0.0
  %1664 = vmatprep.subr.mxu0 0.0
  %1665 = vmatpush1.msra.mxu0 0.0
  %1666 = vmatprep.subr.mxu0 0.0
  %1667 = vmatpush1.msra.mxu0 0.0
  %1668 = vmatprep.subr.mxu0 0.0
  %1669 = vmatpush1.msra.mxu0 0.0
  %1670 = vmatprep.subr.mxu0 0.0
  %1671 = vmatpush1.msra.mxu0 0.0
  %1672 = vmatprep.subr.mxu0 0.0
  %1673 = vmatpush1.msra.mxu0 0.0
  %1674 = vmatprep.mubr.f32.mxu0 0.0
  %1675 = vmatmul.mubr.f32.gmra.mrb[0].mxu0 %v1599
  %v1676 = vpop.f32.mrb[0].mxu0
  %v1677 = vadd.f32 0.0, %v1676
  %v1678 = vpop.f32.mrb[0].mxu0
  %1679 = vmatprep.mubr.f32.mxu0 0.0
  %1680 = vmatmul.mubr.f32.gmra.mrb[0].mxu0 %v1602
  %v1681 = vpop.f32.mrb[0].mxu0
  %v1682 = vadd.f32 0.0, %v1681
  %v1683 = vpop.f32.mrb[0].mxu0
  %1684 = vmatprep.mubr.f32.mxu0 0.0
  %1685 = vmatmul.mubr.f32.gmra.mrb[0].mxu0 %v1605
  %v1686 = vpop.f32.mrb[0].mxu0
  %v1687 = vadd.f32 0.0, %v1686
  %v1688 = vpop.f32.mrb[0].mxu0
  %1689 = vmatprep.mubr.f32.mxu0 0.0
  %1690 = vmatmul.mubr.f32.gmra.mrb[0].mxu0 %v1608
  %v1691 = vpop.f32.mrb[0].mxu0
  %v1692 = vadd.f32 0.0, %v1691
  %v1693 = vpop.f32.mrb[0].mxu0
  %1694 = vdwg.mxu0
  %v1696 = vsel %vm84, %v1559, 0
  %v1699 = vsel %vm84, %v1561, 0
  %v1702 = vsel %vm84, %v1563, 0
  %v1705 = vsel %vm84, %v1565, 0
  %1707 = vmatprep.subr.mxu0 0.0
  %1708 = vmatpush1.msra.mxu0 %v70
  %1709 = vmatprep.subr.mxu0 0.0
  %1710 = vmatpush1.msra.mxu0 %v71
  %1711 = vmatprep.subr.mxu0 0.0
  %1712 = vmatpush1.msra.mxu0 0.0
  %1713 = vmatprep.subr.mxu0 0.0
  %1714 = vmatpush1.msra.mxu0 0.0
  %1715 = vmatprep.subr.mxu0 0.0
  %1716 = vmatpush1.msra.mxu0 0.0
  %1717 = vmatprep.subr.mxu0 0.0
  %1718 = vmatpush1.msra.mxu0 0.0
  %1719 = vmatprep.subr.mxu0 0.0
  %1720 = vmatpush1.msra.mxu0 0.0
  %1721 = vmatprep.subr.mxu0 0.0
  %1722 = vmatpush1.msra.mxu0 0.0
  %1723 = vmatprep.subr.mxu0 0.0
  %1724 = vmatpush1.msra.mxu0 0.0
  %1725 = vmatprep.subr.mxu0 0.0
  %1726 = vmatpush1.msra.mxu0 0.0
  %1727 = vmatprep.subr.mxu0 0.0
  %1728 = vmatpush1.msra.mxu0 0.0
  %1729 = vmatprep.subr.mxu0 0.0
  %1730 = vmatpush1.msra.mxu0 0.0
  %1731 = vmatprep.subr.mxu0 0.0
  %1732 = vmatpush1.msra.mxu0 0.0
  %1733 = vmatprep.subr.mxu0 0.0
  %1734 = vmatpush1.msra.mxu0 0.0
  %1735 = vmatprep.subr.mxu0 0.0
  %1736 = vmatpush1.msra.mxu0 0.0
  %1737 = vmatprep.subr.mxu0 0.0
  %1738 = vmatpush1.msra.mxu0 0.0
  %1739 = vmatprep.subr.mxu0 0.0
  %1740 = vmatpush1.msra.mxu0 0.0
  %1741 = vmatprep.subr.mxu0 0.0
  %1742 = vmatpush1.msra.mxu0 0.0
  %1743 = vmatprep.subr.mxu0 0.0
  %1744 = vmatpush1.msra.mxu0 0.0
  %1745 = vmatprep.subr.mxu0 0.0
  %1746 = vmatpush1.msra.mxu0 0.0
  %1747 = vmatprep.subr.mxu0 0.0
  %1748 = vmatpush1.msra.mxu0 0.0
  %1749 = vmatprep.subr.mxu0 0.0
  %1750 = vmatpush1.msra.mxu0 0.0
  %1751 = vmatprep.subr.mxu0 0.0
  %1752 = vmatpush1.msra.mxu0 0.0
  %1753 = vmatprep.subr.mxu0 0.0
  %1754 = vmatpush1.msra.mxu0 0.0
  %1755 = vmatprep.subr.mxu0 0.0
  %1756 = vmatpush1.msra.mxu0 0.0
  %1757 = vmatprep.subr.mxu0 0.0
  %1758 = vmatpush1.msra.mxu0 0.0
  %1759 = vmatprep.subr.mxu0 0.0
  %1760 = vmatpush1.msra.mxu0 0.0
  %1761 = vmatprep.subr.mxu0 0.0
  %1762 = vmatpush1.msra.mxu0 0.0
  %1763 = vmatprep.subr.mxu0 0.0
  %1764 = vmatpush1.msra.mxu0 0.0
  %1765 = vmatprep.subr.mxu0 0.0
  %1766 = vmatpush1.msra.mxu0 0.0
  %1767 = vmatprep.subr.mxu0 0.0
  %1768 = vmatpush1.msra.mxu0 0.0
  %1769 = vmatprep.subr.mxu0 0.0
  %1770 = vmatpush1.msra.mxu0 0.0
  %1771 = vmatprep.mubr.f32.mxu0 0.0
  %1772 = vmatmul.mubr.f32.gmra.mrb[0].mxu0 %v1696
  %v1773 = vpop.f32.mrb[0].mxu0
  %v1774 = vadd.f32 0.0, %v1773
  %v1775 = vpop.f32.mrb[0].mxu0
  %1776 = vmatprep.mubr.f32.mxu0 0.0
  %1777 = vmatmul.mubr.f32.gmra.mrb[0].mxu0 %v1699
  %v1778 = vpop.f32.mrb[0].mxu0
  %v1779 = vadd.f32 0.0, %v1778
  %v1780 = vpop.f32.mrb[0].mxu0
  %1781 = vmatprep.mubr.f32.mxu0 0.0
  %1782 = vmatmul.mubr.f32.gmra.mrb[0].mxu0 %v1702
  %v1783 = vpop.f32.mrb[0].mxu0
  %v1784 = vadd.f32 0.0, %v1783
  %v1785 = vpop.f32.mrb[0].mxu0
  %1786 = vmatprep.mubr.f32.mxu0 0.0
  %1787 = vmatmul.mubr.f32.gmra.mrb[0].mxu0 %v1705
  %v1788 = vpop.f32.mrb[0].mxu0
  %v1789 = vadd.f32 0.0, %v1788
  %v1790 = vpop.f32.mrb[0].mxu0
  %1791 = vdwg.mxu0
  %v1793 = vsel %vm84, %v1567, 0
  %v1796 = vsel %vm84, %v1569, 0
  %v1799 = vsel %vm84, %v1571, 0
  %v1802 = vsel %vm84, %v1573, 0
  %1804 = vmatprep.subr.mxu0 0.0
  %1805 = vmatpush1.msra.mxu0 %v72
  %1806 = vmatprep.subr.mxu0 0.0
  %1807 = vmatpush1.msra.mxu0 %v73
  %1808 = vmatprep.subr.mxu0 0.0
  %1809 = vmatpush1.msra.mxu0 0.0
  %1810 = vmatprep.subr.mxu0 0.0
  %1811 = vmatpush1.msra.mxu0 0.0
  %1812 = vmatprep.subr.mxu0 0.0
  %1813 = vmatpush1.msra.mxu0 0.0
  %1814 = vmatprep.subr.mxu0 0.0
  %1815 = vmatpush1.msra.mxu0 0.0
  %1816 = vmatprep.subr.mxu0 0.0
  %1817 = vmatpush1.msra.mxu0 0.0
  %1818 = vmatprep.subr.mxu0 0.0
  %1819 = vmatpush1.msra.mxu0 0.0
  %1820 = vmatprep.subr.mxu0 0.0
  %1821 = vmatpush1.msra.mxu0 0.0
  %1822 = vmatprep.subr.mxu0 0.0
  %1823 = vmatpush1.msra.mxu0 0.0
  %1824 = vmatprep.subr.mxu0 0.0
  %1825 = vmatpush1.msra.mxu0 0.0
  %1826 = vmatprep.subr.mxu0 0.0
  %1827 = vmatpush1.msra.mxu0 0.0
  %1828 = vmatprep.subr.mxu0 0.0
  %1829 = vmatpush1.msra.mxu0 0.0
  %1830 = vmatprep.subr.mxu0 0.0
  %1831 = vmatpush1.msra.mxu0 0.0
  %1832 = vmatprep.subr.mxu0 0.0
  %1833 = vmatpush1.msra.mxu0 0.0
  %1834 = vmatprep.subr.mxu0 0.0
  %1835 = vmatpush1.msra.mxu0 0.0
  %1836 = vmatprep.subr.mxu0 0.0
  %1837 = vmatpush1.msra.mxu0 0.0
  %1838 = vmatprep.subr.mxu0 0.0
  %1839 = vmatpush1.msra.mxu0 0.0
  %1840 = vmatprep.subr.mxu0 0.0
  %1841 = vmatpush1.msra.mxu0 0.0
  %1842 = vmatprep.subr.mxu0 0.0
  %1843 = vmatpush1.msra.mxu0 0.0
  %1844 = vmatprep.subr.mxu0 0.0
  %1845 = vmatpush1.msra.mxu0 0.0
  %1846 = vmatprep.subr.mxu0 0.0
  %1847 = vmatpush1.msra.mxu0 0.0
  %1848 = vmatprep.subr.mxu0 0.0
  %1849 = vmatpush1.msra.mxu0 0.0
  %1850 = vmatprep.subr.mxu0 0.0
  %1851 = vmatpush1.msra.mxu0 0.0
  %1852 = vmatprep.subr.mxu0 0.0
  %1853 = vmatpush1.msra.mxu0 0.0
  %1854 = vmatprep.subr.mxu0 0.0
  %1855 = vmatpush1.msra.mxu0 0.0
  %1856 = vmatprep.subr.mxu0 0.0
  %1857 = vmatpush1.msra.mxu0 0.0
  %1858 = vmatprep.subr.mxu0 0.0
  %1859 = vmatpush1.msra.mxu0 0.0
  %1860 = vmatprep.subr.mxu0 0.0
  %1861 = vmatpush1.msra.mxu0 0.0
  %1862 = vmatprep.subr.mxu0 0.0
  %1863 = vmatpush1.msra.mxu0 0.0
  %1864 = vmatprep.subr.mxu0 0.0
  %1865 = vmatpush1.msra.mxu0 0.0
  %1866 = vmatprep.subr.mxu0 0.0
  %1867 = vmatpush1.msra.mxu0 0.0
  %1868 = vmatprep.mubr.f32.mxu0 0.0
  %1869 = vmatmul.mubr.f32.gmra.mrb[0].mxu0 %v1793
  %v1870 = vpop.f32.mrb[0].mxu0
  %v1871 = vadd.f32 0.0, %v1870
  %v1872 = vpop.f32.mrb[0].mxu0
  %1873 = vmatprep.mubr.f32.mxu0 0.0
  %1874 = vmatmul.mubr.f32.gmra.mrb[0].mxu0 %v1796
  %v1875 = vpop.f32.mrb[0].mxu0
  %v1876 = vadd.f32 0.0, %v1875
  %v1877 = vpop.f32.mrb[0].mxu0
  %1878 = vmatprep.mubr.f32.mxu0 0.0
  %1879 = vmatmul.mubr.f32.gmra.mrb[0].mxu0 %v1799
  %v1880 = vpop.f32.mrb[0].mxu0
  %v1881 = vadd.f32 0.0, %v1880
  %v1882 = vpop.f32.mrb[0].mxu0
  %1883 = vmatprep.mubr.f32.mxu0 0.0
  %1884 = vmatmul.mubr.f32.gmra.mrb[0].mxu0 %v1802
  %v1885 = vpop.f32.mrb[0].mxu0
  %v1886 = vadd.f32 0.0, %v1885
  %v1887 = vpop.f32.mrb[0].mxu0
  %1888 = vdwg.mxu0
  %v1890 = vsel %vm84, %v1575, 0
  %v1893 = vsel %vm84, %v1577, 0
  %v1896 = vsel %vm84, %v1579, 0
  %v1899 = vsel %vm84, %v1581, 0
  %1901 = vmatprep.subr.mxu0 0.0
  %1902 = vmatpush1.msra.mxu0 %v74
  %1903 = vmatprep.subr.mxu0 0.0
  %1904 = vmatpush1.msra.mxu0 %v75
  %1905 = vmatprep.subr.mxu0 0.0
  %1906 = vmatpush1.msra.mxu0 0.0
  %1907 = vmatprep.subr.mxu0 0.0
  %1908 = vmatpush1.msra.mxu0 0.0
  %1909 = vmatprep.subr.mxu0 0.0
  %1910 = vmatpush1.msra.mxu0 0.0
  %1911 = vmatprep.subr.mxu0 0.0
  %1912 = vmatpush1.msra.mxu0 0.0
  %1913 = vmatprep.subr.mxu0 0.0
  %1914 = vmatpush1.msra.mxu0 0.0
  %1915 = vmatprep.subr.mxu0 0.0
  %1916 = vmatpush1.msra.mxu0 0.0
  %1917 = vmatprep.subr.mxu0 0.0
  %1918 = vmatpush1.msra.mxu0 0.0
  %1919 = vmatprep.subr.mxu0 0.0
  %1920 = vmatpush1.msra.mxu0 0.0
  %1921 = vmatprep.subr.mxu0 0.0
  %1922 = vmatpush1.msra.mxu0 0.0
  %1923 = vmatprep.subr.mxu0 0.0
  %1924 = vmatpush1.msra.mxu0 0.0
  %1925 = vmatprep.subr.mxu0 0.0
  %1926 = vmatpush1.msra.mxu0 0.0
  %1927 = vmatprep.subr.mxu0 0.0
  %1928 = vmatpush1.msra.mxu0 0.0
  %1929 = vmatprep.subr.mxu0 0.0
  %1930 = vmatpush1.msra.mxu0 0.0
  %1931 = vmatprep.subr.mxu0 0.0
  %1932 = vmatpush1.msra.mxu0 0.0
  %1933 = vmatprep.subr.mxu0 0.0
  %1934 = vmatpush1.msra.mxu0 0.0
  %1935 = vmatprep.subr.mxu0 0.0
  %1936 = vmatpush1.msra.mxu0 0.0
  %1937 = vmatprep.subr.mxu0 0.0
  %1938 = vmatpush1.msra.mxu0 0.0
  %1939 = vmatprep.subr.mxu0 0.0
  %1940 = vmatpush1.msra.mxu0 0.0
  %1941 = vmatprep.subr.mxu0 0.0
  %1942 = vmatpush1.msra.mxu0 0.0
  %1943 = vmatprep.subr.mxu0 0.0
  %1944 = vmatpush1.msra.mxu0 0.0
  %1945 = vmatprep.subr.mxu0 0.0
  %1946 = vmatpush1.msra.mxu0 0.0
  %1947 = vmatprep.subr.mxu0 0.0
  %1948 = vmatpush1.msra.mxu0 0.0
  %1949 = vmatprep.subr.mxu0 0.0
  %1950 = vmatpush1.msra.mxu0 0.0
  %1951 = vmatprep.subr.mxu0 0.0
  %1952 = vmatpush1.msra.mxu0 0.0
  %1953 = vmatprep.subr.mxu0 0.0
  %1954 = vmatpush1.msra.mxu0 0.0
  %1955 = vmatprep.subr.mxu0 0.0
  %1956 = vmatpush1.msra.mxu0 0.0
  %1957 = vmatprep.subr.mxu0 0.0
  %1958 = vmatpush1.msra.mxu0 0.0
  %1959 = vmatprep.subr.mxu0 0.0
  %1960 = vmatpush1.msra.mxu0 0.0
  %1961 = vmatprep.subr.mxu0 0.0
  %1962 = vmatpush1.msra.mxu0 0.0
  %1963 = vmatprep.subr.mxu0 0.0
  %1964 = vmatpush1.msra.mxu0 0.0
  %1965 = vmatprep.mubr.f32.mxu0 0.0
  %1966 = vmatmul.mubr.f32.gmra.mrb[0].mxu0 %v1890
  %v1967 = vpop.f32.mrb[0].mxu0
  %v1968 = vadd.f32 0.0, %v1967
  %v1969 = vpop.f32.mrb[0].mxu0
  %1970 = vmatprep.mubr.f32.mxu0 0.0
  %1971 = vmatmul.mubr.f32.gmra.mrb[0].mxu0 %v1893
  %v1972 = vpop.f32.mrb[0].mxu0
  %v1973 = vadd.f32 0.0, %v1972
  %v1974 = vpop.f32.mrb[0].mxu0
  %1975 = vmatprep.mubr.f32.mxu0 0.0
  %1976 = vmatmul.mubr.f32.gmra.mrb[0].mxu0 %v1896
  %v1977 = vpop.f32.mrb[0].mxu0
  %v1978 = vadd.f32 0.0, %v1977
  %v1979 = vpop.f32.mrb[0].mxu0
  %1980 = vmatprep.mubr.f32.mxu0 0.0
  %1981 = vmatmul.mubr.f32.gmra.mrb[0].mxu0 %v1899
  %v1982 = vpop.f32.mrb[0].mxu0
  %v1983 = vadd.f32 0.0, %v1982
  %v1984 = vpop.f32.mrb[0].mxu0
  %1985 = vdwg.mxu0
  %v1987 = vsel %vm84, %v1583, 0
  %v1990 = vsel %vm84, %v1585, 0
  %v1993 = vsel %vm84, %v1587, 0
  %v1996 = vsel %vm84, %v1589, 0
  %1998 = vmatprep.subr.mxu0 0.0
  %1999 = vmatpush1.msra.mxu0 %v76
  %2000 = vmatprep.subr.mxu0 0.0
  %2001 = vmatpush1.msra.mxu0 %v77
  %2002 = vmatprep.subr.mxu0 0.0
  %2003 = vmatpush1.msra.mxu0 0.0
  %2004 = vmatprep.subr.mxu0 0.0
  %2005 = vmatpush1.msra.mxu0 0.0
  %2006 = vmatprep.subr.mxu0 0.0
  %2007 = vmatpush1.msra.mxu0 0.0
  %2008 = vmatprep.subr.mxu0 0.0
  %2009 = vmatpush1.msra.mxu0 0.0
  %2010 = vmatprep.subr.mxu0 0.0
  %2011 = vmatpush1.msra.mxu0 0.0
  %2012 = vmatprep.subr.mxu0 0.0
  %2013 = vmatpush1.msra.mxu0 0.0
  %2014 = vmatprep.subr.mxu0 0.0
  %2015 = vmatpush1.msra.mxu0 0.0
  %2016 = vmatprep.subr.mxu0 0.0
  %2017 = vmatpush1.msra.mxu0 0.0
  %2018 = vmatprep.subr.mxu0 0.0
  %2019 = vmatpush1.msra.mxu0 0.0
  %2020 = vmatprep.subr.mxu0 0.0
  %2021 = vmatpush1.msra.mxu0 0.0
  %2022 = vmatprep.subr.mxu0 0.0
  %2023 = vmatpush1.msra.mxu0 0.0
  %2024 = vmatprep.subr.mxu0 0.0
  %2025 = vmatpush1.msra.mxu0 0.0
  %2026 = vmatprep.subr.mxu0 0.0
  %2027 = vmatpush1.msra.mxu0 0.0
  %2028 = vmatprep.subr.mxu0 0.0
  %2029 = vmatpush1.msra.mxu0 0.0
  %2030 = vmatprep.subr.mxu0 0.0
  %2031 = vmatpush1.msra.mxu0 0.0
  %2032 = vmatprep.subr.mxu0 0.0
  %2033 = vmatpush1.msra.mxu0 0.0
  %2034 = vmatprep.subr.mxu0 0.0
  %2035 = vmatpush1.msra.mxu0 0.0
  %2036 = vmatprep.subr.mxu0 0.0
  %2037 = vmatpush1.msra.mxu0 0.0
  %2038 = vmatprep.subr.mxu0 0.0
  %2039 = vmatpush1.msra.mxu0 0.0
  %2040 = vmatprep.subr.mxu0 0.0
  %2041 = vmatpush1.msra.mxu0 0.0
  %2042 = vmatprep.subr.mxu0 0.0
  %2043 = vmatpush1.msra.mxu0 0.0
  %2044 = vmatprep.subr.mxu0 0.0
  %2045 = vmatpush1.msra.mxu0 0.0
  %2046 = vmatprep.subr.mxu0 0.0
  %2047 = vmatpush1.msra.mxu0 0.0
  %2048 = vmatprep.subr.mxu0 0.0
  %2049 = vmatpush1.msra.mxu0 0.0
  %2050 = vmatprep.subr.mxu0 0.0
  %2051 = vmatpush1.msra.mxu0 0.0
  %2052 = vmatprep.subr.mxu0 0.0
  %2053 = vmatpush1.msra.mxu0 0.0
  %2054 = vmatprep.subr.mxu0 0.0
  %2055 = vmatpush1.msra.mxu0 0.0
  %2056 = vmatprep.subr.mxu0 0.0
  %2057 = vmatpush1.msra.mxu0 0.0
  %2058 = vmatprep.subr.mxu0 0.0
  %2059 = vmatpush1.msra.mxu0 0.0
  %2060 = vmatprep.subr.mxu0 0.0
  %2061 = vmatpush1.msra.mxu0 0.0
  %2062 = vmatprep.mubr.f32.mxu0 0.0
  %2063 = vmatmul.mubr.f32.gmra.mrb[0].mxu0 %v1987
  %v2064 = vpop.f32.mrb[0].mxu0
  %v2065 = vadd.f32 0.0, %v2064
  %v2066 = vpop.f32.mrb[0].mxu0
  %2067 = vmatprep.mubr.f32.mxu0 0.0
  %2068 = vmatmul.mubr.f32.gmra.mrb[0].mxu0 %v1990
  %v2069 = vpop.f32.mrb[0].mxu0
  %v2070 = vadd.f32 0.0, %v2069
  %v2071 = vpop.f32.mrb[0].mxu0
  %2072 = vmatprep.mubr.f32.mxu0 0.0
  %2073 = vmatmul.mubr.f32.gmra.mrb[0].mxu0 %v1993
  %v2074 = vpop.f32.mrb[0].mxu0
  %v2075 = vadd.f32 0.0, %v2074
  %v2076 = vpop.f32.mrb[0].mxu0
  %2077 = vmatprep.mubr.f32.mxu0 0.0
  %2078 = vmatmul.mubr.f32.gmra.mrb[0].mxu0 %v1996
  %v2079 = vpop.f32.mrb[0].mxu0
  %v2080 = vadd.f32 0.0, %v2079
  %v2081 = vpop.f32.mrb[0].mxu0
  %2082 = vdwg.mxu0
  %v2084 = vsel %vm84, %v1591, 0
  %v2087 = vsel %vm84, %v1593, 0
  %v2090 = vsel %vm84, %v1595, 0
  %v2093 = vsel %vm84, %v1597, 0
  %2095 = vmatprep.subr.mxu0 0.0
  %2096 = vmatpush1.msra.mxu0 %v78
  %2097 = vmatprep.subr.mxu0 0.0
  %2098 = vmatpush1.msra.mxu0 %v79
  %2099 = vmatprep.subr.mxu0 0.0
  %2100 = vmatpush1.msra.mxu0 0.0
  %2101 = vmatprep.subr.mxu0 0.0
  %2102 = vmatpush1.msra.mxu0 0.0
  %2103 = vmatprep.subr.mxu0 0.0
  %2104 = vmatpush1.msra.mxu0 0.0
  %2105 = vmatprep.subr.mxu0 0.0
  %2106 = vmatpush1.msra.mxu0 0.0
  %2107 = vmatprep.subr.mxu0 0.0
  %2108 = vmatpush1.msra.mxu0 0.0
  %2109 = vmatprep.subr.mxu0 0.0
  %2110 = vmatpush1.msra.mxu0 0.0
  %2111 = vmatprep.subr.mxu0 0.0
  %2112 = vmatpush1.msra.mxu0 0.0
  %2113 = vmatprep.subr.mxu0 0.0
  %2114 = vmatpush1.msra.mxu0 0.0
  %2115 = vmatprep.subr.mxu0 0.0
  %2116 = vmatpush1.msra.mxu0 0.0
  %2117 = vmatprep.subr.mxu0 0.0
  %2118 = vmatpush1.msra.mxu0 0.0
  %2119 = vmatprep.subr.mxu0 0.0
  %2120 = vmatpush1.msra.mxu0 0.0
  %2121 = vmatprep.subr.mxu0 0.0
  %2122 = vmatpush1.msra.mxu0 0.0
  %2123 = vmatprep.subr.mxu0 0.0
  %2124 = vmatpush1.msra.mxu0 0.0
  %2125 = vmatprep.subr.mxu0 0.0
  %2126 = vmatpush1.msra.mxu0 0.0
  %2127 = vmatprep.subr.mxu0 0.0
  %2128 = vmatpush1.msra.mxu0 0.0
  %2129 = vmatprep.subr.mxu0 0.0
  %2130 = vmatpush1.msra.mxu0 0.0
  %2131 = vmatprep.subr.mxu0 0.0
  %2132 = vmatpush1.msra.mxu0 0.0
  %2133 = vmatprep.subr.mxu0 0.0
  %2134 = vmatpush1.msra.mxu0 0.0
  %2135 = vmatprep.subr.mxu0 0.0
  %2136 = vmatpush1.msra.mxu0 0.0
  %2137 = vmatprep.subr.mxu0 0.0
  %2138 = vmatpush1.msra.mxu0 0.0
  %2139 = vmatprep.subr.mxu0 0.0
  %2140 = vmatpush1.msra.mxu0 0.0
  %2141 = vmatprep.subr.mxu0 0.0
  %2142 = vmatpush1.msra.mxu0 0.0
  %2143 = vmatprep.subr.mxu0 0.0
  %2144 = vmatpush1.msra.mxu0 0.0
  %2145 = vmatprep.subr.mxu0 0.0
  %2146 = vmatpush1.msra.mxu0 0.0
  %2147 = vmatprep.subr.mxu0 0.0
  %2148 = vmatpush1.msra.mxu0 0.0
  %2149 = vmatprep.subr.mxu0 0.0
  %2150 = vmatpush1.msra.mxu0 0.0
  %2151 = vmatprep.subr.mxu0 0.0
  %2152 = vmatpush1.msra.mxu0 0.0
  %2153 = vmatprep.subr.mxu0 0.0
  %2154 = vmatpush1.msra.mxu0 0.0
  %2155 = vmatprep.subr.mxu0 0.0
  %2156 = vmatpush1.msra.mxu0 0.0
  %2157 = vmatprep.subr.mxu0 0.0
  %2158 = vmatpush1.msra.mxu0 0.0
  %2159 = vmatprep.mubr.f32.mxu0 0.0
  %2160 = vmatmul.mubr.f32.gmra.mrb[0].mxu0 %v2084
  %v2161 = vpop.f32.mrb[0].mxu0
  %v2162 = vadd.f32 0.0, %v2161
  %v2163 = vpop.f32.mrb[0].mxu0
  %2164 = vmatprep.mubr.f32.mxu0 0.0
  %2165 = vmatmul.mubr.f32.gmra.mrb[0].mxu0 %v2087
  %v2166 = vpop.f32.mrb[0].mxu0
  %v2167 = vadd.f32 0.0, %v2166
  %v2168 = vpop.f32.mrb[0].mxu0
  %2169 = vmatprep.mubr.f32.mxu0 0.0
  %2170 = vmatmul.mubr.f32.gmra.mrb[0].mxu0 %v2090
  %v2171 = vpop.f32.mrb[0].mxu0
  %v2172 = vadd.f32 0.0, %v2171
  %v2173 = vpop.f32.mrb[0].mxu0
  %2174 = vmatprep.mubr.f32.mxu0 0.0
  %2175 = vmatmul.mubr.f32.gmra.mrb[0].mxu0 %v2093
  %v2176 = vpop.f32.mrb[0].mxu0
  %v2177 = vadd.f32 0.0, %v2176
  %v2178 = vpop.f32.mrb[0].mxu0
  %2179 = vdwg.mxu0
  %v2180 = vmul.f32 %v1677, %v80
  %v2181 = vmul.f32 %v1682, %v81
  %v2182 = vmul.f32 %v1687, %v82
  %v2183 = vmul.f32 %v1692, %v83
  %v2184 = vmul.f32 %v1774, %v80
  %v2185 = vmul.f32 %v1779, %v81
  %v2186 = vmul.f32 %v1784, %v82
  %v2187 = vmul.f32 %v1789, %v83
  %v2188 = vmul.f32 %v1871, %v80
  %v2189 = vmul.f32 %v1876, %v81
  %v2190 = vmul.f32 %v1881, %v82
  %v2191 = vmul.f32 %v1886, %v83
  %v2192 = vmul.f32 %v1968, %v80
  %v2193 = vmul.f32 %v1973, %v81
  %v2194 = vmul.f32 %v1978, %v82
  %v2195 = vmul.f32 %v1983, %v83
  %v2196 = vmul.f32 %v2065, %v80
  %v2197 = vmul.f32 %v2070, %v81
  %v2198 = vmul.f32 %v2075, %v82
  %v2199 = vmul.f32 %v2080, %v83
  %v2200 = vmul.f32 %v2162, %v80
  %v2201 = vmul.f32 %v2167, %v81
  %v2202 = vmul.f32 %v2172, %v82
  %v2203 = vmul.f32 %v2177, %v83
  %v2204 = vlaneseq
  %v2205 = vshrl.u32 %v2204, 7
  %v2206 = vsel %vm84, %v1551, -inf
  %v2207 = vrot.slane %v2206, 4
  %v2208 = vmax.f32 %v2206, %v2207
  %v2209 = vrot.slane %v2208, 2
  %v2210 = vmax.f32 %v2208, %v2209
  %v2211 = vrot.slane %v2210, 1
  %v2212 = vmax.f32 %v2210, %v2211
  %v2213 = vsel %vm84, %v1553, -inf
  %v2214 = vrot.slane %v2213, 4
  %v2215 = vmax.f32 %v2213, %v2214
  %v2216 = vrot.slane %v2215, 2
  %v2217 = vmax.f32 %v2215, %v2216
  %v2218 = vrot.slane %v2217, 1
  %v2219 = vmax.f32 %v2217, %v2218
  %v2220 = vsel %vm84, %v1555, -inf
  %v2221 = vrot.slane %v2220, 4
  %v2222 = vmax.f32 %v2220, %v2221
  %v2223 = vrot.slane %v2222, 2
  %v2224 = vmax.f32 %v2222, %v2223
  %v2225 = vrot.slane %v2224, 1
  %v2226 = vmax.f32 %v2224, %v2225
  %v2227 = vsel %vm84, %v1557, -inf
  %v2228 = vrot.slane %v2227, 4
  %v2229 = vmax.f32 %v2227, %v2228
  %v2230 = vrot.slane %v2229, 2
  %v2231 = vmax.f32 %v2229, %v2230
  %v2232 = vrot.slane %v2231, 1
  %v2233 = vmax.f32 %v2231, %v2232
  %v2234 = vsel %vm84, %v1559, -inf
  %v2235 = vrot.slane %v2234, 4
  %v2236 = vmax.f32 %v2234, %v2235
  %v2237 = vrot.slane %v2236, 2
  %v2238 = vmax.f32 %v2236, %v2237
  %v2239 = vrot.slane %v2238, 1
  %v2240 = vmax.f32 %v2238, %v2239
  %v2241 = vsel %vm84, %v1561, -inf
  %v2242 = vrot.slane %v2241, 4
  %v2243 = vmax.f32 %v2241, %v2242
  %v2244 = vrot.slane %v2243, 2
  %v2245 = vmax.f32 %v2243, %v2244
  %v2246 = vrot.slane %v2245, 1
  %v2247 = vmax.f32 %v2245, %v2246
  %v2248 = vsel %vm84, %v1563, -inf
  %v2249 = vrot.slane %v2248, 4
  %v2250 = vmax.f32 %v2248, %v2249
  %v2251 = vrot.slane %v2250, 2
  %v2252 = vmax.f32 %v2250, %v2251
  %v2253 = vrot.slane %v2252, 1
  %v2254 = vmax.f32 %v2252, %v2253
  %v2255 = vsel %vm84, %v1565, -inf
  %v2256 = vrot.slane %v2255, 4
  %v2257 = vmax.f32 %v2255, %v2256
  %v2258 = vrot.slane %v2257, 2
  %v2259 = vmax.f32 %v2257, %v2258
  %v2260 = vrot.slane %v2259, 1
  %v2261 = vmax.f32 %v2259, %v2260
  %v2262 = vsel %vm84, %v1567, -inf
  %v2263 = vrot.slane %v2262, 4
  %v2264 = vmax.f32 %v2262, %v2263
  %v2265 = vrot.slane %v2264, 2
  %v2266 = vmax.f32 %v2264, %v2265
  %v2267 = vrot.slane %v2266, 1
  %v2268 = vmax.f32 %v2266, %v2267
  %v2269 = vsel %vm84, %v1569, -inf
  %v2270 = vrot.slane %v2269, 4
  %v2271 = vmax.f32 %v2269, %v2270
  %v2272 = vrot.slane %v2271, 2
  %v2273 = vmax.f32 %v2271, %v2272
  %v2274 = vrot.slane %v2273, 1
  %v2275 = vmax.f32 %v2273, %v2274
  %v2276 = vsel %vm84, %v1571, -inf
  %v2277 = vrot.slane %v2276, 4
  %v2278 = vmax.f32 %v2276, %v2277
  %v2279 = vrot.slane %v2278, 2
  %v2280 = vmax.f32 %v2278, %v2279
  %v2281 = vrot.slane %v2280, 1
  %v2282 = vmax.f32 %v2280, %v2281
  %v2283 = vsel %vm84, %v1573, -inf
  %v2284 = vrot.slane %v2283, 4
  %v2285 = vmax.f32 %v2283, %v2284
  %v2286 = vrot.slane %v2285, 2
  %v2287 = vmax.f32 %v2285, %v2286
  %v2288 = vrot.slane %v2287, 1
  %v2289 = vmax.f32 %v2287, %v2288
  %v2290 = vsel %vm84, %v1575, -inf
  %v2291 = vrot.slane %v2290, 4
  %v2292 = vmax.f32 %v2290, %v2291
  %v2293 = vrot.slane %v2292, 2
  %v2294 = vmax.f32 %v2292, %v2293
  %v2295 = vrot.slane %v2294, 1
  %v2296 = vmax.f32 %v2294, %v2295
  %v2297 = vsel %vm84, %v1577, -inf
  %v2298 = vrot.slane %v2297, 4
  %v2299 = vmax.f32 %v2297, %v2298
  %v2300 = vrot.slane %v2299, 2
  %v2301 = vmax.f32 %v2299, %v2300
  %v2302 = vrot.slane %v2301, 1
  %v2303 = vmax.f32 %v2301, %v2302
  %v2304 = vsel %vm84, %v1579, -inf
  %v2305 = vrot.slane %v2304, 4
  %v2306 = vmax.f32 %v2304, %v2305
  %v2307 = vrot.slane %v2306, 2
  %v2308 = vmax.f32 %v2306, %v2307
  %v2309 = vrot.slane %v2308, 1
  %v2310 = vmax.f32 %v2308, %v2309
  %v2311 = vsel %vm84, %v1581, -inf
  %v2312 = vrot.slane %v2311, 4
  %v2313 = vmax.f32 %v2311, %v2312
  %v2314 = vrot.slane %v2313, 2
  %v2315 = vmax.f32 %v2313, %v2314
  %v2316 = vrot.slane %v2315, 1
  %v2317 = vmax.f32 %v2315, %v2316
  %v2318 = vsel %vm84, %v1583, -inf
  %v2319 = vrot.slane %v2318, 4
  %v2320 = vmax.f32 %v2318, %v2319
  %v2321 = vrot.slane %v2320, 2
  %v2322 = vmax.f32 %v2320, %v2321
  %v2323 = vrot.slane %v2322, 1
  %v2324 = vmax.f32 %v2322, %v2323
  %v2325 = vsel %vm84, %v1585, -inf
  %v2326 = vrot.slane %v2325, 4
  %v2327 = vmax.f32 %v2325, %v2326
  %v2328 = vrot.slane %v2327, 2
  %v2329 = vmax.f32 %v2327, %v2328
  %v2330 = vrot.slane %v2329, 1
  %v2331 = vmax.f32 %v2329, %v2330
  %v2332 = vsel %vm84, %v1587, -inf
  %v2333 = vrot.slane %v2332, 4
  %v2334 = vmax.f32 %v2332, %v2333
  %v2335 = vrot.slane %v2334, 2
  %v2336 = vmax.f32 %v2334, %v2335
  %v2337 = vrot.slane %v2336, 1
  %v2338 = vmax.f32 %v2336, %v2337
  %v2339 = vsel %vm84, %v1589, -inf
  %v2340 = vrot.slane %v2339, 4
  %v2341 = vmax.f32 %v2339, %v2340
  %v2342 = vrot.slane %v2341, 2
  %v2343 = vmax.f32 %v2341, %v2342
  %v2344 = vrot.slane %v2343, 1
  %v2345 = vmax.f32 %v2343, %v2344
  %v2346 = vsel %vm84, %v1591, -inf
  %v2347 = vrot.slane %v2346, 4
  %v2348 = vmax.f32 %v2346, %v2347
  %v2349 = vrot.slane %v2348, 2
  %v2350 = vmax.f32 %v2348, %v2349
  %v2351 = vrot.slane %v2350, 1
  %v2352 = vmax.f32 %v2350, %v2351
  %v2353 = vsel %vm84, %v1593, -inf
  %v2354 = vrot.slane %v2353, 4
  %v2355 = vmax.f32 %v2353, %v2354
  %v2356 = vrot.slane %v2355, 2
  %v2357 = vmax.f32 %v2355, %v2356
  %v2358 = vrot.slane %v2357, 1
  %v2359 = vmax.f32 %v2357, %v2358
  %v2360 = vsel %vm84, %v1595, -inf
  %v2361 = vrot.slane %v2360, 4
  %v2362 = vmax.f32 %v2360, %v2361
  %v2363 = vrot.slane %v2362, 2
  %v2364 = vmax.f32 %v2362, %v2363
  %v2365 = vrot.slane %v2364, 1
  %v2366 = vmax.f32 %v2364, %v2365
  %v2367 = vsel %vm84, %v1597, -inf
  %v2368 = vrot.slane %v2367, 4
  %v2369 = vmax.f32 %v2367, %v2368
  %v2370 = vrot.slane %v2369, 2
  %v2371 = vmax.f32 %v2369, %v2370
  %v2372 = vrot.slane %v2371, 1
  %v2373 = vmax.f32 %v2371, %v2372
  %vm2374 = vcmp.ge.f32.partialorder %v1551, %v2212
  %vm2375 = vcmp.ge.f32.partialorder %v1553, %v2219
  %vm2376 = vcmp.ge.f32.partialorder %v1555, %v2226
  %vm2377 = vcmp.ge.f32.partialorder %v1557, %v2233
  %vm2378 = vcmp.ge.f32.partialorder %v1559, %v2240
  %vm2379 = vcmp.ge.f32.partialorder %v1561, %v2247
  %vm2380 = vcmp.ge.f32.partialorder %v1563, %v2254
  %vm2381 = vcmp.ge.f32.partialorder %v1565, %v2261
  %vm2382 = vcmp.ge.f32.partialorder %v1567, %v2268
  %vm2383 = vcmp.ge.f32.partialorder %v1569, %v2275
  %vm2384 = vcmp.ge.f32.partialorder %v1571, %v2282
  %vm2385 = vcmp.ge.f32.partialorder %v1573, %v2289
  %vm2386 = vcmp.ge.f32.partialorder %v1575, %v2296
  %vm2387 = vcmp.ge.f32.partialorder %v1577, %v2303
  %vm2388 = vcmp.ge.f32.partialorder %v1579, %v2310
  %vm2389 = vcmp.ge.f32.partialorder %v1581, %v2317
  %vm2390 = vcmp.ge.f32.partialorder %v1583, %v2324
  %vm2391 = vcmp.ge.f32.partialorder %v1585, %v2331
  %vm2392 = vcmp.ge.f32.partialorder %v1587, %v2338
  %vm2393 = vcmp.ge.f32.partialorder %v1589, %v2345
  %vm2394 = vcmp.ge.f32.partialorder %v1591, %v2352
  %vm2395 = vcmp.ge.f32.partialorder %v1593, %v2359
  %vm2396 = vcmp.ge.f32.partialorder %v1595, %v2366
  %vm2397 = vcmp.ge.f32.partialorder %v1597, %v2373
  %v2398 = vsel %vm2374, %v2205, 8
  %v2399 = vsel %vm2375, %v2205, 8
  %v2400 = vsel %vm2376, %v2205, 8
  %v2401 = vsel %vm2377, %v2205, 8
  %v2402 = vsel %vm2378, %v2205, 8
  %v2403 = vsel %vm2379, %v2205, 8
  %v2404 = vsel %vm2380, %v2205, 8
  %v2405 = vsel %vm2381, %v2205, 8
  %v2406 = vsel %vm2382, %v2205, 8
  %v2407 = vsel %vm2383, %v2205, 8
  %v2408 = vsel %vm2384, %v2205, 8
  %v2409 = vsel %vm2385, %v2205, 8
  %v2410 = vsel %vm2386, %v2205, 8
  %v2411 = vsel %vm2387, %v2205, 8
  %v2412 = vsel %vm2388, %v2205, 8
  %v2413 = vsel %vm2389, %v2205, 8
  %v2414 = vsel %vm2390, %v2205, 8
  %v2415 = vsel %vm2391, %v2205, 8
  %v2416 = vsel %vm2392, %v2205, 8
  %v2417 = vsel %vm2393, %v2205, 8
  %v2418 = vsel %vm2394, %v2205, 8
  %v2419 = vsel %vm2395, %v2205, 8
  %v2420 = vsel %vm2396, %v2205, 8
  %v2421 = vsel %vm2397, %v2205, 8
  %v2422 = vsel %vm84, %v2398, 2147483647
  %v2423 = vrot.slane %v2422, 4
  %vm2424 = vcmp.lt.s32.totalorder %v2422, %v2423
  %v2425 = vsel %vm2424, %v2422, %v2423
  %v2426 = vrot.slane %v2425, 2
  %vm2427 = vcmp.lt.s32.totalorder %v2425, %v2426
  %v2428 = vsel %vm2427, %v2425, %v2426
  %v2429 = vrot.slane %v2428, 1
  %vm2430 = vcmp.lt.s32.totalorder %v2428, %v2429
  %v2431 = vsel %vm2430, %v2428, %v2429
  %v2432 = vsel %vm84, %v2399, 2147483647
  %v2433 = vrot.slane %v2432, 4
  %vm2434 = vcmp.lt.s32.totalorder %v2432, %v2433
  %v2435 = vsel %vm2434, %v2432, %v2433
  %v2436 = vrot.slane %v2435, 2
  %vm2437 = vcmp.lt.s32.totalorder %v2435, %v2436
  %v2438 = vsel %vm2437, %v2435, %v2436
  %v2439 = vrot.slane %v2438, 1
  %vm2440 = vcmp.lt.s32.totalorder %v2438, %v2439
  %v2441 = vsel %vm2440, %v2438, %v2439
  %v2442 = vsel %vm84, %v2400, 2147483647
  %v2443 = vrot.slane %v2442, 4
  %vm2444 = vcmp.lt.s32.totalorder %v2442, %v2443
  %v2445 = vsel %vm2444, %v2442, %v2443
  %v2446 = vrot.slane %v2445, 2
  %vm2447 = vcmp.lt.s32.totalorder %v2445, %v2446
  %v2448 = vsel %vm2447, %v2445, %v2446
  %v2449 = vrot.slane %v2448, 1
  %vm2450 = vcmp.lt.s32.totalorder %v2448, %v2449
  %v2451 = vsel %vm2450, %v2448, %v2449
  %v2452 = vsel %vm84, %v2401, 2147483647
  %v2453 = vrot.slane %v2452, 4
  %vm2454 = vcmp.lt.s32.totalorder %v2452, %v2453
  %v2455 = vsel %vm2454, %v2452, %v2453
  %v2456 = vrot.slane %v2455, 2
  %vm2457 = vcmp.lt.s32.totalorder %v2455, %v2456
  %v2458 = vsel %vm2457, %v2455, %v2456
  %v2459 = vrot.slane %v2458, 1
  %vm2460 = vcmp.lt.s32.totalorder %v2458, %v2459
  %v2461 = vsel %vm2460, %v2458, %v2459
  %v2462 = vsel %vm84, %v2402, 2147483647
  %v2463 = vrot.slane %v2462, 4
  %vm2464 = vcmp.lt.s32.totalorder %v2462, %v2463
  %v2465 = vsel %vm2464, %v2462, %v2463
  %v2466 = vrot.slane %v2465, 2
  %vm2467 = vcmp.lt.s32.totalorder %v2465, %v2466
  %v2468 = vsel %vm2467, %v2465, %v2466
  %v2469 = vrot.slane %v2468, 1
  %vm2470 = vcmp.lt.s32.totalorder %v2468, %v2469
  %v2471 = vsel %vm2470, %v2468, %v2469
  %v2472 = vsel %vm84, %v2403, 2147483647
  %v2473 = vrot.slane %v2472, 4
  %vm2474 = vcmp.lt.s32.totalorder %v2472, %v2473
  %v2475 = vsel %vm2474, %v2472, %v2473
  %v2476 = vrot.slane %v2475, 2
  %vm2477 = vcmp.lt.s32.totalorder %v2475, %v2476
  %v2478 = vsel %vm2477, %v2475, %v2476
  %v2479 = vrot.slane %v2478, 1
  %vm2480 = vcmp.lt.s32.totalorder %v2478, %v2479
  %v2481 = vsel %vm2480, %v2478, %v2479
  %v2482 = vsel %vm84, %v2404, 2147483647
  %v2483 = vrot.slane %v2482, 4
  %vm2484 = vcmp.lt.s32.totalorder %v2482, %v2483
  %v2485 = vsel %vm2484, %v2482, %v2483
  %v2486 = vrot.slane %v2485, 2
  %vm2487 = vcmp.lt.s32.totalorder %v2485, %v2486
  %v2488 = vsel %vm2487, %v2485, %v2486
  %v2489 = vrot.slane %v2488, 1
  %vm2490 = vcmp.lt.s32.totalorder %v2488, %v2489
  %v2491 = vsel %vm2490, %v2488, %v2489
  %v2492 = vsel %vm84, %v2405, 2147483647
  %v2493 = vrot.slane %v2492, 4
  %vm2494 = vcmp.lt.s32.totalorder %v2492, %v2493
  %v2495 = vsel %vm2494, %v2492, %v2493
  %v2496 = vrot.slane %v2495, 2
  %vm2497 = vcmp.lt.s32.totalorder %v2495, %v2496
  %v2498 = vsel %vm2497, %v2495, %v2496
  %v2499 = vrot.slane %v2498, 1
  %vm2500 = vcmp.lt.s32.totalorder %v2498, %v2499
  %v2501 = vsel %vm2500, %v2498, %v2499
  %v2502 = vsel %vm84, %v2406, 2147483647
  %v2503 = vrot.slane %v2502, 4
  %vm2504 = vcmp.lt.s32.totalorder %v2502, %v2503
  %v2505 = vsel %vm2504, %v2502, %v2503
  %v2506 = vrot.slane %v2505, 2
  %vm2507 = vcmp.lt.s32.totalorder %v2505, %v2506
  %v2508 = vsel %vm2507, %v2505, %v2506
  %v2509 = vrot.slane %v2508, 1
  %vm2510 = vcmp.lt.s32.totalorder %v2508, %v2509
  %v2511 = vsel %vm2510, %v2508, %v2509
  %v2512 = vsel %vm84, %v2407, 2147483647
  %v2513 = vrot.slane %v2512, 4
  %vm2514 = vcmp.lt.s32.totalorder %v2512, %v2513
  %v2515 = vsel %vm2514, %v2512, %v2513
  %v2516 = vrot.slane %v2515, 2
  %vm2517 = vcmp.lt.s32.totalorder %v2515, %v2516
  %v2518 = vsel %vm2517, %v2515, %v2516
  %v2519 = vrot.slane %v2518, 1
  %vm2520 = vcmp.lt.s32.totalorder %v2518, %v2519
  %v2521 = vsel %vm2520, %v2518, %v2519
  %v2522 = vsel %vm84, %v2408, 2147483647
  %v2523 = vrot.slane %v2522, 4
  %vm2524 = vcmp.lt.s32.totalorder %v2522, %v2523
  %v2525 = vsel %vm2524, %v2522, %v2523
  %v2526 = vrot.slane %v2525, 2
  %vm2527 = vcmp.lt.s32.totalorder %v2525, %v2526
  %v2528 = vsel %vm2527, %v2525, %v2526
  %v2529 = vrot.slane %v2528, 1
  %vm2530 = vcmp.lt.s32.totalorder %v2528, %v2529
  %v2531 = vsel %vm2530, %v2528, %v2529
  %v2532 = vsel %vm84, %v2409, 2147483647
  %v2533 = vrot.slane %v2532, 4
  %vm2534 = vcmp.lt.s32.totalorder %v2532, %v2533
  %v2535 = vsel %vm2534, %v2532, %v2533
  %v2536 = vrot.slane %v2535, 2
  %vm2537 = vcmp.lt.s32.totalorder %v2535, %v2536
  %v2538 = vsel %vm2537, %v2535, %v2536
  %v2539 = vrot.slane %v2538, 1
  %vm2540 = vcmp.lt.s32.totalorder %v2538, %v2539
  %v2541 = vsel %vm2540, %v2538, %v2539
  %v2542 = vsel %vm84, %v2410, 2147483647
  %v2543 = vrot.slane %v2542, 4
  %vm2544 = vcmp.lt.s32.totalorder %v2542, %v2543
  %v2545 = vsel %vm2544, %v2542, %v2543
  %v2546 = vrot.slane %v2545, 2
  %vm2547 = vcmp.lt.s32.totalorder %v2545, %v2546
  %v2548 = vsel %vm2547, %v2545, %v2546
  %v2549 = vrot.slane %v2548, 1
  %vm2550 = vcmp.lt.s32.totalorder %v2548, %v2549
  %v2551 = vsel %vm2550, %v2548, %v2549
  %v2552 = vsel %vm84, %v2411, 2147483647
  %v2553 = vrot.slane %v2552, 4
  %vm2554 = vcmp.lt.s32.totalorder %v2552, %v2553
  %v2555 = vsel %vm2554, %v2552, %v2553
  %v2556 = vrot.slane %v2555, 2
  %vm2557 = vcmp.lt.s32.totalorder %v2555, %v2556
  %v2558 = vsel %vm2557, %v2555, %v2556
  %v2559 = vrot.slane %v2558, 1
  %vm2560 = vcmp.lt.s32.totalorder %v2558, %v2559
  %v2561 = vsel %vm2560, %v2558, %v2559
  %v2562 = vsel %vm84, %v2412, 2147483647
  %v2563 = vrot.slane %v2562, 4
  %vm2564 = vcmp.lt.s32.totalorder %v2562, %v2563
  %v2565 = vsel %vm2564, %v2562, %v2563
  %v2566 = vrot.slane %v2565, 2
  %vm2567 = vcmp.lt.s32.totalorder %v2565, %v2566
  %v2568 = vsel %vm2567, %v2565, %v2566
  %v2569 = vrot.slane %v2568, 1
  %vm2570 = vcmp.lt.s32.totalorder %v2568, %v2569
  %v2571 = vsel %vm2570, %v2568, %v2569
  %v2572 = vsel %vm84, %v2413, 2147483647
  %v2573 = vrot.slane %v2572, 4
  %vm2574 = vcmp.lt.s32.totalorder %v2572, %v2573
  %v2575 = vsel %vm2574, %v2572, %v2573
  %v2576 = vrot.slane %v2575, 2
  %vm2577 = vcmp.lt.s32.totalorder %v2575, %v2576
  %v2578 = vsel %vm2577, %v2575, %v2576
  %v2579 = vrot.slane %v2578, 1
  %vm2580 = vcmp.lt.s32.totalorder %v2578, %v2579
  %v2581 = vsel %vm2580, %v2578, %v2579
  %v2582 = vsel %vm84, %v2414, 2147483647
  %v2583 = vrot.slane %v2582, 4
  %vm2584 = vcmp.lt.s32.totalorder %v2582, %v2583
  %v2585 = vsel %vm2584, %v2582, %v2583
  %v2586 = vrot.slane %v2585, 2
  %vm2587 = vcmp.lt.s32.totalorder %v2585, %v2586
  %v2588 = vsel %vm2587, %v2585, %v2586
  %v2589 = vrot.slane %v2588, 1
  %vm2590 = vcmp.lt.s32.totalorder %v2588, %v2589
  %v2591 = vsel %vm2590, %v2588, %v2589
  %v2592 = vsel %vm84, %v2415, 2147483647
  %v2593 = vrot.slane %v2592, 4
  %vm2594 = vcmp.lt.s32.totalorder %v2592, %v2593
  %v2595 = vsel %vm2594, %v2592, %v2593
  %v2596 = vrot.slane %v2595, 2
  %vm2597 = vcmp.lt.s32.totalorder %v2595, %v2596
  %v2598 = vsel %vm2597, %v2595, %v2596
  %v2599 = vrot.slane %v2598, 1
  %vm2600 = vcmp.lt.s32.totalorder %v2598, %v2599
  %v2601 = vsel %vm2600, %v2598, %v2599
  %v2602 = vsel %vm84, %v2416, 2147483647
  %v2603 = vrot.slane %v2602, 4
  %vm2604 = vcmp.lt.s32.totalorder %v2602, %v2603
  %v2605 = vsel %vm2604, %v2602, %v2603
  %v2606 = vrot.slane %v2605, 2
  %vm2607 = vcmp.lt.s32.totalorder %v2605, %v2606
  %v2608 = vsel %vm2607, %v2605, %v2606
  %v2609 = vrot.slane %v2608, 1
  %vm2610 = vcmp.lt.s32.totalorder %v2608, %v2609
  %v2611 = vsel %vm2610, %v2608, %v2609
  %v2612 = vsel %vm84, %v2417, 2147483647
  %v2613 = vrot.slane %v2612, 4
  %vm2614 = vcmp.lt.s32.totalorder %v2612, %v2613
  %v2615 = vsel %vm2614, %v2612, %v2613
  %v2616 = vrot.slane %v2615, 2
  %vm2617 = vcmp.lt.s32.totalorder %v2615, %v2616
  %v2618 = vsel %vm2617, %v2615, %v2616
  %v2619 = vrot.slane %v2618, 1
  %vm2620 = vcmp.lt.s32.totalorder %v2618, %v2619
  %v2621 = vsel %vm2620, %v2618, %v2619
  %v2622 = vsel %vm84, %v2418, 2147483647
  %v2623 = vrot.slane %v2622, 4
  %vm2624 = vcmp.lt.s32.totalorder %v2622, %v2623
  %v2625 = vsel %vm2624, %v2622, %v2623
  %v2626 = vrot.slane %v2625, 2
  %vm2627 = vcmp.lt.s32.totalorder %v2625, %v2626
  %v2628 = vsel %vm2627, %v2625, %v2626
  %v2629 = vrot.slane %v2628, 1
  %vm2630 = vcmp.lt.s32.totalorder %v2628, %v2629
  %v2631 = vsel %vm2630, %v2628, %v2629
  %v2632 = vsel %vm84, %v2419, 2147483647
  %v2633 = vrot.slane %v2632, 4
  %vm2634 = vcmp.lt.s32.totalorder %v2632, %v2633
  %v2635 = vsel %vm2634, %v2632, %v2633
  %v2636 = vrot.slane %v2635, 2
  %vm2637 = vcmp.lt.s32.totalorder %v2635, %v2636
  %v2638 = vsel %vm2637, %v2635, %v2636
  %v2639 = vrot.slane %v2638, 1
  %vm2640 = vcmp.lt.s32.totalorder %v2638, %v2639
  %v2641 = vsel %vm2640, %v2638, %v2639
  %v2642 = vsel %vm84, %v2420, 2147483647
  %v2643 = vrot.slane %v2642, 4
  %vm2644 = vcmp.lt.s32.totalorder %v2642, %v2643
  %v2645 = vsel %vm2644, %v2642, %v2643
  %v2646 = vrot.slane %v2645, 2
  %vm2647 = vcmp.lt.s32.totalorder %v2645, %v2646
  %v2648 = vsel %vm2647, %v2645, %v2646
  %v2649 = vrot.slane %v2648, 1
  %vm2650 = vcmp.lt.s32.totalorder %v2648, %v2649
  %v2651 = vsel %vm2650, %v2648, %v2649
  %v2652 = vsel %vm84, %v2421, 2147483647
  %v2653 = vrot.slane %v2652, 4
  %vm2654 = vcmp.lt.s32.totalorder %v2652, %v2653
  %v2655 = vsel %vm2654, %v2652, %v2653
  %v2656 = vrot.slane %v2655, 2
  %vm2657 = vcmp.lt.s32.totalorder %v2655, %v2656
  %v2658 = vsel %vm2657, %v2655, %v2656
  %v2659 = vrot.slane %v2658, 1
  %vm2660 = vcmp.lt.s32.totalorder %v2658, %v2659
  %v2661 = vsel %vm2660, %v2658, %v2659
  %vm2662 = vcmp.eq.s32.totalorder %v2205, %v2431
  %vm2663 = vcmp.eq.s32.totalorder %v2205, %v2441
  %vm2664 = vcmp.eq.s32.totalorder %v2205, %v2451
  %vm2665 = vcmp.eq.s32.totalorder %v2205, %v2461
  %vm2666 = vcmp.eq.s32.totalorder %v2205, %v2471
  %vm2667 = vcmp.eq.s32.totalorder %v2205, %v2481
  %vm2668 = vcmp.eq.s32.totalorder %v2205, %v2491
  %vm2669 = vcmp.eq.s32.totalorder %v2205, %v2501
  %vm2670 = vcmp.eq.s32.totalorder %v2205, %v2511
  %vm2671 = vcmp.eq.s32.totalorder %v2205, %v2521
  %vm2672 = vcmp.eq.s32.totalorder %v2205, %v2531
  %vm2673 = vcmp.eq.s32.totalorder %v2205, %v2541
  %vm2674 = vcmp.eq.s32.totalorder %v2205, %v2551
  %vm2675 = vcmp.eq.s32.totalorder %v2205, %v2561
  %vm2676 = vcmp.eq.s32.totalorder %v2205, %v2571
  %vm2677 = vcmp.eq.s32.totalorder %v2205, %v2581
  %vm2678 = vcmp.eq.s32.totalorder %v2205, %v2591
  %vm2679 = vcmp.eq.s32.totalorder %v2205, %v2601
  %vm2680 = vcmp.eq.s32.totalorder %v2205, %v2611
  %vm2681 = vcmp.eq.s32.totalorder %v2205, %v2621
  %vm2682 = vcmp.eq.s32.totalorder %v2205, %v2631
  %vm2683 = vcmp.eq.s32.totalorder %v2205, %v2641
  %vm2684 = vcmp.eq.s32.totalorder %v2205, %v2651
  %vm2685 = vcmp.eq.s32.totalorder %v2205, %v2661
  %v2686 = vsel %vm2662, 1, 0
  %v2687 = vsel %vm2663, 1, 0
  %v2688 = vsel %vm2664, 1, 0
  %v2689 = vsel %vm2665, 1, 0
  %v2690 = vsel %vm2666, 1, 0
  %v2691 = vsel %vm2667, 1, 0
  %v2692 = vsel %vm2668, 1, 0
  %v2693 = vsel %vm2669, 1, 0
  %v2694 = vsel %vm2670, 1, 0
  %v2695 = vsel %vm2671, 1, 0
  %v2696 = vsel %vm2672, 1, 0
  %v2697 = vsel %vm2673, 1, 0
  %v2698 = vsel %vm2674, 1, 0
  %v2699 = vsel %vm2675, 1, 0
  %v2700 = vsel %vm2676, 1, 0
  %v2701 = vsel %vm2677, 1, 0
  %v2702 = vsel %vm2678, 1, 0
  %v2703 = vsel %vm2679, 1, 0
  %v2704 = vsel %vm2680, 1, 0
  %v2705 = vsel %vm2681, 1, 0
  %v2706 = vsel %vm2682, 1, 0
  %v2707 = vsel %vm2683, 1, 0
  %v2708 = vsel %vm2684, 1, 0
  %v2709 = vsel %vm2685, 1, 0
  %v2710 = vcvt.s32.f32 %v2686
  %v2711 = vcvt.s32.f32 %v2687
  %v2712 = vcvt.s32.f32 %v2688
  %v2713 = vcvt.s32.f32 %v2689
  %v2714 = vcvt.s32.f32 %v2690
  %v2715 = vcvt.s32.f32 %v2691
  %v2716 = vcvt.s32.f32 %v2692
  %v2717 = vcvt.s32.f32 %v2693
  %v2718 = vcvt.s32.f32 %v2694
  %v2719 = vcvt.s32.f32 %v2695
  %v2720 = vcvt.s32.f32 %v2696
  %v2721 = vcvt.s32.f32 %v2697
  %v2722 = vcvt.s32.f32 %v2698
  %v2723 = vcvt.s32.f32 %v2699
  %v2724 = vcvt.s32.f32 %v2700
  %v2725 = vcvt.s32.f32 %v2701
  %v2726 = vcvt.s32.f32 %v2702
  %v2727 = vcvt.s32.f32 %v2703
  %v2728 = vcvt.s32.f32 %v2704
  %v2729 = vcvt.s32.f32 %v2705
  %v2730 = vcvt.s32.f32 %v2706
  %v2731 = vcvt.s32.f32 %v2707
  %v2732 = vcvt.s32.f32 %v2708
  %v2733 = vcvt.s32.f32 %v2709
  %2734 = vxpose.xlu0.b32.start [1/16] %v2710, 128
  %2735 = vxpose.xlu0.b32.cont [2/16] %v2711, 128
  %2736 = vxpose.xlu0.b32.cont [3/16] %v2712, 128
  %2737 = vxpose.xlu0.b32.cont [4/16] %v2713, 128
  %2738 = vxpose.xlu0.b32.cont [5/16] 0.0, 128
  %2739 = vxpose.xlu0.b32.cont [6/16] 0.0, 128
  %2740 = vxpose.xlu0.b32.cont [7/16] 0.0, 128
  %2741 = vxpose.xlu0.b32.cont [8/16] 0.0, 128
  %2742 = vxpose.xlu0.b32.cont [9/16] 0.0, 128
  %2743 = vxpose.xlu0.b32.cont [10/16] 0.0, 128
  %2744 = vxpose.xlu0.b32.cont [11/16] 0.0, 128
  %2745 = vxpose.xlu0.b32.cont [12/16] 0.0, 128
  %2746 = vxpose.xlu0.b32.cont [13/16] 0.0, 128
  %2747 = vxpose.xlu0.b32.cont [14/16] 0.0, 128
  %2748 = vxpose.xlu0.b32.cont [15/16] 0.0, 128
  %2749 = vxpose.xlu0.b32.end [16/16] 0.0, 128
  %v2750 = vpop.trf.xlu0
  %v2751 = vpop.trf.xlu0
  %v2752 = vpop.trf.xlu0
  %v2753 = vpop.trf.xlu0
  %v2754 = vpop.trf.xlu0
  %v2755 = vpop.trf.xlu0
  %v2756 = vpop.trf.xlu0
  %v2757 = vpop.trf.xlu0
  %v2758 = vpop.trf.xlu0
  %v2759 = vpop.trf.xlu0
  %v2760 = vpop.trf.xlu0
  %v2761 = vpop.trf.xlu0
  %v2762 = vpop.trf.xlu0
  %v2763 = vpop.trf.xlu0
  %v2764 = vpop.trf.xlu0
  %v2765 = vpop.trf.xlu0
  %v2767 = vsel %vm691, %v2750, 0
  %v2770 = vsel %vm691, %v2751, 0
  %2772 = vmatprep.subr.mxu0 0.0
  %2773 = vmatpush1.msra.mxu0 %v2180
  %2774 = vmatprep.subr.mxu0 0.0
  %2775 = vmatpush1.msra.mxu0 %v2181
  %2776 = vmatprep.subr.mxu0 0.0
  %2777 = vmatpush1.msra.mxu0 %v2182
  %2778 = vmatprep.subr.mxu0 0.0
  %2779 = vmatpush1.msra.mxu0 %v2183
  %2780 = vmatprep.subr.mxu0 0.0
  %2781 = vmatpush1.msra.mxu0 0.0
  %2782 = vmatprep.subr.mxu0 0.0
  %2783 = vmatpush1.msra.mxu0 0.0
  %2784 = vmatprep.subr.mxu0 0.0
  %2785 = vmatpush1.msra.mxu0 0.0
  %2786 = vmatprep.subr.mxu0 0.0
  %2787 = vmatpush1.msra.mxu0 0.0
  %2788 = vmatprep.subr.mxu0 0.0
  %2789 = vmatpush1.msra.mxu0 0.0
  %2790 = vmatprep.subr.mxu0 0.0
  %2791 = vmatpush1.msra.mxu0 0.0
  %2792 = vmatprep.subr.mxu0 0.0
  %2793 = vmatpush1.msra.mxu0 0.0
  %2794 = vmatprep.subr.mxu0 0.0
  %2795 = vmatpush1.msra.mxu0 0.0
  %2796 = vmatprep.subr.mxu0 0.0
  %2797 = vmatpush1.msra.mxu0 0.0
  %2798 = vmatprep.subr.mxu0 0.0
  %2799 = vmatpush1.msra.mxu0 0.0
  %2800 = vmatprep.subr.mxu0 0.0
  %2801 = vmatpush1.msra.mxu0 0.0
  %2802 = vmatprep.subr.mxu0 0.0
  %2803 = vmatpush1.msra.mxu0 0.0
  %2804 = vmatprep.subr.mxu0 0.0
  %2805 = vmatpush1.msra.mxu0 0.0
  %2806 = vmatprep.subr.mxu0 0.0
  %2807 = vmatpush1.msra.mxu0 0.0
  %2808 = vmatprep.subr.mxu0 0.0
  %2809 = vmatpush1.msra.mxu0 0.0
  %2810 = vmatprep.subr.mxu0 0.0
  %2811 = vmatpush1.msra.mxu0 0.0
  %2812 = vmatprep.subr.mxu0 0.0
  %2813 = vmatpush1.msra.mxu0 0.0
  %2814 = vmatprep.subr.mxu0 0.0
  %2815 = vmatpush1.msra.mxu0 0.0
  %2816 = vmatprep.subr.mxu0 0.0
  %2817 = vmatpush1.msra.mxu0 0.0
  %2818 = vmatprep.subr.mxu0 0.0
  %2819 = vmatpush1.msra.mxu0 0.0
  %2820 = vmatprep.subr.mxu0 0.0
  %2821 = vmatpush1.msra.mxu0 0.0
  %2822 = vmatprep.subr.mxu0 0.0
  %2823 = vmatpush1.msra.mxu0 0.0
  %2824 = vmatprep.subr.mxu0 0.0
  %2825 = vmatpush1.msra.mxu0 0.0
  %2826 = vmatprep.subr.mxu0 0.0
  %2827 = vmatpush1.msra.mxu0 0.0
  %2828 = vmatprep.subr.mxu0 0.0
  %2829 = vmatpush1.msra.mxu0 0.0
  %2830 = vmatprep.subr.mxu0 0.0
  %2831 = vmatpush1.msra.mxu0 0.0
  %2832 = vmatprep.subr.mxu0 0.0
  %2833 = vmatpush1.msra.mxu0 0.0
  %2834 = vmatprep.subr.mxu0 0.0
  %2835 = vmatpush1.msra.mxu0 0.0
  %2836 = vmatprep.mubr.f32.mxu0 0.0
  %2837 = vmatmul.mubr.f32.gmra.mrb[0].mxu0 %v2767
  %v2838 = vpop.f32.mrb[0].mxu0
  %v2839 = vadd.f32 0.0, %v2838
  %v2840 = vpop.f32.mrb[0].mxu0
  %2841 = vmatprep.mubr.f32.mxu0 0.0
  %2842 = vmatmul.mubr.f32.gmra.mrb[0].mxu0 %v2770
  %v2843 = vpop.f32.mrb[0].mxu0
  %v2844 = vadd.f32 0.0, %v2843
  %v2845 = vpop.f32.mrb[0].mxu0
  %2846 = vdwg.mxu0
  %2847 = vxpose.xlu0.b32.start [1/16] %v2714, 128
  %2848 = vxpose.xlu0.b32.cont [2/16] %v2715, 128
  %2849 = vxpose.xlu0.b32.cont [3/16] %v2716, 128
  %2850 = vxpose.xlu0.b32.cont [4/16] %v2717, 128
  %2851 = vxpose.xlu0.b32.cont [5/16] 0.0, 128
  %2852 = vxpose.xlu0.b32.cont [6/16] 0.0, 128
  %2853 = vxpose.xlu0.b32.cont [7/16] 0.0, 128
  %2854 = vxpose.xlu0.b32.cont [8/16] 0.0, 128
  %2855 = vxpose.xlu0.b32.cont [9/16] 0.0, 128
  %2856 = vxpose.xlu0.b32.cont [10/16] 0.0, 128
  %2857 = vxpose.xlu0.b32.cont [11/16] 0.0, 128
  %2858 = vxpose.xlu0.b32.cont [12/16] 0.0, 128
  %2859 = vxpose.xlu0.b32.cont [13/16] 0.0, 128
  %2860 = vxpose.xlu0.b32.cont [14/16] 0.0, 128
  %2861 = vxpose.xlu0.b32.cont [15/16] 0.0, 128
  %2862 = vxpose.xlu0.b32.end [16/16] 0.0, 128
  %v2863 = vpop.trf.xlu0
  %v2864 = vpop.trf.xlu0
  %v2865 = vpop.trf.xlu0
  %v2866 = vpop.trf.xlu0
  %v2867 = vpop.trf.xlu0
  %v2868 = vpop.trf.xlu0
  %v2869 = vpop.trf.xlu0
  %v2870 = vpop.trf.xlu0
  %v2871 = vpop.trf.xlu0
  %v2872 = vpop.trf.xlu0
  %v2873 = vpop.trf.xlu0
  %v2874 = vpop.trf.xlu0
  %v2875 = vpop.trf.xlu0
  %v2876 = vpop.trf.xlu0
  %v2877 = vpop.trf.xlu0
  %v2878 = vpop.trf.xlu0
  %v2880 = vsel %vm691, %v2863, 0
  %v2883 = vsel %vm691, %v2864, 0
  %2885 = vmatprep.subr.mxu0 0.0
  %2886 = vmatpush1.msra.mxu0 %v2184
  %2887 = vmatprep.subr.mxu0 0.0
  %2888 = vmatpush1.msra.mxu0 %v2185
  %2889 = vmatprep.subr.mxu0 0.0
  %2890 = vmatpush1.msra.mxu0 %v2186
  %2891 = vmatprep.subr.mxu0 0.0
  %2892 = vmatpush1.msra.mxu0 %v2187
  %2893 = vmatprep.subr.mxu0 0.0
  %2894 = vmatpush1.msra.mxu0 0.0
  %2895 = vmatprep.subr.mxu0 0.0
  %2896 = vmatpush1.msra.mxu0 0.0
  %2897 = vmatprep.subr.mxu0 0.0
  %2898 = vmatpush1.msra.mxu0 0.0
  %2899 = vmatprep.subr.mxu0 0.0
  %2900 = vmatpush1.msra.mxu0 0.0
  %2901 = vmatprep.subr.mxu0 0.0
  %2902 = vmatpush1.msra.mxu0 0.0
  %2903 = vmatprep.subr.mxu0 0.0
  %2904 = vmatpush1.msra.mxu0 0.0
  %2905 = vmatprep.subr.mxu0 0.0
  %2906 = vmatpush1.msra.mxu0 0.0
  %2907 = vmatprep.subr.mxu0 0.0
  %2908 = vmatpush1.msra.mxu0 0.0
  %2909 = vmatprep.subr.mxu0 0.0
  %2910 = vmatpush1.msra.mxu0 0.0
  %2911 = vmatprep.subr.mxu0 0.0
  %2912 = vmatpush1.msra.mxu0 0.0
  %2913 = vmatprep.subr.mxu0 0.0
  %2914 = vmatpush1.msra.mxu0 0.0
  %2915 = vmatprep.subr.mxu0 0.0
  %2916 = vmatpush1.msra.mxu0 0.0
  %2917 = vmatprep.subr.mxu0 0.0
  %2918 = vmatpush1.msra.mxu0 0.0
  %2919 = vmatprep.subr.mxu0 0.0
  %2920 = vmatpush1.msra.mxu0 0.0
  %2921 = vmatprep.subr.mxu0 0.0
  %2922 = vmatpush1.msra.mxu0 0.0
  %2923 = vmatprep.subr.mxu0 0.0
  %2924 = vmatpush1.msra.mxu0 0.0
  %2925 = vmatprep.subr.mxu0 0.0
  %2926 = vmatpush1.msra.mxu0 0.0
  %2927 = vmatprep.subr.mxu0 0.0
  %2928 = vmatpush1.msra.mxu0 0.0
  %2929 = vmatprep.subr.mxu0 0.0
  %2930 = vmatpush1.msra.mxu0 0.0
  %2931 = vmatprep.subr.mxu0 0.0
  %2932 = vmatpush1.msra.mxu0 0.0
  %2933 = vmatprep.subr.mxu0 0.0
  %2934 = vmatpush1.msra.mxu0 0.0
  %2935 = vmatprep.subr.mxu0 0.0
  %2936 = vmatpush1.msra.mxu0 0.0
  %2937 = vmatprep.subr.mxu0 0.0
  %2938 = vmatpush1.msra.mxu0 0.0
  %2939 = vmatprep.subr.mxu0 0.0
  %2940 = vmatpush1.msra.mxu0 0.0
  %2941 = vmatprep.subr.mxu0 0.0
  %2942 = vmatpush1.msra.mxu0 0.0
  %2943 = vmatprep.subr.mxu0 0.0
  %2944 = vmatpush1.msra.mxu0 0.0
  %2945 = vmatprep.subr.mxu0 0.0
  %2946 = vmatpush1.msra.mxu0 0.0
  %2947 = vmatprep.subr.mxu0 0.0
  %2948 = vmatpush1.msra.mxu0 0.0
  %2949 = vmatprep.mubr.f32.mxu0 0.0
  %2950 = vmatmul.mubr.f32.gmra.mrb[0].mxu0 %v2880
  %v2951 = vpop.f32.mrb[0].mxu0
  %v2952 = vadd.f32 0.0, %v2951
  %v2953 = vpop.f32.mrb[0].mxu0
  %2954 = vmatprep.mubr.f32.mxu0 0.0
  %2955 = vmatmul.mubr.f32.gmra.mrb[0].mxu0 %v2883
  %v2956 = vpop.f32.mrb[0].mxu0
  %v2957 = vadd.f32 0.0, %v2956
  %v2958 = vpop.f32.mrb[0].mxu0
  %2959 = vdwg.mxu0
  %2960 = vxpose.xlu0.b32.start [1/16] %v2718, 128
  %2961 = vxpose.xlu0.b32.cont [2/16] %v2719, 128
  %2962 = vxpose.xlu0.b32.cont [3/16] %v2720, 128
  %2963 = vxpose.xlu0.b32.cont [4/16] %v2721, 128
  %2964 = vxpose.xlu0.b32.cont [5/16] 0.0, 128
  %2965 = vxpose.xlu0.b32.cont [6/16] 0.0, 128
  %2966 = vxpose.xlu0.b32.cont [7/16] 0.0, 128
  %2967 = vxpose.xlu0.b32.cont [8/16] 0.0, 128
  %2968 = vxpose.xlu0.b32.cont [9/16] 0.0, 128
  %2969 = vxpose.xlu0.b32.cont [10/16] 0.0, 128
  %2970 = vxpose.xlu0.b32.cont [11/16] 0.0, 128
  %2971 = vxpose.xlu0.b32.cont [12/16] 0.0, 128
  %2972 = vxpose.xlu0.b32.cont [13/16] 0.0, 128
  %2973 = vxpose.xlu0.b32.cont [14/16] 0.0, 128
  %2974 = vxpose.xlu0.b32.cont [15/16] 0.0, 128
  %2975 = vxpose.xlu0.b32.end [16/16] 0.0, 128
  %v2976 = vpop.trf.xlu0
  %v2977 = vpop.trf.xlu0
  %v2978 = vpop.trf.xlu0
  %v2979 = vpop.trf.xlu0
  %v2980 = vpop.trf.xlu0
  %v2981 = vpop.trf.xlu0
  %v2982 = vpop.trf.xlu0
  %v2983 = vpop.trf.xlu0
  %v2984 = vpop.trf.xlu0
  %v2985 = vpop.trf.xlu0
  %v2986 = vpop.trf.xlu0
  %v2987 = vpop.trf.xlu0
  %v2988 = vpop.trf.xlu0
  %v2989 = vpop.trf.xlu0
  %v2990 = vpop.trf.xlu0
  %v2991 = vpop.trf.xlu0
  %v2993 = vsel %vm691, %v2976, 0
  %v2996 = vsel %vm691, %v2977, 0
  %2998 = vmatprep.subr.mxu0 0.0
  %2999 = vmatpush1.msra.mxu0 %v2188
  %3000 = vmatprep.subr.mxu0 0.0
  %3001 = vmatpush1.msra.mxu0 %v2189
  %3002 = vmatprep.subr.mxu0 0.0
  %3003 = vmatpush1.msra.mxu0 %v2190
  %3004 = vmatprep.subr.mxu0 0.0
  %3005 = vmatpush1.msra.mxu0 %v2191
  %3006 = vmatprep.subr.mxu0 0.0
  %3007 = vmatpush1.msra.mxu0 0.0
  %3008 = vmatprep.subr.mxu0 0.0
  %3009 = vmatpush1.msra.mxu0 0.0
  %3010 = vmatprep.subr.mxu0 0.0
  %3011 = vmatpush1.msra.mxu0 0.0
  %3012 = vmatprep.subr.mxu0 0.0
  %3013 = vmatpush1.msra.mxu0 0.0
  %3014 = vmatprep.subr.mxu0 0.0
  %3015 = vmatpush1.msra.mxu0 0.0
  %3016 = vmatprep.subr.mxu0 0.0
  %3017 = vmatpush1.msra.mxu0 0.0
  %3018 = vmatprep.subr.mxu0 0.0
  %3019 = vmatpush1.msra.mxu0 0.0
  %3020 = vmatprep.subr.mxu0 0.0
  %3021 = vmatpush1.msra.mxu0 0.0
  %3022 = vmatprep.subr.mxu0 0.0
  %3023 = vmatpush1.msra.mxu0 0.0
  %3024 = vmatprep.subr.mxu0 0.0
  %3025 = vmatpush1.msra.mxu0 0.0
  %3026 = vmatprep.subr.mxu0 0.0
  %3027 = vmatpush1.msra.mxu0 0.0
  %3028 = vmatprep.subr.mxu0 0.0
  %3029 = vmatpush1.msra.mxu0 0.0
  %3030 = vmatprep.subr.mxu0 0.0
  %3031 = vmatpush1.msra.mxu0 0.0
  %3032 = vmatprep.subr.mxu0 0.0
  %3033 = vmatpush1.msra.mxu0 0.0
  %3034 = vmatprep.subr.mxu0 0.0
  %3035 = vmatpush1.msra.mxu0 0.0
  %3036 = vmatprep.subr.mxu0 0.0
  %3037 = vmatpush1.msra.mxu0 0.0
  %3038 = vmatprep.subr.mxu0 0.0
  %3039 = vmatpush1.msra.mxu0 0.0
  %3040 = vmatprep.subr.mxu0 0.0
  %3041 = vmatpush1.msra.mxu0 0.0
  %3042 = vmatprep.subr.mxu0 0.0
  %3043 = vmatpush1.msra.mxu0 0.0
  %3044 = vmatprep.subr.mxu0 0.0
  %3045 = vmatpush1.msra.mxu0 0.0
  %3046 = vmatprep.subr.mxu0 0.0
  %3047 = vmatpush1.msra.mxu0 0.0
  %3048 = vmatprep.subr.mxu0 0.0
  %3049 = vmatpush1.msra.mxu0 0.0
  %3050 = vmatprep.subr.mxu0 0.0
  %3051 = vmatpush1.msra.mxu0 0.0
  %3052 = vmatprep.subr.mxu0 0.0
  %3053 = vmatpush1.msra.mxu0 0.0
  %3054 = vmatprep.subr.mxu0 0.0
  %3055 = vmatpush1.msra.mxu0 0.0
  %3056 = vmatprep.subr.mxu0 0.0
  %3057 = vmatpush1.msra.mxu0 0.0
  %3058 = vmatprep.subr.mxu0 0.0
  %3059 = vmatpush1.msra.mxu0 0.0
  %3060 = vmatprep.subr.mxu0 0.0
  %3061 = vmatpush1.msra.mxu0 0.0
  %3062 = vmatprep.mubr.f32.mxu0 0.0
  %3063 = vmatmul.mubr.f32.gmra.mrb[0].mxu0 %v2993
  %v3064 = vpop.f32.mrb[0].mxu0
  %v3065 = vadd.f32 0.0, %v3064
  %v3066 = vpop.f32.mrb[0].mxu0
  %3067 = vmatprep.mubr.f32.mxu0 0.0
  %3068 = vmatmul.mubr.f32.gmra.mrb[0].mxu0 %v2996
  %v3069 = vpop.f32.mrb[0].mxu0
  %v3070 = vadd.f32 0.0, %v3069
  %v3071 = vpop.f32.mrb[0].mxu0
  %3072 = vdwg.mxu0
  %3073 = vxpose.xlu0.b32.start [1/16] %v2722, 128
  %3074 = vxpose.xlu0.b32.cont [2/16] %v2723, 128
  %3075 = vxpose.xlu0.b32.cont [3/16] %v2724, 128
  %3076 = vxpose.xlu0.b32.cont [4/16] %v2725, 128
  %3077 = vxpose.xlu0.b32.cont [5/16] 0.0, 128
  %3078 = vxpose.xlu0.b32.cont [6/16] 0.0, 128
  %3079 = vxpose.xlu0.b32.cont [7/16] 0.0, 128
  %3080 = vxpose.xlu0.b32.cont [8/16] 0.0, 128
  %3081 = vxpose.xlu0.b32.cont [9/16] 0.0, 128
  %3082 = vxpose.xlu0.b32.cont [10/16] 0.0, 128
  %3083 = vxpose.xlu0.b32.cont [11/16] 0.0, 128
  %3084 = vxpose.xlu0.b32.cont [12/16] 0.0, 128
  %3085 = vxpose.xlu0.b32.cont [13/16] 0.0, 128
  %3086 = vxpose.xlu0.b32.cont [14/16] 0.0, 128
  %3087 = vxpose.xlu0.b32.cont [15/16] 0.0, 128
  %3088 = vxpose.xlu0.b32.end [16/16] 0.0, 128
  %v3089 = vpop.trf.xlu0
  %v3090 = vpop.trf.xlu0
  %v3091 = vpop.trf.xlu0
  %v3092 = vpop.trf.xlu0
  %v3093 = vpop.trf.xlu0
  %v3094 = vpop.trf.xlu0
  %v3095 = vpop.trf.xlu0
  %v3096 = vpop.trf.xlu0
  %v3097 = vpop.trf.xlu0
  %v3098 = vpop.trf.xlu0
  %v3099 = vpop.trf.xlu0
  %v3100 = vpop.trf.xlu0
  %v3101 = vpop.trf.xlu0
  %v3102 = vpop.trf.xlu0
  %v3103 = vpop.trf.xlu0
  %v3104 = vpop.trf.xlu0
  %v3106 = vsel %vm691, %v3089, 0
  %v3109 = vsel %vm691, %v3090, 0
  %3111 = vmatprep.subr.mxu0 0.0
  %3112 = vmatpush1.msra.mxu0 %v2192
  %3113 = vmatprep.subr.mxu0 0.0
  %3114 = vmatpush1.msra.mxu0 %v2193
  %3115 = vmatprep.subr.mxu0 0.0
  %3116 = vmatpush1.msra.mxu0 %v2194
  %3117 = vmatprep.subr.mxu0 0.0
  %3118 = vmatpush1.msra.mxu0 %v2195
  %3119 = vmatprep.subr.mxu0 0.0
  %3120 = vmatpush1.msra.mxu0 0.0
  %3121 = vmatprep.subr.mxu0 0.0
  %3122 = vmatpush1.msra.mxu0 0.0
  %3123 = vmatprep.subr.mxu0 0.0
  %3124 = vmatpush1.msra.mxu0 0.0
  %3125 = vmatprep.subr.mxu0 0.0
  %3126 = vmatpush1.msra.mxu0 0.0
  %3127 = vmatprep.subr.mxu0 0.0
  %3128 = vmatpush1.msra.mxu0 0.0
  %3129 = vmatprep.subr.mxu0 0.0
  %3130 = vmatpush1.msra.mxu0 0.0
  %3131 = vmatprep.subr.mxu0 0.0
  %3132 = vmatpush1.msra.mxu0 0.0
  %3133 = vmatprep.subr.mxu0 0.0
  %3134 = vmatpush1.msra.mxu0 0.0
  %3135 = vmatprep.subr.mxu0 0.0
  %3136 = vmatpush1.msra.mxu0 0.0
  %3137 = vmatprep.subr.mxu0 0.0
  %3138 = vmatpush1.msra.mxu0 0.0
  %3139 = vmatprep.subr.mxu0 0.0
  %3140 = vmatpush1.msra.mxu0 0.0
  %3141 = vmatprep.subr.mxu0 0.0
  %3142 = vmatpush1.msra.mxu0 0.0
  %3143 = vmatprep.subr.mxu0 0.0
  %3144 = vmatpush1.msra.mxu0 0.0
  %3145 = vmatprep.subr.mxu0 0.0
  %3146 = vmatpush1.msra.mxu0 0.0
  %3147 = vmatprep.subr.mxu0 0.0
  %3148 = vmatpush1.msra.mxu0 0.0
  %3149 = vmatprep.subr.mxu0 0.0
  %3150 = vmatpush1.msra.mxu0 0.0
  %3151 = vmatprep.subr.mxu0 0.0
  %3152 = vmatpush1.msra.mxu0 0.0
  %3153 = vmatprep.subr.mxu0 0.0
  %3154 = vmatpush1.msra.mxu0 0.0
  %3155 = vmatprep.subr.mxu0 0.0
  %3156 = vmatpush1.msra.mxu0 0.0
  %3157 = vmatprep.subr.mxu0 0.0
  %3158 = vmatpush1.msra.mxu0 0.0
  %3159 = vmatprep.subr.mxu0 0.0
  %3160 = vmatpush1.msra.mxu0 0.0
  %3161 = vmatprep.subr.mxu0 0.0
  %3162 = vmatpush1.msra.mxu0 0.0
  %3163 = vmatprep.subr.mxu0 0.0
  %3164 = vmatpush1.msra.mxu0 0.0
  %3165 = vmatprep.subr.mxu0 0.0
  %3166 = vmatpush1.msra.mxu0 0.0
  %3167 = vmatprep.subr.mxu0 0.0
  %3168 = vmatpush1.msra.mxu0 0.0
  %3169 = vmatprep.subr.mxu0 0.0
  %3170 = vmatpush1.msra.mxu0 0.0
  %3171 = vmatprep.subr.mxu0 0.0
  %3172 = vmatpush1.msra.mxu0 0.0
  %3173 = vmatprep.subr.mxu0 0.0
  %3174 = vmatpush1.msra.mxu0 0.0
  %3175 = vmatprep.mubr.f32.mxu0 0.0
  %3176 = vmatmul.mubr.f32.gmra.mrb[0].mxu0 %v3106
  %v3177 = vpop.f32.mrb[0].mxu0
  %v3178 = vadd.f32 0.0, %v3177
  %v3179 = vpop.f32.mrb[0].mxu0
  %3180 = vmatprep.mubr.f32.mxu0 0.0
  %3181 = vmatmul.mubr.f32.gmra.mrb[0].mxu0 %v3109
  %v3182 = vpop.f32.mrb[0].mxu0
  %v3183 = vadd.f32 0.0, %v3182
  %v3184 = vpop.f32.mrb[0].mxu0
  %3185 = vdwg.mxu0
  %3186 = vxpose.xlu0.b32.start [1/16] %v2726, 128
  %3187 = vxpose.xlu0.b32.cont [2/16] %v2727, 128
  %3188 = vxpose.xlu0.b32.cont [3/16] %v2728, 128
  %3189 = vxpose.xlu0.b32.cont [4/16] %v2729, 128
  %3190 = vxpose.xlu0.b32.cont [5/16] 0.0, 128
  %3191 = vxpose.xlu0.b32.cont [6/16] 0.0, 128
  %3192 = vxpose.xlu0.b32.cont [7/16] 0.0, 128
  %3193 = vxpose.xlu0.b32.cont [8/16] 0.0, 128
  %3194 = vxpose.xlu0.b32.cont [9/16] 0.0, 128
  %3195 = vxpose.xlu0.b32.cont [10/16] 0.0, 128
  %3196 = vxpose.xlu0.b32.cont [11/16] 0.0, 128
  %3197 = vxpose.xlu0.b32.cont [12/16] 0.0, 128
  %3198 = vxpose.xlu0.b32.cont [13/16] 0.0, 128
  %3199 = vxpose.xlu0.b32.cont [14/16] 0.0, 128
  %3200 = vxpose.xlu0.b32.cont [15/16] 0.0, 128
  %3201 = vxpose.xlu0.b32.end [16/16] 0.0, 128
  %v3202 = vpop.trf.xlu0
  %v3203 = vpop.trf.xlu0
  %v3204 = vpop.trf.xlu0
  %v3205 = vpop.trf.xlu0
  %v3206 = vpop.trf.xlu0
  %v3207 = vpop.trf.xlu0
  %v3208 = vpop.trf.xlu0
  %v3209 = vpop.trf.xlu0
  %v3210 = vpop.trf.xlu0
  %v3211 = vpop.trf.xlu0
  %v3212 = vpop.trf.xlu0
  %v3213 = vpop.trf.xlu0
  %v3214 = vpop.trf.xlu0
  %v3215 = vpop.trf.xlu0
  %v3216 = vpop.trf.xlu0
  %v3217 = vpop.trf.xlu0
  %v3219 = vsel %vm691, %v3202, 0
  %v3222 = vsel %vm691, %v3203, 0
  %3224 = vmatprep.subr.mxu0 0.0
  %3225 = vmatpush1.msra.mxu0 %v2196
  %3226 = vmatprep.subr.mxu0 0.0
  %3227 = vmatpush1.msra.mxu0 %v2197
  %3228 = vmatprep.subr.mxu0 0.0
  %3229 = vmatpush1.msra.mxu0 %v2198
  %3230 = vmatprep.subr.mxu0 0.0
  %3231 = vmatpush1.msra.mxu0 %v2199
  %3232 = vmatprep.subr.mxu0 0.0
  %3233 = vmatpush1.msra.mxu0 0.0
  %3234 = vmatprep.subr.mxu0 0.0
  %3235 = vmatpush1.msra.mxu0 0.0
  %3236 = vmatprep.subr.mxu0 0.0
  %3237 = vmatpush1.msra.mxu0 0.0
  %3238 = vmatprep.subr.mxu0 0.0
  %3239 = vmatpush1.msra.mxu0 0.0
  %3240 = vmatprep.subr.mxu0 0.0
  %3241 = vmatpush1.msra.mxu0 0.0
  %3242 = vmatprep.subr.mxu0 0.0
  %3243 = vmatpush1.msra.mxu0 0.0
  %3244 = vmatprep.subr.mxu0 0.0
  %3245 = vmatpush1.msra.mxu0 0.0
  %3246 = vmatprep.subr.mxu0 0.0
  %3247 = vmatpush1.msra.mxu0 0.0
  %3248 = vmatprep.subr.mxu0 0.0
  %3249 = vmatpush1.msra.mxu0 0.0
  %3250 = vmatprep.subr.mxu0 0.0
  %3251 = vmatpush1.msra.mxu0 0.0
  %3252 = vmatprep.subr.mxu0 0.0
  %3253 = vmatpush1.msra.mxu0 0.0
  %3254 = vmatprep.subr.mxu0 0.0
  %3255 = vmatpush1.msra.mxu0 0.0
  %3256 = vmatprep.subr.mxu0 0.0
  %3257 = vmatpush1.msra.mxu0 0.0
  %3258 = vmatprep.subr.mxu0 0.0
  %3259 = vmatpush1.msra.mxu0 0.0
  %3260 = vmatprep.subr.mxu0 0.0
  %3261 = vmatpush1.msra.mxu0 0.0
  %3262 = vmatprep.subr.mxu0 0.0
  %3263 = vmatpush1.msra.mxu0 0.0
  %3264 = vmatprep.subr.mxu0 0.0
  %3265 = vmatpush1.msra.mxu0 0.0
  %3266 = vmatprep.subr.mxu0 0.0
  %3267 = vmatpush1.msra.mxu0 0.0
  %3268 = vmatprep.subr.mxu0 0.0
  %3269 = vmatpush1.msra.mxu0 0.0
  %3270 = vmatprep.subr.mxu0 0.0
  %3271 = vmatpush1.msra.mxu0 0.0
  %3272 = vmatprep.subr.mxu0 0.0
  %3273 = vmatpush1.msra.mxu0 0.0
  %3274 = vmatprep.subr.mxu0 0.0
  %3275 = vmatpush1.msra.mxu0 0.0
  %3276 = vmatprep.subr.mxu0 0.0
  %3277 = vmatpush1.msra.mxu0 0.0
  %3278 = vmatprep.subr.mxu0 0.0
  %3279 = vmatpush1.msra.mxu0 0.0
  %3280 = vmatprep.subr.mxu0 0.0
  %3281 = vmatpush1.msra.mxu0 0.0
  %3282 = vmatprep.subr.mxu0 0.0
  %3283 = vmatpush1.msra.mxu0 0.0
  %3284 = vmatprep.subr.mxu0 0.0
  %3285 = vmatpush1.msra.mxu0 0.0
  %3286 = vmatprep.subr.mxu0 0.0
  %3287 = vmatpush1.msra.mxu0 0.0
  %3288 = vmatprep.mubr.f32.mxu0 0.0
  %3289 = vmatmul.mubr.f32.gmra.mrb[0].mxu0 %v3219
  %v3290 = vpop.f32.mrb[0].mxu0
  %v3291 = vadd.f32 0.0, %v3290
  %v3292 = vpop.f32.mrb[0].mxu0
  %3293 = vmatprep.mubr.f32.mxu0 0.0
  %3294 = vmatmul.mubr.f32.gmra.mrb[0].mxu0 %v3222
  %v3295 = vpop.f32.mrb[0].mxu0
  %v3296 = vadd.f32 0.0, %v3295
  %v3297 = vpop.f32.mrb[0].mxu0
  %3298 = vdwg.mxu0
  %3299 = vxpose.xlu0.b32.start [1/16] %v2730, 128
  %3300 = vxpose.xlu0.b32.cont [2/16] %v2731, 128
  %3301 = vxpose.xlu0.b32.cont [3/16] %v2732, 128
  %3302 = vxpose.xlu0.b32.cont [4/16] %v2733, 128
  %3303 = vxpose.xlu0.b32.cont [5/16] 0.0, 128
  %3304 = vxpose.xlu0.b32.cont [6/16] 0.0, 128
  %3305 = vxpose.xlu0.b32.cont [7/16] 0.0, 128
  %3306 = vxpose.xlu0.b32.cont [8/16] 0.0, 128
  %3307 = vxpose.xlu0.b32.cont [9/16] 0.0, 128
  %3308 = vxpose.xlu0.b32.cont [10/16] 0.0, 128
  %3309 = vxpose.xlu0.b32.cont [11/16] 0.0, 128
  %3310 = vxpose.xlu0.b32.cont [12/16] 0.0, 128
  %3311 = vxpose.xlu0.b32.cont [13/16] 0.0, 128
  %3312 = vxpose.xlu0.b32.cont [14/16] 0.0, 128
  %3313 = vxpose.xlu0.b32.cont [15/16] 0.0, 128
  %3314 = vxpose.xlu0.b32.end [16/16] 0.0, 128
  %v3315 = vpop.trf.xlu0
  %v3316 = vpop.trf.xlu0
  %v3317 = vpop.trf.xlu0
  %v3318 = vpop.trf.xlu0
  %v3319 = vpop.trf.xlu0
  %v3320 = vpop.trf.xlu0
  %v3321 = vpop.trf.xlu0
  %v3322 = vpop.trf.xlu0
  %v3323 = vpop.trf.xlu0
  %v3324 = vpop.trf.xlu0
  %v3325 = vpop.trf.xlu0
  %v3326 = vpop.trf.xlu0
  %v3327 = vpop.trf.xlu0
  %v3328 = vpop.trf.xlu0
  %v3329 = vpop.trf.xlu0
  %v3330 = vpop.trf.xlu0
  %v3332 = vsel %vm691, %v3315, 0
  %v3335 = vsel %vm691, %v3316, 0
  %3337 = vmatprep.subr.mxu0 0.0
  %3338 = vmatpush1.msra.mxu0 %v2200
  %3339 = vmatprep.subr.mxu0 0.0
  %3340 = vmatpush1.msra.mxu0 %v2201
  %3341 = vmatprep.subr.mxu0 0.0
  %3342 = vmatpush1.msra.mxu0 %v2202
  %3343 = vmatprep.subr.mxu0 0.0
  %3344 = vmatpush1.msra.mxu0 %v2203
  %3345 = vmatprep.subr.mxu0 0.0
  %3346 = vmatpush1.msra.mxu0 0.0
  %3347 = vmatprep.subr.mxu0 0.0
  %3348 = vmatpush1.msra.mxu0 0.0
  %3349 = vmatprep.subr.mxu0 0.0
  %3350 = vmatpush1.msra.mxu0 0.0
  %3351 = vmatprep.subr.mxu0 0.0
  %3352 = vmatpush1.msra.mxu0 0.0
  %3353 = vmatprep.subr.mxu0 0.0
  %3354 = vmatpush1.msra.mxu0 0.0
  %3355 = vmatprep.subr.mxu0 0.0
  %3356 = vmatpush1.msra.mxu0 0.0
  %3357 = vmatprep.subr.mxu0 0.0
  %3358 = vmatpush1.msra.mxu0 0.0
  %3359 = vmatprep.subr.mxu0 0.0
  %3360 = vmatpush1.msra.mxu0 0.0
  %3361 = vmatprep.subr.mxu0 0.0
  %3362 = vmatpush1.msra.mxu0 0.0
  %3363 = vmatprep.subr.mxu0 0.0
  %3364 = vmatpush1.msra.mxu0 0.0
  %3365 = vmatprep.subr.mxu0 0.0
  %3366 = vmatpush1.msra.mxu0 0.0
  %3367 = vmatprep.subr.mxu0 0.0
  %3368 = vmatpush1.msra.mxu0 0.0
  %3369 = vmatprep.subr.mxu0 0.0
  %3370 = vmatpush1.msra.mxu0 0.0
  %3371 = vmatprep.subr.mxu0 0.0
  %3372 = vmatpush1.msra.mxu0 0.0
  %3373 = vmatprep.subr.mxu0 0.0
  %3374 = vmatpush1.msra.mxu0 0.0
  %3375 = vmatprep.subr.mxu0 0.0
  %3376 = vmatpush1.msra.mxu0 0.0
  %3377 = vmatprep.subr.mxu0 0.0
  %3378 = vmatpush1.msra.mxu0 0.0
  %3379 = vmatprep.subr.mxu0 0.0
  %3380 = vmatpush1.msra.mxu0 0.0
  %3381 = vmatprep.subr.mxu0 0.0
  %3382 = vmatpush1.msra.mxu0 0.0
  %3383 = vmatprep.subr.mxu0 0.0
  %3384 = vmatpush1.msra.mxu0 0.0
  %3385 = vmatprep.subr.mxu0 0.0
  %3386 = vmatpush1.msra.mxu0 0.0
  %3387 = vmatprep.subr.mxu0 0.0
  %3388 = vmatpush1.msra.mxu0 0.0
  %3389 = vmatprep.subr.mxu0 0.0
  %3390 = vmatpush1.msra.mxu0 0.0
  %3391 = vmatprep.subr.mxu0 0.0
  %3392 = vmatpush1.msra.mxu0 0.0
  %3393 = vmatprep.subr.mxu0 0.0
  %3394 = vmatpush1.msra.mxu0 0.0
  %3395 = vmatprep.subr.mxu0 0.0
  %3396 = vmatpush1.msra.mxu0 0.0
  %3397 = vmatprep.subr.mxu0 0.0
  %3398 = vmatpush1.msra.mxu0 0.0
  %3399 = vmatprep.subr.mxu0 0.0
  %3400 = vmatpush1.msra.mxu0 0.0
  %3401 = vmatprep.mubr.f32.mxu0 0.0
  %3402 = vmatmul.mubr.f32.gmra.mrb[0].mxu0 %v3332
  %v3403 = vpop.f32.mrb[0].mxu0
  %v3404 = vadd.f32 0.0, %v3403
  %v3405 = vpop.f32.mrb[0].mxu0
  %3406 = vmatprep.mubr.f32.mxu0 0.0
  %3407 = vmatmul.mubr.f32.gmra.mrb[0].mxu0 %v3335
  %v3408 = vpop.f32.mrb[0].mxu0
  %v3409 = vadd.f32 0.0, %v3408
  %v3410 = vpop.f32.mrb[0].mxu0
  %3411 = vdwg.mxu0
  %3412 = vst.msk [vmem:[%s5] sm:$0xff] %vm691, %v2839
  %3413 = vst.msk [vmem:[%s5 + $0x8] sm:$0xff] %vm691, %v2844
  %3414 = vst.msk [vmem:[%s5 + $0x10] sm:$0xff] %vm691, %v2952
  %3415 = vst.msk [vmem:[%s5 + $0x18] sm:$0xff] %vm691, %v2957
  %3416 = vst.msk [vmem:[%s5 + $0x20] sm:$0xff] %vm691, %v3065
  %3417 = vst.msk [vmem:[%s5 + $0x28] sm:$0xff] %vm691, %v3070
  %3418 = vst.msk [vmem:[%s5 + $0x30] sm:$0xff] %vm691, %v3178
  %3419 = vst.msk [vmem:[%s5 + $0x38] sm:$0xff] %vm691, %v3183
  %3420 = vst.msk [vmem:[%s5 + $0x40] sm:$0xff] %vm691, %v3291
  %3421 = vst.msk [vmem:[%s5 + $0x48] sm:$0xff] %vm691, %v3296
  %3422 = vst.msk [vmem:[%s5 + $0x50] sm:$0xff] %vm691, %v3404
  %3423 = vst.msk [vmem:[%s5 + $0x58] sm:$0xff] %vm691, %v3409
  // Predicated region
  $region22: #{gat_layer_v2_forward.8} parent=0 // pred_check
    _
  $region23: #{gat_layer_v2_forward.8} parent=0 // pred_check_branch
    %3425 = sbr.rel (0) target = $region25
  $region24: #{gat_layer_v2_forward.8} parent=0 // pred_region
    _
  $region25: #{gat_layer_v2_forward.8} parent=0 // pred_fallthru
    _
  // Predicated region
  $region26: #{gat_layer_v2_forward.8} parent=0 // pred_check
    _
  $region27: #{gat_layer_v2_forward.8} parent=0 // pred_check_branch
    %3427 = sbr.rel (0) target = $region29
  $region28: #{gat_layer_v2_forward.8} parent=0 // pred_region
    _
  $region29: #{gat_layer_v2_forward.8} parent=0 // pred_fallthru
    _

</llo_original>
